<compile_context>
chip_gen: v7x
topology: tpu7x:2x2x1
jax: 0.10.0
libtpu: 0.0.40
codegen_flags: <defaults>
</compile_context>

<pallas_src>
import functools

import jax
import jax.numpy as jnp
from jax import lax
from jax.experimental import pallas as pl
from jax.experimental.pallas import tpu as pltpu


# ----------------------------------------------------------------------------
# Fused Pallas kernel: L stacked LSTM layers + dense head
# ----------------------------------------------------------------------------
def _lstmad_fused_kernel(*refs, num_layers, T, B, H):
    """refs = (x, [w_ih_l, w_hh_l, b_l]*L, w_d, b_d, out, gx_scratch)

    x     : (T*B, D_in)  time-major rows (row = t*B + b)
    w_ih_l: (D_l, 4H)    pre-transposed, gate columns [i|f|o|g], i/f/o *0.5
    w_hh_l: (H,   4H)    pre-transposed, same gate order / scaling
    b_l   : (1,   4H)    b_ih + b_hh, same gate order / scaling
    w_d   : (T*H, Dout)  pre-transposed dense weight (batch-first flatten order)
    b_d   : (1,  Dout)
    out   : (B,  Dout)
    gx    : (T, B, 4H)   VMEM scratch for the batched layer-0 projection
    """
    x_ref = refs[0]
    w_d_ref = refs[1 + 3 * num_layers]
    b_d_ref = refs[2 + 3 * num_layers]
    out_ref = refs[3 + 3 * num_layers]
    gx_ref = refs[4 + 3 * num_layers]
    H4 = 4 * H
    d_out = b_d_ref.shape[1]

    # ---- Phase 1: batched layer-0 input projection (no sequential dep) -----
    # One (T*B, D) @ (D, 4H) matmul; the sublane-misaligned per-timestep slab
    # extraction happens HERE (off the recurrence chain). Each store lands in
    # gx_ref[t], so every per-step read below is an aligned vld.
    w_ih0 = refs[1][...]                       # (D_in, 4H)
    b0 = refs[3][...]                          # (1, 4H)
    gx0 = jnp.dot(x_ref[...], w_ih0,
                  preferred_element_type=jnp.float32) + b0   # (T*B, 4H)
    for t in range(T):
        gx_ref[t] = gx0[t * B:(t + 1) * B, :]

    # ---- Phase 2: stacked recurrence + fused dense head --------------------
    # Dense head: batch-first flatten means y[:, t*H:(t+1)*H] == h_t of the
    # last layer, so dense(y) == sum_t h_t @ W_d[t*H:(t+1)*H, :] + b_d.
    acc = jnp.broadcast_to(b_d_ref[...], (B, d_out))    # b_d folded into init
    last = num_layers - 1
    h_prev_seq = None
    for l in range(num_layers):
        w_hh = refs[2 + 3 * l][...]            # (H, 4H)
        if l > 0:
            w_ih = refs[1 + 3 * l][...]        # (H, 4H)
            # hoist the bias broadcast out of the T loop (JAX won't CSE it)
            b_full = jnp.broadcast_to(refs[3 + 3 * l][...], (B, H4))

        h = jnp.zeros((B, H), jnp.float32)
        c = jnp.zeros((B, H), jnp.float32)
        new_h = [] if l < last else None
        for t in range(T):
            if l == 0:
                gx = gx_ref[t]                                     # (B, 4H)
            else:
                # per-t projection (not batched) so layer l can pipeline with
                # layer l-1: it only needs h_{l-1,t}, not the whole sequence.
                gx = jnp.dot(h_prev_seq[t], w_ih,
                             preferred_element_type=jnp.float32) + b_full
            gates = gx + jnp.dot(h, w_hh, preferred_element_type=jnp.float32)

            # i/f/o weight columns were pre-scaled by 0.5, so
            # sigmoid(x) == 0.5*tanh(x/2) + 0.5 comes out of ONE tanh pass
            # over the full (B, 4H) slab (gate order [i|f|o|g]).
            t4 = jnp.tanh(gates)
            sg = 0.5 * t4[:, :3 * H] + 0.5
            i_g = sg[:, 0 * H:1 * H]
            f_g = sg[:, 1 * H:2 * H]
            o_g = sg[:, 2 * H:3 * H]
            g_g = t4[:, 3 * H:]

            c = f_g * c + i_g * g_g
            h = o_g * jnp.tanh(c)
            if l < last:
                new_h.append(h)
            else:
                # dense head fused with the last layer's recurrence; t*H row
                # offsets are 8-sublane aligned (H multiple of 8).
                acc = acc + jnp.dot(h, w_d_ref[t * H:(t + 1) * H, :],
                                    preferred_element_type=jnp.float32)
        h_prev_seq = new_h

    out_ref[...] = acc


def _lstmad_fused_call(x_tb, lstm_layer_params, w_d, b_d, *, B, T, H):
    """One pallas_call for the whole forward. All operands are tiny -> whole-
    array VMEM residency, no grid. (For scaled-up configs, tile B / the dense
    T*H axis with a grid + BlockSpecs instead.)"""
    num_layers = len(lstm_layer_params)
    inputs = [x_tb]
    for (w_ih_t, w_hh_t, b) in lstm_layer_params:
        inputs += [w_ih_t, w_hh_t, b]
    inputs += [w_d, b_d]
    d_out = w_d.shape[1]

    vmem = pl.BlockSpec(memory_space=pltpu.MemorySpace.VMEM)
    kernel = functools.partial(_lstmad_fused_kernel,
                               num_layers=num_layers, T=T, B=B, H=H)
    return pl.pallas_call(
        kernel,
        out_shape=jax.ShapeDtypeStruct((B, d_out), jnp.float32),
        in_specs=[vmem] * len(inputs),
        out_specs=vmem,
        scratch_shapes=[pltpu.VMEM((T, B, 4 * H), jnp.float32)],
    )(*inputs)


# ----------------------------------------------------------------------------
# Parameter init (torch layout) and kernel-layout preparation
# ----------------------------------------------------------------------------
def init_lstmad_params(key, input_size, lstm_layers, window_size,
                       prediction_length, hidden_units):
    """Deterministic synthetic parameter init (torch-style uniform(-k, k)),
    stored in torch layout: w_ih (4H, D_in), w_hh (4H, H), gate order i,f,g,o."""
    H = hidden_units * prediction_length
    params = {"lstm": []}
    k = 1.0 / jnp.sqrt(jnp.float32(H))
    d_in = input_size
    for _ in range(lstm_layers):
        key, k1, k2, k3, k4 = jax.random.split(key, 5)
        w_ih = jax.random.uniform(k1, (4 * H, d_in), jnp.float32, -k, k)
        w_hh = jax.random.uniform(k2, (4 * H, H), jnp.float32, -k, k)
        b_ih = jax.random.uniform(k3, (4 * H,), jnp.float32, -k, k)
        b_hh = jax.random.uniform(k4, (4 * H,), jnp.float32, -k, k)
        params["lstm"].append((w_ih, w_hh, b_ih, b_hh))
        d_in = H
    f_in = window_size * H
    kd = 1.0 / jnp.sqrt(jnp.float32(f_in))
    key, k1, k2 = jax.random.split(key, 3)
    params["dense_w"] = jax.random.uniform(k1, (H, f_in), jnp.float32, -kd, kd)
    params["dense_b"] = jax.random.uniform(k2, (H,), jnp.float32, -kd, kd)
    return params


def _reorder_gate_cols(a, H):
    """Reorder the 4H gate axis (last axis) from torch [i|f|g|o] to [i|f|o|g]."""
    return jnp.concatenate([a[..., :2 * H], a[..., 3 * H:], a[..., 2 * H:3 * H]],
                           axis=-1)


def _prescale_sigmoid_cols(a, H):
    """Scale the i/f/o gate columns (first 3H after reorder) by 0.5 so that
    sigmoid(x) = 0.5*tanh(x/2) + 0.5 can be computed with a single tanh pass
    over the full gate slab inside the kernel."""
    return jnp.concatenate([0.5 * a[..., :3 * H], a[..., 3 * H:]], axis=-1)


def prepare_kernel_params(params):
    """One-time conversion: transpose weights, combine+reorder biases, and
    pre-scale the sigmoid-gate columns, so the kernel does zero per-call
    weight massaging. (For scaled configs, also cast weights to bf16 here.)"""
    H = params["lstm"][0][1].shape[1]
    layers = []
    for (w_ih, w_hh, b_ih, b_hh) in params["lstm"]:
        w_ih_t = _prescale_sigmoid_cols(
            _reorder_gate_cols(jnp.transpose(w_ih), H), H)             # (D_in, 4H)
        w_hh_t = _prescale_sigmoid_cols(
            _reorder_gate_cols(jnp.transpose(w_hh), H), H)             # (H, 4H)
        b = _prescale_sigmoid_cols(
            _reorder_gate_cols((b_ih + b_hh)[None, :], H), H)          # (1, 4H)
        layers.append((w_ih_t, w_hh_t, b))
    return {
        "lstm": tuple(layers),
        "dense_w": jnp.transpose(params["dense_w"]),                   # (T*H, Dout)
        "dense_b": params["dense_b"][None, :],                         # (1, Dout)
    }


# ----------------------------------------------------------------------------
# Forward (single fused Pallas kernel inside jit)
# ----------------------------------------------------------------------------
@jax.jit
def lstmad_forward(x, kparams):
    """x: (B, T, D) batch-first, like the torch module. kparams from
    prepare_kernel_params()."""
    B, T, _ = x.shape
    H = kparams["lstm"][0][1].shape[0]
    # Time-major row order (row = t*B + b) so the kernel's single batched
    # layer-0 projection yields contiguous per-timestep (B, 4H) slabs.
    # This is the only host-side data movement (256 B at this config); all
    # inter-layer intermediates and the (B, T*H) flatten live inside the kernel.
    x_tb = jnp.transpose(x, (1, 0, 2)).reshape(T * B, x.shape[2])
    return _lstmad_fused_call(x_tb, kparams["lstm"],
                              kparams["dense_w"], kparams["dense_b"],
                              B=B, T=T, H=H)


# ----------------------------------------------------------------------------
# Pure-JAX reference (torch semantics; for correctness check only)
# ----------------------------------------------------------------------------
def lstmad_forward_ref(x, params):
    B, T, _ = x.shape
    h_seq = jnp.transpose(x, (1, 0, 2))
    for (w_ih, w_hh, b_ih, b_hh) in params["lstm"]:
        H = w_hh.shape[1]
        h0 = jnp.zeros((B, H), jnp.float32)
        c0 = jnp.zeros((B, H), jnp.float32)

        def step(carry, x_t):
            h, c = carry
            gates = x_t @ w_ih.T + h @ w_hh.T + b_ih + b_hh
            i = jax.nn.sigmoid(gates[:, 0 * H:1 * H])
            f = jax.nn.sigmoid(gates[:, 1 * H:2 * H])
            g = jnp.tanh(gates[:, 2 * H:3 * H])
            o = jax.nn.sigmoid(gates[:, 3 * H:4 * H])
            c = f * c + i * g
            h = o * jnp.tanh(c)
            return (h, c), h

        _, h_seq = lax.scan(step, (h0, c0), h_seq)
    H = params["lstm"][-1][1].shape[1]
    y = jnp.transpose(h_seq, (1, 0, 2)).reshape(B, T * H)
    return y @ params["dense_w"].T + params["dense_b"]


# ----------------------------------------------------------------------------
if __name__ == "__main__":
    # Small config consistent with the module:
    #   input_size=4, lstm_layers=2, window_size=8, prediction_window_size=2,
    #   output_dims=[]  => hidden_units = input_size = 4, H = 8
    input_size = 4
    lstm_layers = 2
    window_size = 8
    prediction_length = 2
    hidden_units = input_size          # output_dims == []
    batch = 2

    key = jax.random.PRNGKey(0)
    key, kx, kp = jax.random.split(key, 3)
    x = jax.random.normal(kx, (batch, window_size, input_size), jnp.float32)
    params = init_lstmad_params(kp, input_size, lstm_layers, window_size,
                                prediction_length, hidden_units)
    kparams = prepare_kernel_params(params)

    out = lstmad_forward(x, kparams)
    out = jax.block_until_ready(out)

    ref = lstmad_forward_ref(x, params)
    assert out.shape == (batch, hidden_units * prediction_length)
    assert jnp.allclose(out, ref, atol=1e-5, rtol=1e-5), "mismatch vs reference"

    print("KERNEL_OK")
</pallas_src>

<mosaic_0001>
module attributes {stable_mosaic.version = 11 : i64} {
  func.func @_lstmad_fused_kernel(%arg0: memref<16x4xf32, #tpu.memory_space<vmem>>, %arg1: memref<4x32xf32, #tpu.memory_space<vmem>>, %arg2: memref<8x32xf32, #tpu.memory_space<vmem>>, %arg3: memref<1x32xf32, #tpu.memory_space<vmem>>, %arg4: memref<8x32xf32, #tpu.memory_space<vmem>>, %arg5: memref<8x32xf32, #tpu.memory_space<vmem>>, %arg6: memref<1x32xf32, #tpu.memory_space<vmem>>, %arg7: memref<64x8xf32, #tpu.memory_space<vmem>>, %arg8: memref<1x8xf32, #tpu.memory_space<vmem>>, %arg9: memref<2x8xf32, #tpu.memory_space<vmem>>, %arg10: memref<8x2x32xf32, #tpu.memory_space<vmem>>) attributes {dimension_semantics = [], scalar_prefetch = 0 : i64, scratch_operands = 1 : i64, tpu.core_type = #tpu.core_type<tc>} {
    %c0 = arith.constant 0 : index
    %c0_0 = arith.constant 0 : index
    %0 = vector.load %arg1[%c0, %c0_0] : memref<4x32xf32, #tpu.memory_space<vmem>>, vector<4x32xf32>
    %c0_1 = arith.constant 0 : index
    %c0_2 = arith.constant 0 : index
    %1 = vector.load %arg3[%c0_1, %c0_2] : memref<1x32xf32, #tpu.memory_space<vmem>>, vector<1x32xf32>
    %c0_3 = arith.constant 0 : index
    %c0_4 = arith.constant 0 : index
    %2 = vector.load %arg0[%c0_3, %c0_4] : memref<16x4xf32, #tpu.memory_space<vmem>>, vector<16x4xf32>
    %cst = arith.constant dense<0.000000e+00> : vector<16x32xf32>
    %3 = tpu.matmul %2, %0, %cst {dimension_numbers = #tpu.dot_dimension_numbers<[1], [0], [0], [1], [0, 0, 1, 1], [], []>} : vector<16x4xf32>, vector<4x32xf32>, vector<16x32xf32> -> vector<16x32xf32>
    %4 = vector.broadcast %1 : vector<1x32xf32> to vector<16x32xf32>
    %5 = arith.addf %3, %4 : vector<16x32xf32>
    %6 = vector.extract_strided_slice %5 {offsets = [0, 0], sizes = [2, 32], strides = [1, 1]} : vector<16x32xf32> to vector<2x32xf32>
    %c0_5 = arith.constant 0 : index
    %c0_6 = arith.constant 0 : index
    %c0_7 = arith.constant 0 : index
    %7 = vector.load %arg10[%c0_5, %c0_6, %c0_7] : memref<8x2x32xf32, #tpu.memory_space<vmem>>, vector<1x2x32xf32>
    %8 = vector.shape_cast %7 : vector<1x2x32xf32> to vector<2x32xf32>
    %9 = vector.shape_cast %6 : vector<2x32xf32> to vector<1x2x32xf32>
    tpu.vector_store %arg10[%c0_5, %c0_6, %c0_7], %9 {strides = array<i32>} : memref<8x2x32xf32, #tpu.memory_space<vmem>>, vector<1x2x32xf32>,
    %10 = vector.extract_strided_slice %5 {offsets = [2, 0], sizes = [2, 32], strides = [1, 1]} : vector<16x32xf32> to vector<2x32xf32>
    %c1 = arith.constant 1 : index
    %c0_8 = arith.constant 0 : index
    %c0_9 = arith.constant 0 : index
    %11 = vector.load %arg10[%c1, %c0_8, %c0_9] : memref<8x2x32xf32, #tpu.memory_space<vmem>>, vector<1x2x32xf32>
    %12 = vector.shape_cast %11 : vector<1x2x32xf32> to vector<2x32xf32>
    %13 = vector.shape_cast %10 : vector<2x32xf32> to vector<1x2x32xf32>
    tpu.vector_store %arg10[%c1, %c0_8, %c0_9], %13 {strides = array<i32>} : memref<8x2x32xf32, #tpu.memory_space<vmem>>, vector<1x2x32xf32>,
    %14 = vector.extract_strided_slice %5 {offsets = [4, 0], sizes = [2, 32], strides = [1, 1]} : vector<16x32xf32> to vector<2x32xf32>
    %c2 = arith.constant 2 : index
    %c0_10 = arith.constant 0 : index
    %c0_11 = arith.constant 0 : index
    %15 = vector.load %arg10[%c2, %c0_10, %c0_11] : memref<8x2x32xf32, #tpu.memory_space<vmem>>, vector<1x2x32xf32>
    %16 = vector.shape_cast %15 : vector<1x2x32xf32> to vector<2x32xf32>
    %17 = vector.shape_cast %14 : vector<2x32xf32> to vector<1x2x32xf32>
    tpu.vector_store %arg10[%c2, %c0_10, %c0_11], %17 {strides = array<i32>} : memref<8x2x32xf32, #tpu.memory_space<vmem>>, vector<1x2x32xf32>,
    %18 = vector.extract_strided_slice %5 {offsets = [6, 0], sizes = [2, 32], strides = [1, 1]} : vector<16x32xf32> to vector<2x32xf32>
    %c3 = arith.constant 3 : index
    %c0_12 = arith.constant 0 : index
    %c0_13 = arith.constant 0 : index
    %19 = vector.load %arg10[%c3, %c0_12, %c0_13] : memref<8x2x32xf32, #tpu.memory_space<vmem>>, vector<1x2x32xf32>
    %20 = vector.shape_cast %19 : vector<1x2x32xf32> to vector<2x32xf32>
    %21 = vector.shape_cast %18 : vector<2x32xf32> to vector<1x2x32xf32>
    tpu.vector_store %arg10[%c3, %c0_12, %c0_13], %21 {strides = array<i32>} : memref<8x2x32xf32, #tpu.memory_space<vmem>>, vector<1x2x32xf32>,
    %22 = vector.extract_strided_slice %5 {offsets = [8, 0], sizes = [2, 32], strides = [1, 1]} : vector<16x32xf32> to vector<2x32xf32>
    %c4 = arith.constant 4 : index
    %c0_14 = arith.constant 0 : index
    %c0_15 = arith.constant 0 : index
    %23 = vector.load %arg10[%c4, %c0_14, %c0_15] : memref<8x2x32xf32, #tpu.memory_space<vmem>>, vector<1x2x32xf32>
    %24 = vector.shape_cast %23 : vector<1x2x32xf32> to vector<2x32xf32>
    %25 = vector.shape_cast %22 : vector<2x32xf32> to vector<1x2x32xf32>
    tpu.vector_store %arg10[%c4, %c0_14, %c0_15], %25 {strides = array<i32>} : memref<8x2x32xf32, #tpu.memory_space<vmem>>, vector<1x2x32xf32>,
    %26 = vector.extract_strided_slice %5 {offsets = [10, 0], sizes = [2, 32], strides = [1, 1]} : vector<16x32xf32> to vector<2x32xf32>
    %c5 = arith.constant 5 : index
    %c0_16 = arith.constant 0 : index
    %c0_17 = arith.constant 0 : index
    %27 = vector.load %arg10[%c5, %c0_16, %c0_17] : memref<8x2x32xf32, #tpu.memory_space<vmem>>, vector<1x2x32xf32>
    %28 = vector.shape_cast %27 : vector<1x2x32xf32> to vector<2x32xf32>
    %29 = vector.shape_cast %26 : vector<2x32xf32> to vector<1x2x32xf32>
    tpu.vector_store %arg10[%c5, %c0_16, %c0_17], %29 {strides = array<i32>} : memref<8x2x32xf32, #tpu.memory_space<vmem>>, vector<1x2x32xf32>,
    %30 = vector.extract_strided_slice %5 {offsets = [12, 0], sizes = [2, 32], strides = [1, 1]} : vector<16x32xf32> to vector<2x32xf32>
    %c6 = arith.constant 6 : index
    %c0_18 = arith.constant 0 : index
    %c0_19 = arith.constant 0 : index
    %31 = vector.load %arg10[%c6, %c0_18, %c0_19] : memref<8x2x32xf32, #tpu.memory_space<vmem>>, vector<1x2x32xf32>
    %32 = vector.shape_cast %31 : vector<1x2x32xf32> to vector<2x32xf32>
    %33 = vector.shape_cast %30 : vector<2x32xf32> to vector<1x2x32xf32>
    tpu.vector_store %arg10[%c6, %c0_18, %c0_19], %33 {strides = array<i32>} : memref<8x2x32xf32, #tpu.memory_space<vmem>>, vector<1x2x32xf32>,
    %34 = vector.extract_strided_slice %5 {offsets = [14, 0], sizes = [2, 32], strides = [1, 1]} : vector<16x32xf32> to vector<2x32xf32>
    %c7 = arith.constant 7 : index
    %c0_20 = arith.constant 0 : index
    %c0_21 = arith.constant 0 : index
    %35 = vector.load %arg10[%c7, %c0_20, %c0_21] : memref<8x2x32xf32, #tpu.memory_space<vmem>>, vector<1x2x32xf32>
    %36 = vector.shape_cast %35 : vector<1x2x32xf32> to vector<2x32xf32>
    %37 = vector.shape_cast %34 : vector<2x32xf32> to vector<1x2x32xf32>
    tpu.vector_store %arg10[%c7, %c0_20, %c0_21], %37 {strides = array<i32>} : memref<8x2x32xf32, #tpu.memory_space<vmem>>, vector<1x2x32xf32>,
    %c0_22 = arith.constant 0 : index
    %c0_23 = arith.constant 0 : index
    %38 = vector.load %arg8[%c0_22, %c0_23] : memref<1x8xf32, #tpu.memory_space<vmem>>, vector<1x8xf32>
    %39 = vector.shape_cast %38 : vector<1x8xf32> to vector<1x8xf32>
    %40 = vector.broadcast %39 : vector<1x8xf32> to vector<2x8xf32>
    %c0_24 = arith.constant 0 : index
    %c0_25 = arith.constant 0 : index
    %41 = vector.load %arg2[%c0_24, %c0_25] : memref<8x32xf32, #tpu.memory_space<vmem>>, vector<8x32xf32>
    %cst_26 = arith.constant 0.000000e+00 : f32
    %42 = vector.broadcast %cst_26 : f32 to vector<2x8xf32>
    %cst_27 = arith.constant 0.000000e+00 : f32
    %43 = vector.broadcast %cst_27 : f32 to vector<2x8xf32>
    %c0_28 = arith.constant 0 : index
    %c0_29 = arith.constant 0 : index
    %c0_30 = arith.constant 0 : index
    %44 = vector.load %arg10[%c0_28, %c0_29, %c0_30] : memref<8x2x32xf32, #tpu.memory_space<vmem>>, vector<1x2x32xf32>
    %45 = vector.shape_cast %44 : vector<1x2x32xf32> to vector<2x32xf32>
    %cst_31 = arith.constant dense<0.000000e+00> : vector<2x32xf32>
    %46 = tpu.matmul %42, %41, %cst_31 {dimension_numbers = #tpu.dot_dimension_numbers<[1], [0], [0], [1], [0, 0, 1, 1], [], []>} : vector<2x8xf32>, vector<8x32xf32>, vector<2x32xf32> -> vector<2x32xf32>
    %47 = arith.addf %45, %46 : vector<2x32xf32>
    %48 = math.tanh %47 : vector<2x32xf32>
    %49 = vector.extract_strided_slice %48 {offsets = [0, 0], sizes = [2, 24], strides = [1, 1]} : vector<2x32xf32> to vector<2x24xf32>
    %cst_32 = arith.constant 5.000000e-01 : f32
    %50 = vector.broadcast %cst_32 : f32 to vector<2x24xf32>
    %51 = arith.mulf %50, %49 : vector<2x24xf32>
    %cst_33 = arith.constant 5.000000e-01 : f32
    %52 = vector.broadcast %cst_33 : f32 to vector<2x24xf32>
    %53 = arith.addf %51, %52 : vector<2x24xf32>
    %54 = vector.extract_strided_slice %53 {offsets = [0, 0], sizes = [2, 8], strides = [1, 1]} : vector<2x24xf32> to vector<2x8xf32>
    %55 = vector.extract_strided_slice %53 {offsets = [0, 8], sizes = [2, 8], strides = [1, 1]} : vector<2x24xf32> to vector<2x8xf32>
    %56 = vector.extract_strided_slice %53 {offsets = [0, 16], sizes = [2, 8], strides = [1, 1]} : vector<2x24xf32> to vector<2x8xf32>
    %57 = vector.extract_strided_slice %48 {offsets = [0, 24], sizes = [2, 8], strides = [1, 1]} : vector<2x32xf32> to vector<2x8xf32>
    %58 = arith.mulf %55, %43 : vector<2x8xf32>
    %59 = arith.mulf %54, %57 : vector<2x8xf32>
    %60 = arith.addf %58, %59 : vector<2x8xf32>
    %61 = math.tanh %60 : vector<2x8xf32>
    %62 = arith.mulf %56, %61 : vector<2x8xf32>
    %c1_34 = arith.constant 1 : index
    %c0_35 = arith.constant 0 : index
    %c0_36 = arith.constant 0 : index
    %63 = vector.load %arg10[%c1_34, %c0_35, %c0_36] : memref<8x2x32xf32, #tpu.memory_space<vmem>>, vector<1x2x32xf32>
    %64 = vector.shape_cast %63 : vector<1x2x32xf32> to vector<2x32xf32>
    %cst_37 = arith.constant dense<0.000000e+00> : vector<2x32xf32>
    %65 = tpu.matmul %62, %41, %cst_37 {dimension_numbers = #tpu.dot_dimension_numbers<[1], [0], [0], [1], [0, 0, 1, 1], [], []>} : vector<2x8xf32>, vector<8x32xf32>, vector<2x32xf32> -> vector<2x32xf32>
    %66 = arith.addf %64, %65 : vector<2x32xf32>
    %67 = math.tanh %66 : vector<2x32xf32>
    %68 = vector.extract_strided_slice %67 {offsets = [0, 0], sizes = [2, 24], strides = [1, 1]} : vector<2x32xf32> to vector<2x24xf32>
    %cst_38 = arith.constant 5.000000e-01 : f32
    %69 = vector.broadcast %cst_38 : f32 to vector<2x24xf32>
    %70 = arith.mulf %69, %68 : vector<2x24xf32>
    %cst_39 = arith.constant 5.000000e-01 : f32
    %71 = vector.broadcast %cst_39 : f32 to vector<2x24xf32>
    %72 = arith.addf %70, %71 : vector<2x24xf32>
    %73 = vector.extract_strided_slice %72 {offsets = [0, 0], sizes = [2, 8], strides = [1, 1]} : vector<2x24xf32> to vector<2x8xf32>
    %74 = vector.extract_strided_slice %72 {offsets = [0, 8], sizes = [2, 8], strides = [1, 1]} : vector<2x24xf32> to vector<2x8xf32>
    %75 = vector.extract_strided_slice %72 {offsets = [0, 16], sizes = [2, 8], strides = [1, 1]} : vector<2x24xf32> to vector<2x8xf32>
    %76 = vector.extract_strided_slice %67 {offsets = [0, 24], sizes = [2, 8], strides = [1, 1]} : vector<2x32xf32> to vector<2x8xf32>
    %77 = arith.mulf %74, %60 : vector<2x8xf32>
    %78 = arith.mulf %73, %76 : vector<2x8xf32>
    %79 = arith.addf %77, %78 : vector<2x8xf32>
    %80 = math.tanh %79 : vector<2x8xf32>
    %81 = arith.mulf %75, %80 : vector<2x8xf32>
    %c2_40 = arith.constant 2 : index
    %c0_41 = arith.constant 0 : index
    %c0_42 = arith.constant 0 : index
    %82 = vector.load %arg10[%c2_40, %c0_41, %c0_42] : memref<8x2x32xf32, #tpu.memory_space<vmem>>, vector<1x2x32xf32>
    %83 = vector.shape_cast %82 : vector<1x2x32xf32> to vector<2x32xf32>
    %cst_43 = arith.constant dense<0.000000e+00> : vector<2x32xf32>
    %84 = tpu.matmul %81, %41, %cst_43 {dimension_numbers = #tpu.dot_dimension_numbers<[1], [0], [0], [1], [0, 0, 1, 1], [], []>} : vector<2x8xf32>, vector<8x32xf32>, vector<2x32xf32> -> vector<2x32xf32>
    %85 = arith.addf %83, %84 : vector<2x32xf32>
    %86 = math.tanh %85 : vector<2x32xf32>
    %87 = vector.extract_strided_slice %86 {offsets = [0, 0], sizes = [2, 24], strides = [1, 1]} : vector<2x32xf32> to vector<2x24xf32>
    %cst_44 = arith.constant 5.000000e-01 : f32
    %88 = vector.broadcast %cst_44 : f32 to vector<2x24xf32>
    %89 = arith.mulf %88, %87 : vector<2x24xf32>
    %cst_45 = arith.constant 5.000000e-01 : f32
    %90 = vector.broadcast %cst_45 : f32 to vector<2x24xf32>
    %91 = arith.addf %89, %90 : vector<2x24xf32>
    %92 = vector.extract_strided_slice %91 {offsets = [0, 0], sizes = [2, 8], strides = [1, 1]} : vector<2x24xf32> to vector<2x8xf32>
    %93 = vector.extract_strided_slice %91 {offsets = [0, 8], sizes = [2, 8], strides = [1, 1]} : vector<2x24xf32> to vector<2x8xf32>
    %94 = vector.extract_strided_slice %91 {offsets = [0, 16], sizes = [2, 8], strides = [1, 1]} : vector<2x24xf32> to vector<2x8xf32>
    %95 = vector.extract_strided_slice %86 {offsets = [0, 24], sizes = [2, 8], strides = [1, 1]} : vector<2x32xf32> to vector<2x8xf32>
    %96 = arith.mulf %93, %79 : vector<2x8xf32>
    %97 = arith.mulf %92, %95 : vector<2x8xf32>
    %98 = arith.addf %96, %97 : vector<2x8xf32>
    %99 = math.tanh %98 : vector<2x8xf32>
    %100 = arith.mulf %94, %99 : vector<2x8xf32>
    %c3_46 = arith.constant 3 : index
    %c0_47 = arith.constant 0 : index
    %c0_48 = arith.constant 0 : index
    %101 = vector.load %arg10[%c3_46, %c0_47, %c0_48] : memref<8x2x32xf32, #tpu.memory_space<vmem>>, vector<1x2x32xf32>
    %102 = vector.shape_cast %101 : vector<1x2x32xf32> to vector<2x32xf32>
    %cst_49 = arith.constant dense<0.000000e+00> : vector<2x32xf32>
    %103 = tpu.matmul %100, %41, %cst_49 {dimension_numbers = #tpu.dot_dimension_numbers<[1], [0], [0], [1], [0, 0, 1, 1], [], []>} : vector<2x8xf32>, vector<8x32xf32>, vector<2x32xf32> -> vector<2x32xf32>
    %104 = arith.addf %102, %103 : vector<2x32xf32>
    %105 = math.tanh %104 : vector<2x32xf32>
    %106 = vector.extract_strided_slice %105 {offsets = [0, 0], sizes = [2, 24], strides = [1, 1]} : vector<2x32xf32> to vector<2x24xf32>
    %cst_50 = arith.constant 5.000000e-01 : f32
    %107 = vector.broadcast %cst_50 : f32 to vector<2x24xf32>
    %108 = arith.mulf %107, %106 : vector<2x24xf32>
    %cst_51 = arith.constant 5.000000e-01 : f32
    %109 = vector.broadcast %cst_51 : f32 to vector<2x24xf32>
    %110 = arith.addf %108, %109 : vector<2x24xf32>
    %111 = vector.extract_strided_slice %110 {offsets = [0, 0], sizes = [2, 8], strides = [1, 1]} : vector<2x24xf32> to vector<2x8xf32>
    %112 = vector.extract_strided_slice %110 {offsets = [0, 8], sizes = [2, 8], strides = [1, 1]} : vector<2x24xf32> to vector<2x8xf32>
    %113 = vector.extract_strided_slice %110 {offsets = [0, 16], sizes = [2, 8], strides = [1, 1]} : vector<2x24xf32> to vector<2x8xf32>
    %114 = vector.extract_strided_slice %105 {offsets = [0, 24], sizes = [2, 8], strides = [1, 1]} : vector<2x32xf32> to vector<2x8xf32>
    %115 = arith.mulf %112, %98 : vector<2x8xf32>
    %116 = arith.mulf %111, %114 : vector<2x8xf32>
    %117 = arith.addf %115, %116 : vector<2x8xf32>
    %118 = math.tanh %117 : vector<2x8xf32>
    %119 = arith.mulf %113, %118 : vector<2x8xf32>
    %c4_52 = arith.constant 4 : index
    %c0_53 = arith.constant 0 : index
    %c0_54 = arith.constant 0 : index
    %120 = vector.load %arg10[%c4_52, %c0_53, %c0_54] : memref<8x2x32xf32, #tpu.memory_space<vmem>>, vector<1x2x32xf32>
    %121 = vector.shape_cast %120 : vector<1x2x32xf32> to vector<2x32xf32>
    %cst_55 = arith.constant dense<0.000000e+00> : vector<2x32xf32>
    %122 = tpu.matmul %119, %41, %cst_55 {dimension_numbers = #tpu.dot_dimension_numbers<[1], [0], [0], [1], [0, 0, 1, 1], [], []>} : vector<2x8xf32>, vector<8x32xf32>, vector<2x32xf32> -> vector<2x32xf32>
    %123 = arith.addf %121, %122 : vector<2x32xf32>
    %124 = math.tanh %123 : vector<2x32xf32>
    %125 = vector.extract_strided_slice %124 {offsets = [0, 0], sizes = [2, 24], strides = [1, 1]} : vector<2x32xf32> to vector<2x24xf32>
    %cst_56 = arith.constant 5.000000e-01 : f32
    %126 = vector.broadcast %cst_56 : f32 to vector<2x24xf32>
    %127 = arith.mulf %126, %125 : vector<2x24xf32>
    %cst_57 = arith.constant 5.000000e-01 : f32
    %128 = vector.broadcast %cst_57 : f32 to vector<2x24xf32>
    %129 = arith.addf %127, %128 : vector<2x24xf32>
    %130 = vector.extract_strided_slice %129 {offsets = [0, 0], sizes = [2, 8], strides = [1, 1]} : vector<2x24xf32> to vector<2x8xf32>
    %131 = vector.extract_strided_slice %129 {offsets = [0, 8], sizes = [2, 8], strides = [1, 1]} : vector<2x24xf32> to vector<2x8xf32>
    %132 = vector.extract_strided_slice %129 {offsets = [0, 16], sizes = [2, 8], strides = [1, 1]} : vector<2x24xf32> to vector<2x8xf32>
    %133 = vector.extract_strided_slice %124 {offsets = [0, 24], sizes = [2, 8], strides = [1, 1]} : vector<2x32xf32> to vector<2x8xf32>
    %134 = arith.mulf %131, %117 : vector<2x8xf32>
    %135 = arith.mulf %130, %133 : vector<2x8xf32>
    %136 = arith.addf %134, %135 : vector<2x8xf32>
    %137 = math.tanh %136 : vector<2x8xf32>
    %138 = arith.mulf %132, %137 : vector<2x8xf32>
    %c5_58 = arith.constant 5 : index
    %c0_59 = arith.constant 0 : index
    %c0_60 = arith.constant 0 : index
    %139 = vector.load %arg10[%c5_58, %c0_59, %c0_60] : memref<8x2x32xf32, #tpu.memory_space<vmem>>, vector<1x2x32xf32>
    %140 = vector.shape_cast %139 : vector<1x2x32xf32> to vector<2x32xf32>
    %cst_61 = arith.constant dense<0.000000e+00> : vector<2x32xf32>
    %141 = tpu.matmul %138, %41, %cst_61 {dimension_numbers = #tpu.dot_dimension_numbers<[1], [0], [0], [1], [0, 0, 1, 1], [], []>} : vector<2x8xf32>, vector<8x32xf32>, vector<2x32xf32> -> vector<2x32xf32>
    %142 = arith.addf %140, %141 : vector<2x32xf32>
    %143 = math.tanh %142 : vector<2x32xf32>
    %144 = vector.extract_strided_slice %143 {offsets = [0, 0], sizes = [2, 24], strides = [1, 1]} : vector<2x32xf32> to vector<2x24xf32>
    %cst_62 = arith.constant 5.000000e-01 : f32
    %145 = vector.broadcast %cst_62 : f32 to vector<2x24xf32>
    %146 = arith.mulf %145, %144 : vector<2x24xf32>
    %cst_63 = arith.constant 5.000000e-01 : f32
    %147 = vector.broadcast %cst_63 : f32 to vector<2x24xf32>
    %148 = arith.addf %146, %147 : vector<2x24xf32>
    %149 = vector.extract_strided_slice %148 {offsets = [0, 0], sizes = [2, 8], strides = [1, 1]} : vector<2x24xf32> to vector<2x8xf32>
    %150 = vector.extract_strided_slice %148 {offsets = [0, 8], sizes = [2, 8], strides = [1, 1]} : vector<2x24xf32> to vector<2x8xf32>
    %151 = vector.extract_strided_slice %148 {offsets = [0, 16], sizes = [2, 8], strides = [1, 1]} : vector<2x24xf32> to vector<2x8xf32>
    %152 = vector.extract_strided_slice %143 {offsets = [0, 24], sizes = [2, 8], strides = [1, 1]} : vector<2x32xf32> to vector<2x8xf32>
    %153 = arith.mulf %150, %136 : vector<2x8xf32>
    %154 = arith.mulf %149, %152 : vector<2x8xf32>
    %155 = arith.addf %153, %154 : vector<2x8xf32>
    %156 = math.tanh %155 : vector<2x8xf32>
    %157 = arith.mulf %151, %156 : vector<2x8xf32>
    %c6_64 = arith.constant 6 : index
    %c0_65 = arith.constant 0 : index
    %c0_66 = arith.constant 0 : index
    %158 = vector.load %arg10[%c6_64, %c0_65, %c0_66] : memref<8x2x32xf32, #tpu.memory_space<vmem>>, vector<1x2x32xf32>
    %159 = vector.shape_cast %158 : vector<1x2x32xf32> to vector<2x32xf32>
    %cst_67 = arith.constant dense<0.000000e+00> : vector<2x32xf32>
    %160 = tpu.matmul %157, %41, %cst_67 {dimension_numbers = #tpu.dot_dimension_numbers<[1], [0], [0], [1], [0, 0, 1, 1], [], []>} : vector<2x8xf32>, vector<8x32xf32>, vector<2x32xf32> -> vector<2x32xf32>
    %161 = arith.addf %159, %160 : vector<2x32xf32>
    %162 = math.tanh %161 : vector<2x32xf32>
    %163 = vector.extract_strided_slice %162 {offsets = [0, 0], sizes = [2, 24], strides = [1, 1]} : vector<2x32xf32> to vector<2x24xf32>
    %cst_68 = arith.constant 5.000000e-01 : f32
    %164 = vector.broadcast %cst_68 : f32 to vector<2x24xf32>
    %165 = arith.mulf %164, %163 : vector<2x24xf32>
    %cst_69 = arith.constant 5.000000e-01 : f32
    %166 = vector.broadcast %cst_69 : f32 to vector<2x24xf32>
    %167 = arith.addf %165, %166 : vector<2x24xf32>
    %168 = vector.extract_strided_slice %167 {offsets = [0, 0], sizes = [2, 8], strides = [1, 1]} : vector<2x24xf32> to vector<2x8xf32>
    %169 = vector.extract_strided_slice %167 {offsets = [0, 8], sizes = [2, 8], strides = [1, 1]} : vector<2x24xf32> to vector<2x8xf32>
    %170 = vector.extract_strided_slice %167 {offsets = [0, 16], sizes = [2, 8], strides = [1, 1]} : vector<2x24xf32> to vector<2x8xf32>
    %171 = vector.extract_strided_slice %162 {offsets = [0, 24], sizes = [2, 8], strides = [1, 1]} : vector<2x32xf32> to vector<2x8xf32>
    %172 = arith.mulf %169, %155 : vector<2x8xf32>
    %173 = arith.mulf %168, %171 : vector<2x8xf32>
    %174 = arith.addf %172, %173 : vector<2x8xf32>
    %175 = math.tanh %174 : vector<2x8xf32>
    %176 = arith.mulf %170, %175 : vector<2x8xf32>
    %c7_70 = arith.constant 7 : index
    %c0_71 = arith.constant 0 : index
    %c0_72 = arith.constant 0 : index
    %177 = vector.load %arg10[%c7_70, %c0_71, %c0_72] : memref<8x2x32xf32, #tpu.memory_space<vmem>>, vector<1x2x32xf32>
    %178 = vector.shape_cast %177 : vector<1x2x32xf32> to vector<2x32xf32>
    %cst_73 = arith.constant dense<0.000000e+00> : vector<2x32xf32>
    %179 = tpu.matmul %176, %41, %cst_73 {dimension_numbers = #tpu.dot_dimension_numbers<[1], [0], [0], [1], [0, 0, 1, 1], [], []>} : vector<2x8xf32>, vector<8x32xf32>, vector<2x32xf32> -> vector<2x32xf32>
    %180 = arith.addf %178, %179 : vector<2x32xf32>
    %181 = math.tanh %180 : vector<2x32xf32>
    %182 = vector.extract_strided_slice %181 {offsets = [0, 0], sizes = [2, 24], strides = [1, 1]} : vector<2x32xf32> to vector<2x24xf32>
    %cst_74 = arith.constant 5.000000e-01 : f32
    %183 = vector.broadcast %cst_74 : f32 to vector<2x24xf32>
    %184 = arith.mulf %183, %182 : vector<2x24xf32>
    %cst_75 = arith.constant 5.000000e-01 : f32
    %185 = vector.broadcast %cst_75 : f32 to vector<2x24xf32>
    %186 = arith.addf %184, %185 : vector<2x24xf32>
    %187 = vector.extract_strided_slice %186 {offsets = [0, 0], sizes = [2, 8], strides = [1, 1]} : vector<2x24xf32> to vector<2x8xf32>
    %188 = vector.extract_strided_slice %186 {offsets = [0, 8], sizes = [2, 8], strides = [1, 1]} : vector<2x24xf32> to vector<2x8xf32>
    %189 = vector.extract_strided_slice %186 {offsets = [0, 16], sizes = [2, 8], strides = [1, 1]} : vector<2x24xf32> to vector<2x8xf32>
    %190 = vector.extract_strided_slice %181 {offsets = [0, 24], sizes = [2, 8], strides = [1, 1]} : vector<2x32xf32> to vector<2x8xf32>
    %191 = arith.mulf %188, %174 : vector<2x8xf32>
    %192 = arith.mulf %187, %190 : vector<2x8xf32>
    %193 = arith.addf %191, %192 : vector<2x8xf32>
    %194 = math.tanh %193 : vector<2x8xf32>
    %195 = arith.mulf %189, %194 : vector<2x8xf32>
    %c0_76 = arith.constant 0 : index
    %c0_77 = arith.constant 0 : index
    %196 = vector.load %arg5[%c0_76, %c0_77] : memref<8x32xf32, #tpu.memory_space<vmem>>, vector<8x32xf32>
    %c0_78 = arith.constant 0 : index
    %c0_79 = arith.constant 0 : index
    %197 = vector.load %arg4[%c0_78, %c0_79] : memref<8x32xf32, #tpu.memory_space<vmem>>, vector<8x32xf32>
    %c0_80 = arith.constant 0 : index
    %c0_81 = arith.constant 0 : index
    %198 = vector.load %arg6[%c0_80, %c0_81] : memref<1x32xf32, #tpu.memory_space<vmem>>, vector<1x32xf32>
    %199 = vector.shape_cast %198 : vector<1x32xf32> to vector<1x32xf32>
    %200 = vector.broadcast %199 : vector<1x32xf32> to vector<2x32xf32>
    %cst_82 = arith.constant 0.000000e+00 : f32
    %201 = vector.broadcast %cst_82 : f32 to vector<2x8xf32>
    %cst_83 = arith.constant 0.000000e+00 : f32
    %202 = vector.broadcast %cst_83 : f32 to vector<2x8xf32>
    %cst_84 = arith.constant dense<0.000000e+00> : vector<2x32xf32>
    %203 = tpu.matmul %62, %197, %cst_84 {dimension_numbers = #tpu.dot_dimension_numbers<[1], [0], [0], [1], [0, 0, 1, 1], [], []>} : vector<2x8xf32>, vector<8x32xf32>, vector<2x32xf32> -> vector<2x32xf32>
    %204 = arith.addf %203, %200 : vector<2x32xf32>
    %cst_85 = arith.constant dense<0.000000e+00> : vector<2x32xf32>
    %205 = tpu.matmul %201, %196, %cst_85 {dimension_numbers = #tpu.dot_dimension_numbers<[1], [0], [0], [1], [0, 0, 1, 1], [], []>} : vector<2x8xf32>, vector<8x32xf32>, vector<2x32xf32> -> vector<2x32xf32>
    %206 = arith.addf %204, %205 : vector<2x32xf32>
    %207 = math.tanh %206 : vector<2x32xf32>
    %208 = vector.extract_strided_slice %207 {offsets = [0, 0], sizes = [2, 24], strides = [1, 1]} : vector<2x32xf32> to vector<2x24xf32>
    %cst_86 = arith.constant 5.000000e-01 : f32
    %209 = vector.broadcast %cst_86 : f32 to vector<2x24xf32>
    %210 = arith.mulf %209, %208 : vector<2x24xf32>
    %cst_87 = arith.constant 5.000000e-01 : f32
    %211 = vector.broadcast %cst_87 : f32 to vector<2x24xf32>
    %212 = arith.addf %210, %211 : vector<2x24xf32>
    %213 = vector.extract_strided_slice %212 {offsets = [0, 0], sizes = [2, 8], strides = [1, 1]} : vector<2x24xf32> to vector<2x8xf32>
    %214 = vector.extract_strided_slice %212 {offsets = [0, 8], sizes = [2, 8], strides = [1, 1]} : vector<2x24xf32> to vector<2x8xf32>
    %215 = vector.extract_strided_slice %212 {offsets = [0, 16], sizes = [2, 8], strides = [1, 1]} : vector<2x24xf32> to vector<2x8xf32>
    %216 = vector.extract_strided_slice %207 {offsets = [0, 24], sizes = [2, 8], strides = [1, 1]} : vector<2x32xf32> to vector<2x8xf32>
    %217 = arith.mulf %214, %202 : vector<2x8xf32>
    %218 = arith.mulf %213, %216 : vector<2x8xf32>
    %219 = arith.addf %217, %218 : vector<2x8xf32>
    %220 = math.tanh %219 : vector<2x8xf32>
    %221 = arith.mulf %215, %220 : vector<2x8xf32>
    %c0_88 = arith.constant 0 : index
    %c0_89 = arith.constant 0 : index
    %222 = vector.load %arg7[%c0_88, %c0_89] : memref<64x8xf32, #tpu.memory_space<vmem>>, vector<8x8xf32>
    %cst_90 = arith.constant dense<0.000000e+00> : vector<2x8xf32>
    %223 = tpu.matmul %221, %222, %cst_90 {dimension_numbers = #tpu.dot_dimension_numbers<[1], [0], [0], [1], [0, 0, 1, 1], [], []>} : vector<2x8xf32>, vector<8x8xf32>, vector<2x8xf32> -> vector<2x8xf32>
    %224 = arith.addf %40, %223 : vector<2x8xf32>
    %cst_91 = arith.constant dense<0.000000e+00> : vector<2x32xf32>
    %225 = tpu.matmul %81, %197, %cst_91 {dimension_numbers = #tpu.dot_dimension_numbers<[1], [0], [0], [1], [0, 0, 1, 1], [], []>} : vector<2x8xf32>, vector<8x32xf32>, vector<2x32xf32> -> vector<2x32xf32>
    %226 = arith.addf %225, %200 : vector<2x32xf32>
    %cst_92 = arith.constant dense<0.000000e+00> : vector<2x32xf32>
    %227 = tpu.matmul %221, %196, %cst_92 {dimension_numbers = #tpu.dot_dimension_numbers<[1], [0], [0], [1], [0, 0, 1, 1], [], []>} : vector<2x8xf32>, vector<8x32xf32>, vector<2x32xf32> -> vector<2x32xf32>
    %228 = arith.addf %226, %227 : vector<2x32xf32>
    %229 = math.tanh %228 : vector<2x32xf32>
    %230 = vector.extract_strided_slice %229 {offsets = [0, 0], sizes = [2, 24], strides = [1, 1]} : vector<2x32xf32> to vector<2x24xf32>
    %cst_93 = arith.constant 5.000000e-01 : f32
    %231 = vector.broadcast %cst_93 : f32 to vector<2x24xf32>
    %232 = arith.mulf %231, %230 : vector<2x24xf32>
    %cst_94 = arith.constant 5.000000e-01 : f32
    %233 = vector.broadcast %cst_94 : f32 to vector<2x24xf32>
    %234 = arith.addf %232, %233 : vector<2x24xf32>
    %235 = vector.extract_strided_slice %234 {offsets = [0, 0], sizes = [2, 8], strides = [1, 1]} : vector<2x24xf32> to vector<2x8xf32>
    %236 = vector.extract_strided_slice %234 {offsets = [0, 8], sizes = [2, 8], strides = [1, 1]} : vector<2x24xf32> to vector<2x8xf32>
    %237 = vector.extract_strided_slice %234 {offsets = [0, 16], sizes = [2, 8], strides = [1, 1]} : vector<2x24xf32> to vector<2x8xf32>
    %238 = vector.extract_strided_slice %229 {offsets = [0, 24], sizes = [2, 8], strides = [1, 1]} : vector<2x32xf32> to vector<2x8xf32>
    %239 = arith.mulf %236, %219 : vector<2x8xf32>
    %240 = arith.mulf %235, %238 : vector<2x8xf32>
    %241 = arith.addf %239, %240 : vector<2x8xf32>
    %242 = math.tanh %241 : vector<2x8xf32>
    %243 = arith.mulf %237, %242 : vector<2x8xf32>
    %c8 = arith.constant 8 : index
    %c0_95 = arith.constant 0 : index
    %244 = vector.load %arg7[%c8, %c0_95] : memref<64x8xf32, #tpu.memory_space<vmem>>, vector<8x8xf32>
    %cst_96 = arith.constant dense<0.000000e+00> : vector<2x8xf32>
    %245 = tpu.matmul %243, %244, %cst_96 {dimension_numbers = #tpu.dot_dimension_numbers<[1], [0], [0], [1], [0, 0, 1, 1], [], []>} : vector<2x8xf32>, vector<8x8xf32>, vector<2x8xf32> -> vector<2x8xf32>
    %246 = arith.addf %224, %245 : vector<2x8xf32>
    %cst_97 = arith.constant dense<0.000000e+00> : vector<2x32xf32>
    %247 = tpu.matmul %100, %197, %cst_97 {dimension_numbers = #tpu.dot_dimension_numbers<[1], [0], [0], [1], [0, 0, 1, 1], [], []>} : vector<2x8xf32>, vector<8x32xf32>, vector<2x32xf32> -> vector<2x32xf32>
    %248 = arith.addf %247, %200 : vector<2x32xf32>
    %cst_98 = arith.constant dense<0.000000e+00> : vector<2x32xf32>
    %249 = tpu.matmul %243, %196, %cst_98 {dimension_numbers = #tpu.dot_dimension_numbers<[1], [0], [0], [1], [0, 0, 1, 1], [], []>} : vector<2x8xf32>, vector<8x32xf32>, vector<2x32xf32> -> vector<2x32xf32>
    %250 = arith.addf %248, %249 : vector<2x32xf32>
    %251 = math.tanh %250 : vector<2x32xf32>
    %252 = vector.extract_strided_slice %251 {offsets = [0, 0], sizes = [2, 24], strides = [1, 1]} : vector<2x32xf32> to vector<2x24xf32>
    %cst_99 = arith.constant 5.000000e-01 : f32
    %253 = vector.broadcast %cst_99 : f32 to vector<2x24xf32>
    %254 = arith.mulf %253, %252 : vector<2x24xf32>
    %cst_100 = arith.constant 5.000000e-01 : f32
    %255 = vector.broadcast %cst_100 : f32 to vector<2x24xf32>
    %256 = arith.addf %254, %255 : vector<2x24xf32>
    %257 = vector.extract_strided_slice %256 {offsets = [0, 0], sizes = [2, 8], strides = [1, 1]} : vector<2x24xf32> to vector<2x8xf32>
    %258 = vector.extract_strided_slice %256 {offsets = [0, 8], sizes = [2, 8], strides = [1, 1]} : vector<2x24xf32> to vector<2x8xf32>
    %259 = vector.extract_strided_slice %256 {offsets = [0, 16], sizes = [2, 8], strides = [1, 1]} : vector<2x24xf32> to vector<2x8xf32>
    %260 = vector.extract_strided_slice %251 {offsets = [0, 24], sizes = [2, 8], strides = [1, 1]} : vector<2x32xf32> to vector<2x8xf32>
    %261 = arith.mulf %258, %241 : vector<2x8xf32>
    %262 = arith.mulf %257, %260 : vector<2x8xf32>
    %263 = arith.addf %261, %262 : vector<2x8xf32>
    %264 = math.tanh %263 : vector<2x8xf32>
    %265 = arith.mulf %259, %264 : vector<2x8xf32>
    %c16 = arith.constant 16 : index
    %c0_101 = arith.constant 0 : index
    %266 = vector.load %arg7[%c16, %c0_101] : memref<64x8xf32, #tpu.memory_space<vmem>>, vector<8x8xf32>
    %cst_102 = arith.constant dense<0.000000e+00> : vector<2x8xf32>
    %267 = tpu.matmul %265, %266, %cst_102 {dimension_numbers = #tpu.dot_dimension_numbers<[1], [0], [0], [1], [0, 0, 1, 1], [], []>} : vector<2x8xf32>, vector<8x8xf32>, vector<2x8xf32> -> vector<2x8xf32>
    %268 = arith.addf %246, %267 : vector<2x8xf32>
    %cst_103 = arith.constant dense<0.000000e+00> : vector<2x32xf32>
    %269 = tpu.matmul %119, %197, %cst_103 {dimension_numbers = #tpu.dot_dimension_numbers<[1], [0], [0], [1], [0, 0, 1, 1], [], []>} : vector<2x8xf32>, vector<8x32xf32>, vector<2x32xf32> -> vector<2x32xf32>
    %270 = arith.addf %269, %200 : vector<2x32xf32>
    %cst_104 = arith.constant dense<0.000000e+00> : vector<2x32xf32>
    %271 = tpu.matmul %265, %196, %cst_104 {dimension_numbers = #tpu.dot_dimension_numbers<[1], [0], [0], [1], [0, 0, 1, 1], [], []>} : vector<2x8xf32>, vector<8x32xf32>, vector<2x32xf32> -> vector<2x32xf32>
    %272 = arith.addf %270, %271 : vector<2x32xf32>
    %273 = math.tanh %272 : vector<2x32xf32>
    %274 = vector.extract_strided_slice %273 {offsets = [0, 0], sizes = [2, 24], strides = [1, 1]} : vector<2x32xf32> to vector<2x24xf32>
    %cst_105 = arith.constant 5.000000e-01 : f32
    %275 = vector.broadcast %cst_105 : f32 to vector<2x24xf32>
    %276 = arith.mulf %275, %274 : vector<2x24xf32>
    %cst_106 = arith.constant 5.000000e-01 : f32
    %277 = vector.broadcast %cst_106 : f32 to vector<2x24xf32>
    %278 = arith.addf %276, %277 : vector<2x24xf32>
    %279 = vector.extract_strided_slice %278 {offsets = [0, 0], sizes = [2, 8], strides = [1, 1]} : vector<2x24xf32> to vector<2x8xf32>
    %280 = vector.extract_strided_slice %278 {offsets = [0, 8], sizes = [2, 8], strides = [1, 1]} : vector<2x24xf32> to vector<2x8xf32>
    %281 = vector.extract_strided_slice %278 {offsets = [0, 16], sizes = [2, 8], strides = [1, 1]} : vector<2x24xf32> to vector<2x8xf32>
    %282 = vector.extract_strided_slice %273 {offsets = [0, 24], sizes = [2, 8], strides = [1, 1]} : vector<2x32xf32> to vector<2x8xf32>
    %283 = arith.mulf %280, %263 : vector<2x8xf32>
    %284 = arith.mulf %279, %282 : vector<2x8xf32>
    %285 = arith.addf %283, %284 : vector<2x8xf32>
    %286 = math.tanh %285 : vector<2x8xf32>
    %287 = arith.mulf %281, %286 : vector<2x8xf32>
    %c24 = arith.constant 24 : index
    %c0_107 = arith.constant 0 : index
    %288 = vector.load %arg7[%c24, %c0_107] : memref<64x8xf32, #tpu.memory_space<vmem>>, vector<8x8xf32>
    %cst_108 = arith.constant dense<0.000000e+00> : vector<2x8xf32>
    %289 = tpu.matmul %287, %288, %cst_108 {dimension_numbers = #tpu.dot_dimension_numbers<[1], [0], [0], [1], [0, 0, 1, 1], [], []>} : vector<2x8xf32>, vector<8x8xf32>, vector<2x8xf32> -> vector<2x8xf32>
    %290 = arith.addf %268, %289 : vector<2x8xf32>
    %cst_109 = arith.constant dense<0.000000e+00> : vector<2x32xf32>
    %291 = tpu.matmul %138, %197, %cst_109 {dimension_numbers = #tpu.dot_dimension_numbers<[1], [0], [0], [1], [0, 0, 1, 1], [], []>} : vector<2x8xf32>, vector<8x32xf32>, vector<2x32xf32> -> vector<2x32xf32>
    %292 = arith.addf %291, %200 : vector<2x32xf32>
    %cst_110 = arith.constant dense<0.000000e+00> : vector<2x32xf32>
    %293 = tpu.matmul %287, %196, %cst_110 {dimension_numbers = #tpu.dot_dimension_numbers<[1], [0], [0], [1], [0, 0, 1, 1], [], []>} : vector<2x8xf32>, vector<8x32xf32>, vector<2x32xf32> -> vector<2x32xf32>
    %294 = arith.addf %292, %293 : vector<2x32xf32>
    %295 = math.tanh %294 : vector<2x32xf32>
    %296 = vector.extract_strided_slice %295 {offsets = [0, 0], sizes = [2, 24], strides = [1, 1]} : vector<2x32xf32> to vector<2x24xf32>
    %cst_111 = arith.constant 5.000000e-01 : f32
    %297 = vector.broadcast %cst_111 : f32 to vector<2x24xf32>
    %298 = arith.mulf %297, %296 : vector<2x24xf32>
    %cst_112 = arith.constant 5.000000e-01 : f32
    %299 = vector.broadcast %cst_112 : f32 to vector<2x24xf32>
    %300 = arith.addf %298, %299 : vector<2x24xf32>
    %301 = vector.extract_strided_slice %300 {offsets = [0, 0], sizes = [2, 8], strides = [1, 1]} : vector<2x24xf32> to vector<2x8xf32>
    %302 = vector.extract_strided_slice %300 {offsets = [0, 8], sizes = [2, 8], strides = [1, 1]} : vector<2x24xf32> to vector<2x8xf32>
    %303 = vector.extract_strided_slice %300 {offsets = [0, 16], sizes = [2, 8], strides = [1, 1]} : vector<2x24xf32> to vector<2x8xf32>
    %304 = vector.extract_strided_slice %295 {offsets = [0, 24], sizes = [2, 8], strides = [1, 1]} : vector<2x32xf32> to vector<2x8xf32>
    %305 = arith.mulf %302, %285 : vector<2x8xf32>
    %306 = arith.mulf %301, %304 : vector<2x8xf32>
    %307 = arith.addf %305, %306 : vector<2x8xf32>
    %308 = math.tanh %307 : vector<2x8xf32>
    %309 = arith.mulf %303, %308 : vector<2x8xf32>
    %c32 = arith.constant 32 : index
    %c0_113 = arith.constant 0 : index
    %310 = vector.load %arg7[%c32, %c0_113] : memref<64x8xf32, #tpu.memory_space<vmem>>, vector<8x8xf32>
    %cst_114 = arith.constant dense<0.000000e+00> : vector<2x8xf32>
    %311 = tpu.matmul %309, %310, %cst_114 {dimension_numbers = #tpu.dot_dimension_numbers<[1], [0], [0], [1], [0, 0, 1, 1], [], []>} : vector<2x8xf32>, vector<8x8xf32>, vector<2x8xf32> -> vector<2x8xf32>
    %312 = arith.addf %290, %311 : vector<2x8xf32>
    %cst_115 = arith.constant dense<0.000000e+00> : vector<2x32xf32>
    %313 = tpu.matmul %157, %197, %cst_115 {dimension_numbers = #tpu.dot_dimension_numbers<[1], [0], [0], [1], [0, 0, 1, 1], [], []>} : vector<2x8xf32>, vector<8x32xf32>, vector<2x32xf32> -> vector<2x32xf32>
    %314 = arith.addf %313, %200 : vector<2x32xf32>
    %cst_116 = arith.constant dense<0.000000e+00> : vector<2x32xf32>
    %315 = tpu.matmul %309, %196, %cst_116 {dimension_numbers = #tpu.dot_dimension_numbers<[1], [0], [0], [1], [0, 0, 1, 1], [], []>} : vector<2x8xf32>, vector<8x32xf32>, vector<2x32xf32> -> vector<2x32xf32>
    %316 = arith.addf %314, %315 : vector<2x32xf32>
    %317 = math.tanh %316 : vector<2x32xf32>
    %318 = vector.extract_strided_slice %317 {offsets = [0, 0], sizes = [2, 24], strides = [1, 1]} : vector<2x32xf32> to vector<2x24xf32>
    %cst_117 = arith.constant 5.000000e-01 : f32
    %319 = vector.broadcast %cst_117 : f32 to vector<2x24xf32>
    %320 = arith.mulf %319, %318 : vector<2x24xf32>
    %cst_118 = arith.constant 5.000000e-01 : f32
    %321 = vector.broadcast %cst_118 : f32 to vector<2x24xf32>
    %322 = arith.addf %320, %321 : vector<2x24xf32>
    %323 = vector.extract_strided_slice %322 {offsets = [0, 0], sizes = [2, 8], strides = [1, 1]} : vector<2x24xf32> to vector<2x8xf32>
    %324 = vector.extract_strided_slice %322 {offsets = [0, 8], sizes = [2, 8], strides = [1, 1]} : vector<2x24xf32> to vector<2x8xf32>
    %325 = vector.extract_strided_slice %322 {offsets = [0, 16], sizes = [2, 8], strides = [1, 1]} : vector<2x24xf32> to vector<2x8xf32>
    %326 = vector.extract_strided_slice %317 {offsets = [0, 24], sizes = [2, 8], strides = [1, 1]} : vector<2x32xf32> to vector<2x8xf32>
    %327 = arith.mulf %324, %307 : vector<2x8xf32>
    %328 = arith.mulf %323, %326 : vector<2x8xf32>
    %329 = arith.addf %327, %328 : vector<2x8xf32>
    %330 = math.tanh %329 : vector<2x8xf32>
    %331 = arith.mulf %325, %330 : vector<2x8xf32>
    %c40 = arith.constant 40 : index
    %c0_119 = arith.constant 0 : index
    %332 = vector.load %arg7[%c40, %c0_119] : memref<64x8xf32, #tpu.memory_space<vmem>>, vector<8x8xf32>
    %cst_120 = arith.constant dense<0.000000e+00> : vector<2x8xf32>
    %333 = tpu.matmul %331, %332, %cst_120 {dimension_numbers = #tpu.dot_dimension_numbers<[1], [0], [0], [1], [0, 0, 1, 1], [], []>} : vector<2x8xf32>, vector<8x8xf32>, vector<2x8xf32> -> vector<2x8xf32>
    %334 = arith.addf %312, %333 : vector<2x8xf32>
    %cst_121 = arith.constant dense<0.000000e+00> : vector<2x32xf32>
    %335 = tpu.matmul %176, %197, %cst_121 {dimension_numbers = #tpu.dot_dimension_numbers<[1], [0], [0], [1], [0, 0, 1, 1], [], []>} : vector<2x8xf32>, vector<8x32xf32>, vector<2x32xf32> -> vector<2x32xf32>
    %336 = arith.addf %335, %200 : vector<2x32xf32>
    %cst_122 = arith.constant dense<0.000000e+00> : vector<2x32xf32>
    %337 = tpu.matmul %331, %196, %cst_122 {dimension_numbers = #tpu.dot_dimension_numbers<[1], [0], [0], [1], [0, 0, 1, 1], [], []>} : vector<2x8xf32>, vector<8x32xf32>, vector<2x32xf32> -> vector<2x32xf32>
    %338 = arith.addf %336, %337 : vector<2x32xf32>
    %339 = math.tanh %338 : vector<2x32xf32>
    %340 = vector.extract_strided_slice %339 {offsets = [0, 0], sizes = [2, 24], strides = [1, 1]} : vector<2x32xf32> to vector<2x24xf32>
    %cst_123 = arith.constant 5.000000e-01 : f32
    %341 = vector.broadcast %cst_123 : f32 to vector<2x24xf32>
    %342 = arith.mulf %341, %340 : vector<2x24xf32>
    %cst_124 = arith.constant 5.000000e-01 : f32
    %343 = vector.broadcast %cst_124 : f32 to vector<2x24xf32>
    %344 = arith.addf %342, %343 : vector<2x24xf32>
    %345 = vector.extract_strided_slice %344 {offsets = [0, 0], sizes = [2, 8], strides = [1, 1]} : vector<2x24xf32> to vector<2x8xf32>
    %346 = vector.extract_strided_slice %344 {offsets = [0, 8], sizes = [2, 8], strides = [1, 1]} : vector<2x24xf32> to vector<2x8xf32>
    %347 = vector.extract_strided_slice %344 {offsets = [0, 16], sizes = [2, 8], strides = [1, 1]} : vector<2x24xf32> to vector<2x8xf32>
    %348 = vector.extract_strided_slice %339 {offsets = [0, 24], sizes = [2, 8], strides = [1, 1]} : vector<2x32xf32> to vector<2x8xf32>
    %349 = arith.mulf %346, %329 : vector<2x8xf32>
    %350 = arith.mulf %345, %348 : vector<2x8xf32>
    %351 = arith.addf %349, %350 : vector<2x8xf32>
    %352 = math.tanh %351 : vector<2x8xf32>
    %353 = arith.mulf %347, %352 : vector<2x8xf32>
    %c48 = arith.constant 48 : index
    %c0_125 = arith.constant 0 : index
    %354 = vector.load %arg7[%c48, %c0_125] : memref<64x8xf32, #tpu.memory_space<vmem>>, vector<8x8xf32>
    %cst_126 = arith.constant dense<0.000000e+00> : vector<2x8xf32>
    %355 = tpu.matmul %353, %354, %cst_126 {dimension_numbers = #tpu.dot_dimension_numbers<[1], [0], [0], [1], [0, 0, 1, 1], [], []>} : vector<2x8xf32>, vector<8x8xf32>, vector<2x8xf32> -> vector<2x8xf32>
    %356 = arith.addf %334, %355 : vector<2x8xf32>
    %cst_127 = arith.constant dense<0.000000e+00> : vector<2x32xf32>
    %357 = tpu.matmul %195, %197, %cst_127 {dimension_numbers = #tpu.dot_dimension_numbers<[1], [0], [0], [1], [0, 0, 1, 1], [], []>} : vector<2x8xf32>, vector<8x32xf32>, vector<2x32xf32> -> vector<2x32xf32>
    %358 = arith.addf %357, %200 : vector<2x32xf32>
    %cst_128 = arith.constant dense<0.000000e+00> : vector<2x32xf32>
    %359 = tpu.matmul %353, %196, %cst_128 {dimension_numbers = #tpu.dot_dimension_numbers<[1], [0], [0], [1], [0, 0, 1, 1], [], []>} : vector<2x8xf32>, vector<8x32xf32>, vector<2x32xf32> -> vector<2x32xf32>
    %360 = arith.addf %358, %359 : vector<2x32xf32>
    %361 = math.tanh %360 : vector<2x32xf32>
    %362 = vector.extract_strided_slice %361 {offsets = [0, 0], sizes = [2, 24], strides = [1, 1]} : vector<2x32xf32> to vector<2x24xf32>
    %cst_129 = arith.constant 5.000000e-01 : f32
    %363 = vector.broadcast %cst_129 : f32 to vector<2x24xf32>
    %364 = arith.mulf %363, %362 : vector<2x24xf32>
    %cst_130 = arith.constant 5.000000e-01 : f32
    %365 = vector.broadcast %cst_130 : f32 to vector<2x24xf32>
    %366 = arith.addf %364, %365 : vector<2x24xf32>
    %367 = vector.extract_strided_slice %366 {offsets = [0, 0], sizes = [2, 8], strides = [1, 1]} : vector<2x24xf32> to vector<2x8xf32>
    %368 = vector.extract_strided_slice %366 {offsets = [0, 8], sizes = [2, 8], strides = [1, 1]} : vector<2x24xf32> to vector<2x8xf32>
    %369 = vector.extract_strided_slice %366 {offsets = [0, 16], sizes = [2, 8], strides = [1, 1]} : vector<2x24xf32> to vector<2x8xf32>
    %370 = vector.extract_strided_slice %361 {offsets = [0, 24], sizes = [2, 8], strides = [1, 1]} : vector<2x32xf32> to vector<2x8xf32>
    %371 = arith.mulf %368, %351 : vector<2x8xf32>
    %372 = arith.mulf %367, %370 : vector<2x8xf32>
    %373 = arith.addf %371, %372 : vector<2x8xf32>
    %374 = math.tanh %373 : vector<2x8xf32>
    %375 = arith.mulf %369, %374 : vector<2x8xf32>
    %c56 = arith.constant 56 : index
    %c0_131 = arith.constant 0 : index
    %376 = vector.load %arg7[%c56, %c0_131] : memref<64x8xf32, #tpu.memory_space<vmem>>, vector<8x8xf32>
    %cst_132 = arith.constant dense<0.000000e+00> : vector<2x8xf32>
    %377 = tpu.matmul %375, %376, %cst_132 {dimension_numbers = #tpu.dot_dimension_numbers<[1], [0], [0], [1], [0, 0, 1, 1], [], []>} : vector<2x8xf32>, vector<8x8xf32>, vector<2x8xf32> -> vector<2x8xf32>
    %378 = arith.addf %356, %377 : vector<2x8xf32>
    %c0_133 = arith.constant 0 : index
    %c0_134 = arith.constant 0 : index
    %379 = vector.load %arg9[%c0_133, %c0_134] : memref<2x8xf32, #tpu.memory_space<vmem>>, vector<2x8xf32>
    tpu.vector_store %arg9[%c0_133, %c0_134], %378 {strides = array<i32>} : memref<2x8xf32, #tpu.memory_space<vmem>>, vector<2x8xf32>,
    return
  }
}

</mosaic_0001>

<llo_original>
// kernel: lstmad_forward.1
$region0: #{lstmad_forward.1}
  #allocation0 [shape = 'u32[]', space=smem, size = 0x4, offset = 0x4, fixed_abs, tag = 'smem constant byte address 0x4 - core index']
  #allocation1 [shape = 'u32[144,128]{1,0:T(1,128)}', space=vmem, size = 0x12000, scoped, tag = 'internal scratch']
  #allocation2 [shape = 'f32[8,2,32]{2,1,0:T(2,128)}', space=vmem, size = 0x2000, scoped, tag = 'scratch operand']
  %s0 = inlined_call_operand.vmem [shape: f32[16,4], index: 0, kind: input, shape index: {}]
  %s1 = inlined_call_operand.vmem [shape: f32[4,32], index: 1, kind: input, shape index: {}]
  %s2 = inlined_call_operand.vmem [shape: f32[8,32], index: 2, kind: input, shape index: {}]
  %s3 = inlined_call_operand.vmem [shape: f32[1,32], index: 3, kind: input, shape index: {}]
  %s4 = inlined_call_operand.vmem [shape: f32[8,32], index: 4, kind: input, shape index: {}]
  %s5 = inlined_call_operand.vmem [shape: f32[8,32], index: 5, kind: input, shape index: {}]
  %s6 = inlined_call_operand.vmem [shape: f32[1,32], index: 6, kind: input, shape index: {}]
  %s7 = inlined_call_operand.vmem [shape: f32[64,8], index: 7, kind: input, shape index: {}]
  %s8 = inlined_call_operand.vmem [shape: f32[1,8], index: 8, kind: input, shape index: {}]
  %s9 = inlined_call_operand.hbm [shape: f32[2,8], index: 9, kind: output, shape index: {}]
  %s10 = sld [smem:[#allocation0]]
  $region46: #{lstmad_forward.1} parent=0
    _
  %s12 = ssub.s32 1, %s10
  %s13 = scalar_select 0, %s12, %s10
  $region1: #{lstmad_forward.1} parent=0
    #allocation3 [shape = 'u8[1024]{0}', space=vmem, size = 0x400, scoped, tag = 'output window, operand 0, single buffered']
    #allocation4 [shape = 's32[1]{0}', space=sflag, size = 0x4, scoped, tag = 'scoped memory for lstmad_forward.1']
    %14 = vsyncpa [#allocation4], 0
    // Predicated region
    $region2: #{lstmad_forward.1} parent=1 // pred_check
      _
    $region3: #{lstmad_forward.1} parent=1 // pred_check_branch
      %16 = sbr.rel (0) target = $region5
    $region4: #{lstmad_forward.1} parent=1 // pred_region
      _
    $region5: #{lstmad_forward.1} parent=1 // pred_fallthru
      _
    // Predicated region
    $region6: #{lstmad_forward.1} parent=1 // pred_check
      _
    $region7: #{lstmad_forward.1} parent=1 // pred_check_branch
      %18 = sbr.rel (0) target = $region9
    $region8: #{lstmad_forward.1} parent=1 // pred_region
      _
    $region9: #{lstmad_forward.1} parent=1 // pred_fallthru
      _
    // Predicated region
    $region10: #{lstmad_forward.1} parent=1 // pred_check
      _
    $region11: #{lstmad_forward.1} parent=1 // pred_check_branch
      %20 = sbr.rel (0) target = $region13
    $region12: #{lstmad_forward.1} parent=1 // pred_region
      _
    $region13: #{lstmad_forward.1} parent=1 // pred_fallthru
      _
    // Predicated region
    $region14: #{lstmad_forward.1} parent=1 // pred_check
      _
    $region15: #{lstmad_forward.1} parent=1 // pred_check_branch
      %22 = sbr.rel (0) target = $region17
    $region16: #{lstmad_forward.1} parent=1 // pred_region
      _
    $region17: #{lstmad_forward.1} parent=1 // pred_fallthru
      _
    // Predicated region
    $region18: #{lstmad_forward.1} parent=1 // pred_check
      _
    $region19: #{lstmad_forward.1} parent=1 // pred_check_branch
      %24 = sbr.rel (0) target = $region21
    $region20: #{lstmad_forward.1} parent=1 // pred_region
      _
    $region21: #{lstmad_forward.1} parent=1 // pred_fallthru
      _
    // Predicated region
    $region22: #{lstmad_forward.1} parent=1 // pred_check
      _
    $region23: #{lstmad_forward.1} parent=1 // pred_check_branch
      %26 = sbr.rel (0) target = $region25
    $region24: #{lstmad_forward.1} parent=1 // pred_region
      _
    $region25: #{lstmad_forward.1} parent=1 // pred_fallthru
      _
    // Predicated region
    $region26: #{lstmad_forward.1} parent=1 // pred_check
      _
    $region27: #{lstmad_forward.1} parent=1 // pred_check_branch
      %28 = sbr.rel (0) target = $region29
    $region28: #{lstmad_forward.1} parent=1 // pred_region
      _
    $region29: #{lstmad_forward.1} parent=1 // pred_fallthru
      _
    // Predicated region
    $region30: #{lstmad_forward.1} parent=1 // pred_check
      _
    $region31: #{lstmad_forward.1} parent=1 // pred_check_branch
      %30 = sbr.rel (0) target = $region33
    $region32: #{lstmad_forward.1} parent=1 // pred_region
      _
    $region33: #{lstmad_forward.1} parent=1 // pred_fallthru
      _
    // Predicated region
    $region34: #{lstmad_forward.1} parent=1 // pred_check
      _
    $region35: #{lstmad_forward.1} parent=1 // pred_check_branch
      %32 = sbr.rel (0) target = $region37
    $region36: #{lstmad_forward.1} parent=1 // pred_region
      _
    $region37: #{lstmad_forward.1} parent=1 // pred_fallthru
      _
    %v33 = vld [vmem:[%s1] sm:$0xf]
    %v34 = vld [vmem:[%s3] sm:$0x1]
    %v35 = vld [vmem:[%s0] sm:$0xff]
    %v36 = vld [vmem:[%s0 + $0x8] sm:$0xff]
    %v38 = vlaneseq
    %v39 = vshrl.u32 %v38, 7
    %v40 = vsub.s32 0, %v39
    %v41 = vrot.slane %v34, %v40
    %vm43 = vcmask 31744
    %v45 = vsel %vm43, %v35, 0
    %v48 = vsel %vm43, %v36, 0
    %vm50 = vcmask 1043456
    %v52 = vsel %vm50, %v33, 0
    %54 = vmatprep.subr.mxu0 0.0
    %55 = vmatpush1.msra.mxu0 %v52
    %56 = vmatprep.subr.mxu0 0.0
    %57 = vmatpush1.msra.mxu0 0.0
    %58 = vmatprep.subr.mxu0 0.0
    %59 = vmatpush1.msra.mxu0 0.0
    %60 = vmatprep.subr.mxu0 0.0
    %61 = vmatpush1.msra.mxu0 0.0
    %62 = vmatprep.subr.mxu0 0.0
    %63 = vmatpush1.msra.mxu0 0.0
    %64 = vmatprep.subr.mxu0 0.0
    %65 = vmatpush1.msra.mxu0 0.0
    %66 = vmatprep.subr.mxu0 0.0
    %67 = vmatpush1.msra.mxu0 0.0
    %68 = vmatprep.subr.mxu0 0.0
    %69 = vmatpush1.msra.mxu0 0.0
    %70 = vmatprep.subr.mxu0 0.0
    %71 = vmatpush1.msra.mxu0 0.0
    %72 = vmatprep.subr.mxu0 0.0
    %73 = vmatpush1.msra.mxu0 0.0
    %74 = vmatprep.subr.mxu0 0.0
    %75 = vmatpush1.msra.mxu0 0.0
    %76 = vmatprep.subr.mxu0 0.0
    %77 = vmatpush1.msra.mxu0 0.0
    %78 = vmatprep.subr.mxu0 0.0
    %79 = vmatpush1.msra.mxu0 0.0
    %80 = vmatprep.subr.mxu0 0.0
    %81 = vmatpush1.msra.mxu0 0.0
    %82 = vmatprep.subr.mxu0 0.0
    %83 = vmatpush1.msra.mxu0 0.0
    %84 = vmatprep.subr.mxu0 0.0
    %85 = vmatpush1.msra.mxu0 0.0
    %86 = vmatprep.subr.mxu0 0.0
    %87 = vmatpush1.msra.mxu0 0.0
    %88 = vmatprep.subr.mxu0 0.0
    %89 = vmatpush1.msra.mxu0 0.0
    %90 = vmatprep.subr.mxu0 0.0
    %91 = vmatpush1.msra.mxu0 0.0
    %92 = vmatprep.subr.mxu0 0.0
    %93 = vmatpush1.msra.mxu0 0.0
    %94 = vmatprep.subr.mxu0 0.0
    %95 = vmatpush1.msra.mxu0 0.0
    %96 = vmatprep.subr.mxu0 0.0
    %97 = vmatpush1.msra.mxu0 0.0
    %98 = vmatprep.subr.mxu0 0.0
    %99 = vmatpush1.msra.mxu0 0.0
    %100 = vmatprep.subr.mxu0 0.0
    %101 = vmatpush1.msra.mxu0 0.0
    %102 = vmatprep.subr.mxu0 0.0
    %103 = vmatpush1.msra.mxu0 0.0
    %104 = vmatprep.subr.mxu0 0.0
    %105 = vmatpush1.msra.mxu0 0.0
    %106 = vmatprep.subr.mxu0 0.0
    %107 = vmatpush1.msra.mxu0 0.0
    %108 = vmatprep.subr.mxu0 0.0
    %109 = vmatpush1.msra.mxu0 0.0
    %110 = vmatprep.subr.mxu0 0.0
    %111 = vmatpush1.msra.mxu0 0.0
    %112 = vmatprep.subr.mxu0 0.0
    %113 = vmatpush1.msra.mxu0 0.0
    %114 = vmatprep.subr.mxu0 0.0
    %115 = vmatpush1.msra.mxu0 0.0
    %116 = vmatprep.subr.mxu0 0.0
    %117 = vmatpush1.msra.mxu0 0.0
    %118 = vmatprep.mubr.f32.mxu0 0.0
    %119 = vmatmul.mubr.f32.gmra.mrb[0].mxu0 %v45
    %v120 = vpop.f32.mrb[0].mxu0
    %v121 = vadd.f32 %v41, %v120
    %v122 = vpop.f32.mrb[0].mxu0
    %123 = vmatprep.mubr.f32.mxu0 0.0
    %124 = vmatmul.mubr.f32.gmra.mrb[0].mxu0 %v48
    %v125 = vpop.f32.mrb[0].mxu0
    %v126 = vadd.f32 %v41, %v125
    %v127 = vpop.f32.mrb[0].mxu0
    %128 = vdwg.mxu0
    %vm129 = vcmask 254976
    %130 = vst.msk [vmem:[#allocation2] sm:$0x3] %vm129, %v121
    %s131 = scalar_lea.vmem [#allocation2], 2
    %vm132 = vcmask 257026
    %133 = vst.msk [vmem:[%s131 - $0x2] sm:$0xc] %vm132, %v121
    %s134 = scalar_lea.vmem [#allocation2], 4
    %vm135 = vcmask 259076
    %136 = vst.msk [vmem:[%s134 - $0x4] sm:$0x30] %vm135, %v121
    %s137 = scalar_lea.vmem [#allocation2], 6
    %vm138 = vcmask 261126
    %139 = vst.msk [vmem:[%s137 - $0x6] sm:$0xc0] %vm138, %v121
    %s140 = scalar_lea.vmem [#allocation2], 8
    %141 = vst.msk [vmem:[%s140] sm:$0x3] %vm129, %v126
    %s142 = scalar_lea.vmem [#allocation2], 10
    %143 = vst.msk [vmem:[%s142 - $0x2] sm:$0xc] %vm132, %v126
    %s144 = scalar_lea.vmem [#allocation2], 12
    %145 = vst.msk [vmem:[%s144 - $0x4] sm:$0x30] %vm135, %v126
    %s146 = scalar_lea.vmem [#allocation2], 14
    %147 = vst.msk [vmem:[%s146 - $0x6] sm:$0xc0] %vm138, %v126
    %v148 = vld [vmem:[%s8] sm:$0x1]
    %v150 = vlaneseq
    %v151 = vshrl.u32 %v150, 7
    %v152 = vsub.s32 0, %v151
    %v153 = vrot.slane %v148, %v152
    %v155 = vld [vmem:[%s2] sm:$0xff]
    %v156 = vld [vmem:[#allocation2] sm:$0x3]
    %vm157 = vcmask 64512
    %v159 = vsel %vm157, 0.0, 0
    %161 = vmatprep.subr.mxu0 0.0
    %162 = vmatpush1.msra.mxu0 %v155
    %163 = vmatprep.subr.mxu0 0.0
    %164 = vmatpush1.msra.mxu0 0.0
    %165 = vmatprep.subr.mxu0 0.0
    %166 = vmatpush1.msra.mxu0 0.0
    %167 = vmatprep.subr.mxu0 0.0
    %168 = vmatpush1.msra.mxu0 0.0
    %169 = vmatprep.subr.mxu0 0.0
    %170 = vmatpush1.msra.mxu0 0.0
    %171 = vmatprep.subr.mxu0 0.0
    %172 = vmatpush1.msra.mxu0 0.0
    %173 = vmatprep.subr.mxu0 0.0
    %174 = vmatpush1.msra.mxu0 0.0
    %175 = vmatprep.subr.mxu0 0.0
    %176 = vmatpush1.msra.mxu0 0.0
    %177 = vmatprep.subr.mxu0 0.0
    %178 = vmatpush1.msra.mxu0 0.0
    %179 = vmatprep.subr.mxu0 0.0
    %180 = vmatpush1.msra.mxu0 0.0
    %181 = vmatprep.subr.mxu0 0.0
    %182 = vmatpush1.msra.mxu0 0.0
    %183 = vmatprep.subr.mxu0 0.0
    %184 = vmatpush1.msra.mxu0 0.0
    %185 = vmatprep.subr.mxu0 0.0
    %186 = vmatpush1.msra.mxu0 0.0
    %187 = vmatprep.subr.mxu0 0.0
    %188 = vmatpush1.msra.mxu0 0.0
    %189 = vmatprep.subr.mxu0 0.0
    %190 = vmatpush1.msra.mxu0 0.0
    %191 = vmatprep.subr.mxu0 0.0
    %192 = vmatpush1.msra.mxu0 0.0
    %193 = vmatprep.subr.mxu0 0.0
    %194 = vmatpush1.msra.mxu0 0.0
    %195 = vmatprep.subr.mxu0 0.0
    %196 = vmatpush1.msra.mxu0 0.0
    %197 = vmatprep.subr.mxu0 0.0
    %198 = vmatpush1.msra.mxu0 0.0
    %199 = vmatprep.subr.mxu0 0.0
    %200 = vmatpush1.msra.mxu0 0.0
    %201 = vmatprep.subr.mxu0 0.0
    %202 = vmatpush1.msra.mxu0 0.0
    %203 = vmatprep.subr.mxu0 0.0
    %204 = vmatpush1.msra.mxu0 0.0
    %205 = vmatprep.subr.mxu0 0.0
    %206 = vmatpush1.msra.mxu0 0.0
    %207 = vmatprep.subr.mxu0 0.0
    %208 = vmatpush1.msra.mxu0 0.0
    %209 = vmatprep.subr.mxu0 0.0
    %210 = vmatpush1.msra.mxu0 0.0
    %211 = vmatprep.subr.mxu0 0.0
    %212 = vmatpush1.msra.mxu0 0.0
    %213 = vmatprep.subr.mxu0 0.0
    %214 = vmatpush1.msra.mxu0 0.0
    %215 = vmatprep.subr.mxu0 0.0
    %216 = vmatpush1.msra.mxu0 0.0
    %217 = vmatprep.subr.mxu0 0.0
    %218 = vmatpush1.msra.mxu0 0.0
    %219 = vmatprep.subr.mxu0 0.0
    %220 = vmatpush1.msra.mxu0 0.0
    %221 = vmatprep.subr.mxu0 0.0
    %222 = vmatpush1.msra.mxu0 0.0
    %223 = vmatprep.subr.mxu0 0.0
    %224 = vmatpush1.msra.mxu0 0.0
    %225 = vmatprep.mubr.f32.mxu0 0.0
    %226 = vmatmul.mubr.f32.gmra.mrb[0].mxu0 %v159
    %v227 = vpop.f32.mrb[0].mxu0
    %v228 = vadd.f32 0.0, %v227
    %v229 = vpop.f32.mrb[0].mxu0
    %230 = vdwg.mxu0
    %v231 = vadd.f32 %v156, %v228
    %v232 = vtanh.pop %v231
    %v233 = vmul.f32 %v232, 0.5
    %v234 = vadd.f32 %v233, 0.5
    %v235 = vmul.f32 %v234, 0.0
    %237 = vrot.lane.b32.xlu0 %v232, 104
    %v238 = vpop.permute.xlu0 %237
    %v240 = vmul.f32 %v234, %v238
    %242 = vrot.lane.b32.xlu0 %v240, 8
    %v243 = vpop.permute.xlu0 %242
    %v245 = vadd.f32 %v235, %v243
    %v246 = vtanh.pop %v245
    %248 = vrot.lane.b32.xlu0 %v246, 8
    %v249 = vpop.permute.xlu0 %248
    %v251 = vmul.f32 %v234, %v249
    %v252 = vld [vmem:[%s131] sm:$0x3]
    %254 = vrot.lane.b32.xlu0 %v251, 112
    %v255 = vpop.permute.xlu0 %254
    %v256 = vsel %vm157, %v255, 0
    %258 = vmatprep.subr.mxu0 0.0
    %259 = vmatpush1.msra.mxu0 %v155
    %260 = vmatprep.subr.mxu0 0.0
    %261 = vmatpush1.msra.mxu0 0.0
    %262 = vmatprep.subr.mxu0 0.0
    %263 = vmatpush1.msra.mxu0 0.0
    %264 = vmatprep.subr.mxu0 0.0
    %265 = vmatpush1.msra.mxu0 0.0
    %266 = vmatprep.subr.mxu0 0.0
    %267 = vmatpush1.msra.mxu0 0.0
    %268 = vmatprep.subr.mxu0 0.0
    %269 = vmatpush1.msra.mxu0 0.0
    %270 = vmatprep.subr.mxu0 0.0
    %271 = vmatpush1.msra.mxu0 0.0
    %272 = vmatprep.subr.mxu0 0.0
    %273 = vmatpush1.msra.mxu0 0.0
    %274 = vmatprep.subr.mxu0 0.0
    %275 = vmatpush1.msra.mxu0 0.0
    %276 = vmatprep.subr.mxu0 0.0
    %277 = vmatpush1.msra.mxu0 0.0
    %278 = vmatprep.subr.mxu0 0.0
    %279 = vmatpush1.msra.mxu0 0.0
    %280 = vmatprep.subr.mxu0 0.0
    %281 = vmatpush1.msra.mxu0 0.0
    %282 = vmatprep.subr.mxu0 0.0
    %283 = vmatpush1.msra.mxu0 0.0
    %284 = vmatprep.subr.mxu0 0.0
    %285 = vmatpush1.msra.mxu0 0.0
    %286 = vmatprep.subr.mxu0 0.0
    %287 = vmatpush1.msra.mxu0 0.0
    %288 = vmatprep.subr.mxu0 0.0
    %289 = vmatpush1.msra.mxu0 0.0
    %290 = vmatprep.subr.mxu0 0.0
    %291 = vmatpush1.msra.mxu0 0.0
    %292 = vmatprep.subr.mxu0 0.0
    %293 = vmatpush1.msra.mxu0 0.0
    %294 = vmatprep.subr.mxu0 0.0
    %295 = vmatpush1.msra.mxu0 0.0
    %296 = vmatprep.subr.mxu0 0.0
    %297 = vmatpush1.msra.mxu0 0.0
    %298 = vmatprep.subr.mxu0 0.0
    %299 = vmatpush1.msra.mxu0 0.0
    %300 = vmatprep.subr.mxu0 0.0
    %301 = vmatpush1.msra.mxu0 0.0
    %302 = vmatprep.subr.mxu0 0.0
    %303 = vmatpush1.msra.mxu0 0.0
    %304 = vmatprep.subr.mxu0 0.0
    %305 = vmatpush1.msra.mxu0 0.0
    %306 = vmatprep.subr.mxu0 0.0
    %307 = vmatpush1.msra.mxu0 0.0
    %308 = vmatprep.subr.mxu0 0.0
    %309 = vmatpush1.msra.mxu0 0.0
    %310 = vmatprep.subr.mxu0 0.0
    %311 = vmatpush1.msra.mxu0 0.0
    %312 = vmatprep.subr.mxu0 0.0
    %313 = vmatpush1.msra.mxu0 0.0
    %314 = vmatprep.subr.mxu0 0.0
    %315 = vmatpush1.msra.mxu0 0.0
    %316 = vmatprep.subr.mxu0 0.0
    %317 = vmatpush1.msra.mxu0 0.0
    %318 = vmatprep.subr.mxu0 0.0
    %319 = vmatpush1.msra.mxu0 0.0
    %320 = vmatprep.subr.mxu0 0.0
    %321 = vmatpush1.msra.mxu0 0.0
    %322 = vmatprep.mubr.f32.mxu0 0.0
    %323 = vmatmul.mubr.f32.gmra.mrb[0].mxu0 %v256
    %v324 = vpop.f32.mrb[0].mxu0
    %v325 = vadd.f32 0.0, %v324
    %v326 = vpop.f32.mrb[0].mxu0
    %327 = vdwg.mxu0
    %v328 = vadd.f32 %v252, %v325
    %v329 = vtanh.pop %v328
    %v330 = vmul.f32 %v329, 0.5
    %v331 = vadd.f32 %v330, 0.5
    %v332 = vmul.f32 %v331, %v245
    %334 = vrot.lane.b32.xlu0 %v329, 104
    %v335 = vpop.permute.xlu0 %334
    %v337 = vmul.f32 %v331, %v335
    %339 = vrot.lane.b32.xlu0 %v337, 8
    %v340 = vpop.permute.xlu0 %339
    %v342 = vadd.f32 %v332, %v340
    %v343 = vtanh.pop %v342
    %345 = vrot.lane.b32.xlu0 %v343, 8
    %v346 = vpop.permute.xlu0 %345
    %v348 = vmul.f32 %v331, %v346
    %v349 = vld [vmem:[%s134] sm:$0x3]
    %351 = vrot.lane.b32.xlu0 %v348, 112
    %v352 = vpop.permute.xlu0 %351
    %v353 = vsel %vm157, %v352, 0
    %355 = vmatprep.subr.mxu0 0.0
    %356 = vmatpush1.msra.mxu0 %v155
    %357 = vmatprep.subr.mxu0 0.0
    %358 = vmatpush1.msra.mxu0 0.0
    %359 = vmatprep.subr.mxu0 0.0
    %360 = vmatpush1.msra.mxu0 0.0
    %361 = vmatprep.subr.mxu0 0.0
    %362 = vmatpush1.msra.mxu0 0.0
    %363 = vmatprep.subr.mxu0 0.0
    %364 = vmatpush1.msra.mxu0 0.0
    %365 = vmatprep.subr.mxu0 0.0
    %366 = vmatpush1.msra.mxu0 0.0
    %367 = vmatprep.subr.mxu0 0.0
    %368 = vmatpush1.msra.mxu0 0.0
    %369 = vmatprep.subr.mxu0 0.0
    %370 = vmatpush1.msra.mxu0 0.0
    %371 = vmatprep.subr.mxu0 0.0
    %372 = vmatpush1.msra.mxu0 0.0
    %373 = vmatprep.subr.mxu0 0.0
    %374 = vmatpush1.msra.mxu0 0.0
    %375 = vmatprep.subr.mxu0 0.0
    %376 = vmatpush1.msra.mxu0 0.0
    %377 = vmatprep.subr.mxu0 0.0
    %378 = vmatpush1.msra.mxu0 0.0
    %379 = vmatprep.subr.mxu0 0.0
    %380 = vmatpush1.msra.mxu0 0.0
    %381 = vmatprep.subr.mxu0 0.0
    %382 = vmatpush1.msra.mxu0 0.0
    %383 = vmatprep.subr.mxu0 0.0
    %384 = vmatpush1.msra.mxu0 0.0
    %385 = vmatprep.subr.mxu0 0.0
    %386 = vmatpush1.msra.mxu0 0.0
    %387 = vmatprep.subr.mxu0 0.0
    %388 = vmatpush1.msra.mxu0 0.0
    %389 = vmatprep.subr.mxu0 0.0
    %390 = vmatpush1.msra.mxu0 0.0
    %391 = vmatprep.subr.mxu0 0.0
    %392 = vmatpush1.msra.mxu0 0.0
    %393 = vmatprep.subr.mxu0 0.0
    %394 = vmatpush1.msra.mxu0 0.0
    %395 = vmatprep.subr.mxu0 0.0
    %396 = vmatpush1.msra.mxu0 0.0
    %397 = vmatprep.subr.mxu0 0.0
    %398 = vmatpush1.msra.mxu0 0.0
    %399 = vmatprep.subr.mxu0 0.0
    %400 = vmatpush1.msra.mxu0 0.0
    %401 = vmatprep.subr.mxu0 0.0
    %402 = vmatpush1.msra.mxu0 0.0
    %403 = vmatprep.subr.mxu0 0.0
    %404 = vmatpush1.msra.mxu0 0.0
    %405 = vmatprep.subr.mxu0 0.0
    %406 = vmatpush1.msra.mxu0 0.0
    %407 = vmatprep.subr.mxu0 0.0
    %408 = vmatpush1.msra.mxu0 0.0
    %409 = vmatprep.subr.mxu0 0.0
    %410 = vmatpush1.msra.mxu0 0.0
    %411 = vmatprep.subr.mxu0 0.0
    %412 = vmatpush1.msra.mxu0 0.0
    %413 = vmatprep.subr.mxu0 0.0
    %414 = vmatpush1.msra.mxu0 0.0
    %415 = vmatprep.subr.mxu0 0.0
    %416 = vmatpush1.msra.mxu0 0.0
    %417 = vmatprep.subr.mxu0 0.0
    %418 = vmatpush1.msra.mxu0 0.0
    %419 = vmatprep.mubr.f32.mxu0 0.0
    %420 = vmatmul.mubr.f32.gmra.mrb[0].mxu0 %v353
    %v421 = vpop.f32.mrb[0].mxu0
    %v422 = vadd.f32 0.0, %v421
    %v423 = vpop.f32.mrb[0].mxu0
    %424 = vdwg.mxu0
    %v425 = vadd.f32 %v349, %v422
    %v426 = vtanh.pop %v425
    %v427 = vmul.f32 %v426, 0.5
    %v428 = vadd.f32 %v427, 0.5
    %v429 = vmul.f32 %v428, %v342
    %431 = vrot.lane.b32.xlu0 %v426, 104
    %v432 = vpop.permute.xlu0 %431
    %v434 = vmul.f32 %v428, %v432
    %436 = vrot.lane.b32.xlu0 %v434, 8
    %v437 = vpop.permute.xlu0 %436
    %v439 = vadd.f32 %v429, %v437
    %v440 = vtanh.pop %v439
    %442 = vrot.lane.b32.xlu0 %v440, 8
    %v443 = vpop.permute.xlu0 %442
    %v445 = vmul.f32 %v428, %v443
    %v446 = vld [vmem:[%s137] sm:$0x3]
    %448 = vrot.lane.b32.xlu0 %v445, 112
    %v449 = vpop.permute.xlu0 %448
    %v450 = vsel %vm157, %v449, 0
    %452 = vmatprep.subr.mxu0 0.0
    %453 = vmatpush1.msra.mxu0 %v155
    %454 = vmatprep.subr.mxu0 0.0
    %455 = vmatpush1.msra.mxu0 0.0
    %456 = vmatprep.subr.mxu0 0.0
    %457 = vmatpush1.msra.mxu0 0.0
    %458 = vmatprep.subr.mxu0 0.0
    %459 = vmatpush1.msra.mxu0 0.0
    %460 = vmatprep.subr.mxu0 0.0
    %461 = vmatpush1.msra.mxu0 0.0
    %462 = vmatprep.subr.mxu0 0.0
    %463 = vmatpush1.msra.mxu0 0.0
    %464 = vmatprep.subr.mxu0 0.0
    %465 = vmatpush1.msra.mxu0 0.0
    %466 = vmatprep.subr.mxu0 0.0
    %467 = vmatpush1.msra.mxu0 0.0
    %468 = vmatprep.subr.mxu0 0.0
    %469 = vmatpush1.msra.mxu0 0.0
    %470 = vmatprep.subr.mxu0 0.0
    %471 = vmatpush1.msra.mxu0 0.0
    %472 = vmatprep.subr.mxu0 0.0
    %473 = vmatpush1.msra.mxu0 0.0
    %474 = vmatprep.subr.mxu0 0.0
    %475 = vmatpush1.msra.mxu0 0.0
    %476 = vmatprep.subr.mxu0 0.0
    %477 = vmatpush1.msra.mxu0 0.0
    %478 = vmatprep.subr.mxu0 0.0
    %479 = vmatpush1.msra.mxu0 0.0
    %480 = vmatprep.subr.mxu0 0.0
    %481 = vmatpush1.msra.mxu0 0.0
    %482 = vmatprep.subr.mxu0 0.0
    %483 = vmatpush1.msra.mxu0 0.0
    %484 = vmatprep.subr.mxu0 0.0
    %485 = vmatpush1.msra.mxu0 0.0
    %486 = vmatprep.subr.mxu0 0.0
    %487 = vmatpush1.msra.mxu0 0.0
    %488 = vmatprep.subr.mxu0 0.0
    %489 = vmatpush1.msra.mxu0 0.0
    %490 = vmatprep.subr.mxu0 0.0
    %491 = vmatpush1.msra.mxu0 0.0
    %492 = vmatprep.subr.mxu0 0.0
    %493 = vmatpush1.msra.mxu0 0.0
    %494 = vmatprep.subr.mxu0 0.0
    %495 = vmatpush1.msra.mxu0 0.0
    %496 = vmatprep.subr.mxu0 0.0
    %497 = vmatpush1.msra.mxu0 0.0
    %498 = vmatprep.subr.mxu0 0.0
    %499 = vmatpush1.msra.mxu0 0.0
    %500 = vmatprep.subr.mxu0 0.0
    %501 = vmatpush1.msra.mxu0 0.0
    %502 = vmatprep.subr.mxu0 0.0
    %503 = vmatpush1.msra.mxu0 0.0
    %504 = vmatprep.subr.mxu0 0.0
    %505 = vmatpush1.msra.mxu0 0.0
    %506 = vmatprep.subr.mxu0 0.0
    %507 = vmatpush1.msra.mxu0 0.0
    %508 = vmatprep.subr.mxu0 0.0
    %509 = vmatpush1.msra.mxu0 0.0
    %510 = vmatprep.subr.mxu0 0.0
    %511 = vmatpush1.msra.mxu0 0.0
    %512 = vmatprep.subr.mxu0 0.0
    %513 = vmatpush1.msra.mxu0 0.0
    %514 = vmatprep.subr.mxu0 0.0
    %515 = vmatpush1.msra.mxu0 0.0
    %516 = vmatprep.mubr.f32.mxu0 0.0
    %517 = vmatmul.mubr.f32.gmra.mrb[0].mxu0 %v450
    %v518 = vpop.f32.mrb[0].mxu0
    %v519 = vadd.f32 0.0, %v518
    %v520 = vpop.f32.mrb[0].mxu0
    %521 = vdwg.mxu0
    %v522 = vadd.f32 %v446, %v519
    %v523 = vtanh.pop %v522
    %v524 = vmul.f32 %v523, 0.5
    %v525 = vadd.f32 %v524, 0.5
    %v526 = vmul.f32 %v525, %v439
    %528 = vrot.lane.b32.xlu0 %v523, 104
    %v529 = vpop.permute.xlu0 %528
    %v531 = vmul.f32 %v525, %v529
    %533 = vrot.lane.b32.xlu0 %v531, 8
    %v534 = vpop.permute.xlu0 %533
    %v536 = vadd.f32 %v526, %v534
    %v537 = vtanh.pop %v536
    %539 = vrot.lane.b32.xlu0 %v537, 8
    %v540 = vpop.permute.xlu0 %539
    %v542 = vmul.f32 %v525, %v540
    %v543 = vld [vmem:[%s140] sm:$0x3]
    %545 = vrot.lane.b32.xlu0 %v542, 112
    %v546 = vpop.permute.xlu0 %545
    %v547 = vsel %vm157, %v546, 0
    %549 = vmatprep.subr.mxu0 0.0
    %550 = vmatpush1.msra.mxu0 %v155
    %551 = vmatprep.subr.mxu0 0.0
    %552 = vmatpush1.msra.mxu0 0.0
    %553 = vmatprep.subr.mxu0 0.0
    %554 = vmatpush1.msra.mxu0 0.0
    %555 = vmatprep.subr.mxu0 0.0
    %556 = vmatpush1.msra.mxu0 0.0
    %557 = vmatprep.subr.mxu0 0.0
    %558 = vmatpush1.msra.mxu0 0.0
    %559 = vmatprep.subr.mxu0 0.0
    %560 = vmatpush1.msra.mxu0 0.0
    %561 = vmatprep.subr.mxu0 0.0
    %562 = vmatpush1.msra.mxu0 0.0
    %563 = vmatprep.subr.mxu0 0.0
    %564 = vmatpush1.msra.mxu0 0.0
    %565 = vmatprep.subr.mxu0 0.0
    %566 = vmatpush1.msra.mxu0 0.0
    %567 = vmatprep.subr.mxu0 0.0
    %568 = vmatpush1.msra.mxu0 0.0
    %569 = vmatprep.subr.mxu0 0.0
    %570 = vmatpush1.msra.mxu0 0.0
    %571 = vmatprep.subr.mxu0 0.0
    %572 = vmatpush1.msra.mxu0 0.0
    %573 = vmatprep.subr.mxu0 0.0
    %574 = vmatpush1.msra.mxu0 0.0
    %575 = vmatprep.subr.mxu0 0.0
    %576 = vmatpush1.msra.mxu0 0.0
    %577 = vmatprep.subr.mxu0 0.0
    %578 = vmatpush1.msra.mxu0 0.0
    %579 = vmatprep.subr.mxu0 0.0
    %580 = vmatpush1.msra.mxu0 0.0
    %581 = vmatprep.subr.mxu0 0.0
    %582 = vmatpush1.msra.mxu0 0.0
    %583 = vmatprep.subr.mxu0 0.0
    %584 = vmatpush1.msra.mxu0 0.0
    %585 = vmatprep.subr.mxu0 0.0
    %586 = vmatpush1.msra.mxu0 0.0
    %587 = vmatprep.subr.mxu0 0.0
    %588 = vmatpush1.msra.mxu0 0.0
    %589 = vmatprep.subr.mxu0 0.0
    %590 = vmatpush1.msra.mxu0 0.0
    %591 = vmatprep.subr.mxu0 0.0
    %592 = vmatpush1.msra.mxu0 0.0
    %593 = vmatprep.subr.mxu0 0.0
    %594 = vmatpush1.msra.mxu0 0.0
    %595 = vmatprep.subr.mxu0 0.0
    %596 = vmatpush1.msra.mxu0 0.0
    %597 = vmatprep.subr.mxu0 0.0
    %598 = vmatpush1.msra.mxu0 0.0
    %599 = vmatprep.subr.mxu0 0.0
    %600 = vmatpush1.msra.mxu0 0.0
    %601 = vmatprep.subr.mxu0 0.0
    %602 = vmatpush1.msra.mxu0 0.0
    %603 = vmatprep.subr.mxu0 0.0
    %604 = vmatpush1.msra.mxu0 0.0
    %605 = vmatprep.subr.mxu0 0.0
    %606 = vmatpush1.msra.mxu0 0.0
    %607 = vmatprep.subr.mxu0 0.0
    %608 = vmatpush1.msra.mxu0 0.0
    %609 = vmatprep.subr.mxu0 0.0
    %610 = vmatpush1.msra.mxu0 0.0
    %611 = vmatprep.subr.mxu0 0.0
    %612 = vmatpush1.msra.mxu0 0.0
    %613 = vmatprep.mubr.f32.mxu0 0.0
    %614 = vmatmul.mubr.f32.gmra.mrb[0].mxu0 %v547
    %v615 = vpop.f32.mrb[0].mxu0
    %v616 = vadd.f32 0.0, %v615
    %v617 = vpop.f32.mrb[0].mxu0
    %618 = vdwg.mxu0
    %v619 = vadd.f32 %v543, %v616
    %v620 = vtanh.pop %v619
    %v621 = vmul.f32 %v620, 0.5
    %v622 = vadd.f32 %v621, 0.5
    %v623 = vmul.f32 %v622, %v536
    %625 = vrot.lane.b32.xlu0 %v620, 104
    %v626 = vpop.permute.xlu0 %625
    %v628 = vmul.f32 %v622, %v626
    %630 = vrot.lane.b32.xlu0 %v628, 8
    %v631 = vpop.permute.xlu0 %630
    %v633 = vadd.f32 %v623, %v631
    %v634 = vtanh.pop %v633
    %636 = vrot.lane.b32.xlu0 %v634, 8
    %v637 = vpop.permute.xlu0 %636
    %v639 = vmul.f32 %v622, %v637
    %v640 = vld [vmem:[%s142] sm:$0x3]
    %642 = vrot.lane.b32.xlu0 %v639, 112
    %v643 = vpop.permute.xlu0 %642
    %v644 = vsel %vm157, %v643, 0
    %646 = vmatprep.subr.mxu0 0.0
    %647 = vmatpush1.msra.mxu0 %v155
    %648 = vmatprep.subr.mxu0 0.0
    %649 = vmatpush1.msra.mxu0 0.0
    %650 = vmatprep.subr.mxu0 0.0
    %651 = vmatpush1.msra.mxu0 0.0
    %652 = vmatprep.subr.mxu0 0.0
    %653 = vmatpush1.msra.mxu0 0.0
    %654 = vmatprep.subr.mxu0 0.0
    %655 = vmatpush1.msra.mxu0 0.0
    %656 = vmatprep.subr.mxu0 0.0
    %657 = vmatpush1.msra.mxu0 0.0
    %658 = vmatprep.subr.mxu0 0.0
    %659 = vmatpush1.msra.mxu0 0.0
    %660 = vmatprep.subr.mxu0 0.0
    %661 = vmatpush1.msra.mxu0 0.0
    %662 = vmatprep.subr.mxu0 0.0
    %663 = vmatpush1.msra.mxu0 0.0
    %664 = vmatprep.subr.mxu0 0.0
    %665 = vmatpush1.msra.mxu0 0.0
    %666 = vmatprep.subr.mxu0 0.0
    %667 = vmatpush1.msra.mxu0 0.0
    %668 = vmatprep.subr.mxu0 0.0
    %669 = vmatpush1.msra.mxu0 0.0
    %670 = vmatprep.subr.mxu0 0.0
    %671 = vmatpush1.msra.mxu0 0.0
    %672 = vmatprep.subr.mxu0 0.0
    %673 = vmatpush1.msra.mxu0 0.0
    %674 = vmatprep.subr.mxu0 0.0
    %675 = vmatpush1.msra.mxu0 0.0
    %676 = vmatprep.subr.mxu0 0.0
    %677 = vmatpush1.msra.mxu0 0.0
    %678 = vmatprep.subr.mxu0 0.0
    %679 = vmatpush1.msra.mxu0 0.0
    %680 = vmatprep.subr.mxu0 0.0
    %681 = vmatpush1.msra.mxu0 0.0
    %682 = vmatprep.subr.mxu0 0.0
    %683 = vmatpush1.msra.mxu0 0.0
    %684 = vmatprep.subr.mxu0 0.0
    %685 = vmatpush1.msra.mxu0 0.0
    %686 = vmatprep.subr.mxu0 0.0
    %687 = vmatpush1.msra.mxu0 0.0
    %688 = vmatprep.subr.mxu0 0.0
    %689 = vmatpush1.msra.mxu0 0.0
    %690 = vmatprep.subr.mxu0 0.0
    %691 = vmatpush1.msra.mxu0 0.0
    %692 = vmatprep.subr.mxu0 0.0
    %693 = vmatpush1.msra.mxu0 0.0
    %694 = vmatprep.subr.mxu0 0.0
    %695 = vmatpush1.msra.mxu0 0.0
    %696 = vmatprep.subr.mxu0 0.0
    %697 = vmatpush1.msra.mxu0 0.0
    %698 = vmatprep.subr.mxu0 0.0
    %699 = vmatpush1.msra.mxu0 0.0
    %700 = vmatprep.subr.mxu0 0.0
    %701 = vmatpush1.msra.mxu0 0.0
    %702 = vmatprep.subr.mxu0 0.0
    %703 = vmatpush1.msra.mxu0 0.0
    %704 = vmatprep.subr.mxu0 0.0
    %705 = vmatpush1.msra.mxu0 0.0
    %706 = vmatprep.subr.mxu0 0.0
    %707 = vmatpush1.msra.mxu0 0.0
    %708 = vmatprep.subr.mxu0 0.0
    %709 = vmatpush1.msra.mxu0 0.0
    %710 = vmatprep.mubr.f32.mxu0 0.0
    %711 = vmatmul.mubr.f32.gmra.mrb[0].mxu0 %v644
    %v712 = vpop.f32.mrb[0].mxu0
    %v713 = vadd.f32 0.0, %v712
    %v714 = vpop.f32.mrb[0].mxu0
    %715 = vdwg.mxu0
    %v716 = vadd.f32 %v640, %v713
    %v717 = vtanh.pop %v716
    %v718 = vmul.f32 %v717, 0.5
    %v719 = vadd.f32 %v718, 0.5
    %v720 = vmul.f32 %v719, %v633
    %722 = vrot.lane.b32.xlu0 %v717, 104
    %v723 = vpop.permute.xlu0 %722
    %v725 = vmul.f32 %v719, %v723
    %727 = vrot.lane.b32.xlu0 %v725, 8
    %v728 = vpop.permute.xlu0 %727
    %v730 = vadd.f32 %v720, %v728
    %v731 = vtanh.pop %v730
    %733 = vrot.lane.b32.xlu0 %v731, 8
    %v734 = vpop.permute.xlu0 %733
    %v736 = vmul.f32 %v719, %v734
    %v737 = vld [vmem:[%s144] sm:$0x3]
    %739 = vrot.lane.b32.xlu0 %v736, 112
    %v740 = vpop.permute.xlu0 %739
    %v741 = vsel %vm157, %v740, 0
    %743 = vmatprep.subr.mxu0 0.0
    %744 = vmatpush1.msra.mxu0 %v155
    %745 = vmatprep.subr.mxu0 0.0
    %746 = vmatpush1.msra.mxu0 0.0
    %747 = vmatprep.subr.mxu0 0.0
    %748 = vmatpush1.msra.mxu0 0.0
    %749 = vmatprep.subr.mxu0 0.0
    %750 = vmatpush1.msra.mxu0 0.0
    %751 = vmatprep.subr.mxu0 0.0
    %752 = vmatpush1.msra.mxu0 0.0
    %753 = vmatprep.subr.mxu0 0.0
    %754 = vmatpush1.msra.mxu0 0.0
    %755 = vmatprep.subr.mxu0 0.0
    %756 = vmatpush1.msra.mxu0 0.0
    %757 = vmatprep.subr.mxu0 0.0
    %758 = vmatpush1.msra.mxu0 0.0
    %759 = vmatprep.subr.mxu0 0.0
    %760 = vmatpush1.msra.mxu0 0.0
    %761 = vmatprep.subr.mxu0 0.0
    %762 = vmatpush1.msra.mxu0 0.0
    %763 = vmatprep.subr.mxu0 0.0
    %764 = vmatpush1.msra.mxu0 0.0
    %765 = vmatprep.subr.mxu0 0.0
    %766 = vmatpush1.msra.mxu0 0.0
    %767 = vmatprep.subr.mxu0 0.0
    %768 = vmatpush1.msra.mxu0 0.0
    %769 = vmatprep.subr.mxu0 0.0
    %770 = vmatpush1.msra.mxu0 0.0
    %771 = vmatprep.subr.mxu0 0.0
    %772 = vmatpush1.msra.mxu0 0.0
    %773 = vmatprep.subr.mxu0 0.0
    %774 = vmatpush1.msra.mxu0 0.0
    %775 = vmatprep.subr.mxu0 0.0
    %776 = vmatpush1.msra.mxu0 0.0
    %777 = vmatprep.subr.mxu0 0.0
    %778 = vmatpush1.msra.mxu0 0.0
    %779 = vmatprep.subr.mxu0 0.0
    %780 = vmatpush1.msra.mxu0 0.0
    %781 = vmatprep.subr.mxu0 0.0
    %782 = vmatpush1.msra.mxu0 0.0
    %783 = vmatprep.subr.mxu0 0.0
    %784 = vmatpush1.msra.mxu0 0.0
    %785 = vmatprep.subr.mxu0 0.0
    %786 = vmatpush1.msra.mxu0 0.0
    %787 = vmatprep.subr.mxu0 0.0
    %788 = vmatpush1.msra.mxu0 0.0
    %789 = vmatprep.subr.mxu0 0.0
    %790 = vmatpush1.msra.mxu0 0.0
    %791 = vmatprep.subr.mxu0 0.0
    %792 = vmatpush1.msra.mxu0 0.0
    %793 = vmatprep.subr.mxu0 0.0
    %794 = vmatpush1.msra.mxu0 0.0
    %795 = vmatprep.subr.mxu0 0.0
    %796 = vmatpush1.msra.mxu0 0.0
    %797 = vmatprep.subr.mxu0 0.0
    %798 = vmatpush1.msra.mxu0 0.0
    %799 = vmatprep.subr.mxu0 0.0
    %800 = vmatpush1.msra.mxu0 0.0
    %801 = vmatprep.subr.mxu0 0.0
    %802 = vmatpush1.msra.mxu0 0.0
    %803 = vmatprep.subr.mxu0 0.0
    %804 = vmatpush1.msra.mxu0 0.0
    %805 = vmatprep.subr.mxu0 0.0
    %806 = vmatpush1.msra.mxu0 0.0
    %807 = vmatprep.mubr.f32.mxu0 0.0
    %808 = vmatmul.mubr.f32.gmra.mrb[0].mxu0 %v741
    %v809 = vpop.f32.mrb[0].mxu0
    %v810 = vadd.f32 0.0, %v809
    %v811 = vpop.f32.mrb[0].mxu0
    %812 = vdwg.mxu0
    %v813 = vadd.f32 %v737, %v810
    %v814 = vtanh.pop %v813
    %v815 = vmul.f32 %v814, 0.5
    %v816 = vadd.f32 %v815, 0.5
    %v817 = vmul.f32 %v816, %v730
    %819 = vrot.lane.b32.xlu0 %v814, 104
    %v820 = vpop.permute.xlu0 %819
    %v822 = vmul.f32 %v816, %v820
    %824 = vrot.lane.b32.xlu0 %v822, 8
    %v825 = vpop.permute.xlu0 %824
    %v827 = vadd.f32 %v817, %v825
    %v828 = vtanh.pop %v827
    %830 = vrot.lane.b32.xlu0 %v828, 8
    %v831 = vpop.permute.xlu0 %830
    %v833 = vmul.f32 %v816, %v831
    %v834 = vld [vmem:[%s146] sm:$0x3]
    %836 = vrot.lane.b32.xlu0 %v833, 112
    %v837 = vpop.permute.xlu0 %836
    %v838 = vsel %vm157, %v837, 0
    %840 = vmatprep.subr.mxu0 0.0
    %841 = vmatpush1.msra.mxu0 %v155
    %842 = vmatprep.subr.mxu0 0.0
    %843 = vmatpush1.msra.mxu0 0.0
    %844 = vmatprep.subr.mxu0 0.0
    %845 = vmatpush1.msra.mxu0 0.0
    %846 = vmatprep.subr.mxu0 0.0
    %847 = vmatpush1.msra.mxu0 0.0
    %848 = vmatprep.subr.mxu0 0.0
    %849 = vmatpush1.msra.mxu0 0.0
    %850 = vmatprep.subr.mxu0 0.0
    %851 = vmatpush1.msra.mxu0 0.0
    %852 = vmatprep.subr.mxu0 0.0
    %853 = vmatpush1.msra.mxu0 0.0
    %854 = vmatprep.subr.mxu0 0.0
    %855 = vmatpush1.msra.mxu0 0.0
    %856 = vmatprep.subr.mxu0 0.0
    %857 = vmatpush1.msra.mxu0 0.0
    %858 = vmatprep.subr.mxu0 0.0
    %859 = vmatpush1.msra.mxu0 0.0
    %860 = vmatprep.subr.mxu0 0.0
    %861 = vmatpush1.msra.mxu0 0.0
    %862 = vmatprep.subr.mxu0 0.0
    %863 = vmatpush1.msra.mxu0 0.0
    %864 = vmatprep.subr.mxu0 0.0
    %865 = vmatpush1.msra.mxu0 0.0
    %866 = vmatprep.subr.mxu0 0.0
    %867 = vmatpush1.msra.mxu0 0.0
    %868 = vmatprep.subr.mxu0 0.0
    %869 = vmatpush1.msra.mxu0 0.0
    %870 = vmatprep.subr.mxu0 0.0
    %871 = vmatpush1.msra.mxu0 0.0
    %872 = vmatprep.subr.mxu0 0.0
    %873 = vmatpush1.msra.mxu0 0.0
    %874 = vmatprep.subr.mxu0 0.0
    %875 = vmatpush1.msra.mxu0 0.0
    %876 = vmatprep.subr.mxu0 0.0
    %877 = vmatpush1.msra.mxu0 0.0
    %878 = vmatprep.subr.mxu0 0.0
    %879 = vmatpush1.msra.mxu0 0.0
    %880 = vmatprep.subr.mxu0 0.0
    %881 = vmatpush1.msra.mxu0 0.0
    %882 = vmatprep.subr.mxu0 0.0
    %883 = vmatpush1.msra.mxu0 0.0
    %884 = vmatprep.subr.mxu0 0.0
    %885 = vmatpush1.msra.mxu0 0.0
    %886 = vmatprep.subr.mxu0 0.0
    %887 = vmatpush1.msra.mxu0 0.0
    %888 = vmatprep.subr.mxu0 0.0
    %889 = vmatpush1.msra.mxu0 0.0
    %890 = vmatprep.subr.mxu0 0.0
    %891 = vmatpush1.msra.mxu0 0.0
    %892 = vmatprep.subr.mxu0 0.0
    %893 = vmatpush1.msra.mxu0 0.0
    %894 = vmatprep.subr.mxu0 0.0
    %895 = vmatpush1.msra.mxu0 0.0
    %896 = vmatprep.subr.mxu0 0.0
    %897 = vmatpush1.msra.mxu0 0.0
    %898 = vmatprep.subr.mxu0 0.0
    %899 = vmatpush1.msra.mxu0 0.0
    %900 = vmatprep.subr.mxu0 0.0
    %901 = vmatpush1.msra.mxu0 0.0
    %902 = vmatprep.subr.mxu0 0.0
    %903 = vmatpush1.msra.mxu0 0.0
    %904 = vmatprep.mubr.f32.mxu0 0.0
    %905 = vmatmul.mubr.f32.gmra.mrb[0].mxu0 %v838
    %v906 = vpop.f32.mrb[0].mxu0
    %v907 = vadd.f32 0.0, %v906
    %v908 = vpop.f32.mrb[0].mxu0
    %909 = vdwg.mxu0
    %v910 = vadd.f32 %v834, %v907
    %v911 = vtanh.pop %v910
    %v912 = vmul.f32 %v911, 0.5
    %v913 = vadd.f32 %v912, 0.5
    %v914 = vmul.f32 %v913, %v827
    %916 = vrot.lane.b32.xlu0 %v911, 104
    %v917 = vpop.permute.xlu0 %916
    %v919 = vmul.f32 %v913, %v917
    %921 = vrot.lane.b32.xlu0 %v919, 8
    %v922 = vpop.permute.xlu0 %921
    %v924 = vadd.f32 %v914, %v922
    %v925 = vtanh.pop %v924
    %927 = vrot.lane.b32.xlu0 %v925, 8
    %v928 = vpop.permute.xlu0 %927
    %v930 = vmul.f32 %v913, %v928
    %v931 = vld [vmem:[%s5] sm:$0xff]
    %v932 = vld [vmem:[%s4] sm:$0xff]
    %v933 = vld [vmem:[%s6] sm:$0x1]
    %v935 = vlaneseq
    %v936 = vshrl.u32 %v935, 7
    %v937 = vsub.s32 0, %v936
    %v938 = vrot.slane %v933, %v937
    %940 = vmatprep.subr.mxu0 0.0
    %941 = vmatpush1.msra.mxu0 %v932
    %942 = vmatprep.subr.mxu0 0.0
    %943 = vmatpush1.msra.mxu0 0.0
    %944 = vmatprep.subr.mxu0 0.0
    %945 = vmatpush1.msra.mxu0 0.0
    %946 = vmatprep.subr.mxu0 0.0
    %947 = vmatpush1.msra.mxu0 0.0
    %948 = vmatprep.subr.mxu0 0.0
    %949 = vmatpush1.msra.mxu0 0.0
    %950 = vmatprep.subr.mxu0 0.0
    %951 = vmatpush1.msra.mxu0 0.0
    %952 = vmatprep.subr.mxu0 0.0
    %953 = vmatpush1.msra.mxu0 0.0
    %954 = vmatprep.subr.mxu0 0.0
    %955 = vmatpush1.msra.mxu0 0.0
    %956 = vmatprep.subr.mxu0 0.0
    %957 = vmatpush1.msra.mxu0 0.0
    %958 = vmatprep.subr.mxu0 0.0
    %959 = vmatpush1.msra.mxu0 0.0
    %960 = vmatprep.subr.mxu0 0.0
    %961 = vmatpush1.msra.mxu0 0.0
    %962 = vmatprep.subr.mxu0 0.0
    %963 = vmatpush1.msra.mxu0 0.0
    %964 = vmatprep.subr.mxu0 0.0
    %965 = vmatpush1.msra.mxu0 0.0
    %966 = vmatprep.subr.mxu0 0.0
    %967 = vmatpush1.msra.mxu0 0.0
    %968 = vmatprep.subr.mxu0 0.0
    %969 = vmatpush1.msra.mxu0 0.0
    %970 = vmatprep.subr.mxu0 0.0
    %971 = vmatpush1.msra.mxu0 0.0
    %972 = vmatprep.subr.mxu0 0.0
    %973 = vmatpush1.msra.mxu0 0.0
    %974 = vmatprep.subr.mxu0 0.0
    %975 = vmatpush1.msra.mxu0 0.0
    %976 = vmatprep.subr.mxu0 0.0
    %977 = vmatpush1.msra.mxu0 0.0
    %978 = vmatprep.subr.mxu0 0.0
    %979 = vmatpush1.msra.mxu0 0.0
    %980 = vmatprep.subr.mxu0 0.0
    %981 = vmatpush1.msra.mxu0 0.0
    %982 = vmatprep.subr.mxu0 0.0
    %983 = vmatpush1.msra.mxu0 0.0
    %984 = vmatprep.subr.mxu0 0.0
    %985 = vmatpush1.msra.mxu0 0.0
    %986 = vmatprep.subr.mxu0 0.0
    %987 = vmatpush1.msra.mxu0 0.0
    %988 = vmatprep.subr.mxu0 0.0
    %989 = vmatpush1.msra.mxu0 0.0
    %990 = vmatprep.subr.mxu0 0.0
    %991 = vmatpush1.msra.mxu0 0.0
    %992 = vmatprep.subr.mxu0 0.0
    %993 = vmatpush1.msra.mxu0 0.0
    %994 = vmatprep.subr.mxu0 0.0
    %995 = vmatpush1.msra.mxu0 0.0
    %996 = vmatprep.subr.mxu0 0.0
    %997 = vmatpush1.msra.mxu0 0.0
    %998 = vmatprep.subr.mxu0 0.0
    %999 = vmatpush1.msra.mxu0 0.0
    %1000 = vmatprep.subr.mxu0 0.0
    %1001 = vmatpush1.msra.mxu0 0.0
    %1002 = vmatprep.subr.mxu0 0.0
    %1003 = vmatpush1.msra.mxu0 0.0
    %1004 = vmatprep.mubr.f32.mxu0 0.0
    %1005 = vmatmul.mubr.f32.gmra.mrb[0].mxu0 %v256
    %v1006 = vpop.f32.mrb[0].mxu0
    %v1007 = vadd.f32 %v938, %v1006
    %v1008 = vpop.f32.mrb[0].mxu0
    %1009 = vdwg.mxu0
    %1010 = vmatprep.subr.mxu0 0.0
    %1011 = vmatpush1.msra.mxu0 %v931
    %1012 = vmatprep.subr.mxu0 0.0
    %1013 = vmatpush1.msra.mxu0 0.0
    %1014 = vmatprep.subr.mxu0 0.0
    %1015 = vmatpush1.msra.mxu0 0.0
    %1016 = vmatprep.subr.mxu0 0.0
    %1017 = vmatpush1.msra.mxu0 0.0
    %1018 = vmatprep.subr.mxu0 0.0
    %1019 = vmatpush1.msra.mxu0 0.0
    %1020 = vmatprep.subr.mxu0 0.0
    %1021 = vmatpush1.msra.mxu0 0.0
    %1022 = vmatprep.subr.mxu0 0.0
    %1023 = vmatpush1.msra.mxu0 0.0
    %1024 = vmatprep.subr.mxu0 0.0
    %1025 = vmatpush1.msra.mxu0 0.0
    %1026 = vmatprep.subr.mxu0 0.0
    %1027 = vmatpush1.msra.mxu0 0.0
    %1028 = vmatprep.subr.mxu0 0.0
    %1029 = vmatpush1.msra.mxu0 0.0
    %1030 = vmatprep.subr.mxu0 0.0
    %1031 = vmatpush1.msra.mxu0 0.0
    %1032 = vmatprep.subr.mxu0 0.0
    %1033 = vmatpush1.msra.mxu0 0.0
    %1034 = vmatprep.subr.mxu0 0.0
    %1035 = vmatpush1.msra.mxu0 0.0
    %1036 = vmatprep.subr.mxu0 0.0
    %1037 = vmatpush1.msra.mxu0 0.0
    %1038 = vmatprep.subr.mxu0 0.0
    %1039 = vmatpush1.msra.mxu0 0.0
    %1040 = vmatprep.subr.mxu0 0.0
    %1041 = vmatpush1.msra.mxu0 0.0
    %1042 = vmatprep.subr.mxu0 0.0
    %1043 = vmatpush1.msra.mxu0 0.0
    %1044 = vmatprep.subr.mxu0 0.0
    %1045 = vmatpush1.msra.mxu0 0.0
    %1046 = vmatprep.subr.mxu0 0.0
    %1047 = vmatpush1.msra.mxu0 0.0
    %1048 = vmatprep.subr.mxu0 0.0
    %1049 = vmatpush1.msra.mxu0 0.0
    %1050 = vmatprep.subr.mxu0 0.0
    %1051 = vmatpush1.msra.mxu0 0.0
    %1052 = vmatprep.subr.mxu0 0.0
    %1053 = vmatpush1.msra.mxu0 0.0
    %1054 = vmatprep.subr.mxu0 0.0
    %1055 = vmatpush1.msra.mxu0 0.0
    %1056 = vmatprep.subr.mxu0 0.0
    %1057 = vmatpush1.msra.mxu0 0.0
    %1058 = vmatprep.subr.mxu0 0.0
    %1059 = vmatpush1.msra.mxu0 0.0
    %1060 = vmatprep.subr.mxu0 0.0
    %1061 = vmatpush1.msra.mxu0 0.0
    %1062 = vmatprep.subr.mxu0 0.0
    %1063 = vmatpush1.msra.mxu0 0.0
    %1064 = vmatprep.subr.mxu0 0.0
    %1065 = vmatpush1.msra.mxu0 0.0
    %1066 = vmatprep.subr.mxu0 0.0
    %1067 = vmatpush1.msra.mxu0 0.0
    %1068 = vmatprep.subr.mxu0 0.0
    %1069 = vmatpush1.msra.mxu0 0.0
    %1070 = vmatprep.subr.mxu0 0.0
    %1071 = vmatpush1.msra.mxu0 0.0
    %1072 = vmatprep.subr.mxu0 0.0
    %1073 = vmatpush1.msra.mxu0 0.0
    %1074 = vmatprep.mubr.f32.mxu0 0.0
    %1075 = vmatmul.mubr.f32.gmra.mrb[0].mxu0 %v159
    %v1076 = vpop.f32.mrb[0].mxu0
    %v1077 = vadd.f32 0.0, %v1076
    %v1078 = vpop.f32.mrb[0].mxu0
    %1079 = vdwg.mxu0
    %v1080 = vadd.f32 %v1007, %v1077
    %v1081 = vtanh.pop %v1080
    %v1082 = vmul.f32 %v1081, 0.5
    %v1083 = vadd.f32 %v1082, 0.5
    %v1084 = vmul.f32 %v1083, 0.0
    %1086 = vrot.lane.b32.xlu0 %v1081, 104
    %v1087 = vpop.permute.xlu0 %1086
    %v1089 = vmul.f32 %v1083, %v1087
    %1091 = vrot.lane.b32.xlu0 %v1089, 8
    %v1092 = vpop.permute.xlu0 %1091
    %v1094 = vadd.f32 %v1084, %v1092
    %v1095 = vtanh.pop %v1094
    %1097 = vrot.lane.b32.xlu0 %v1095, 8
    %v1098 = vpop.permute.xlu0 %1097
    %v1100 = vmul.f32 %v1083, %v1098
    %v1101 = vld [vmem:[%s7] sm:$0xff]
    %1103 = vrot.lane.b32.xlu0 %v1100, 112
    %v1104 = vpop.permute.xlu0 %1103
    %v1105 = vsel %vm157, %v1104, 0
    %1107 = vmatprep.subr.mxu0 0.0
    %1108 = vmatpush1.msra.mxu0 %v1101
    %1109 = vmatprep.subr.mxu0 0.0
    %1110 = vmatpush1.msra.mxu0 0.0
    %1111 = vmatprep.subr.mxu0 0.0
    %1112 = vmatpush1.msra.mxu0 0.0
    %1113 = vmatprep.subr.mxu0 0.0
    %1114 = vmatpush1.msra.mxu0 0.0
    %1115 = vmatprep.subr.mxu0 0.0
    %1116 = vmatpush1.msra.mxu0 0.0
    %1117 = vmatprep.subr.mxu0 0.0
    %1118 = vmatpush1.msra.mxu0 0.0
    %1119 = vmatprep.subr.mxu0 0.0
    %1120 = vmatpush1.msra.mxu0 0.0
    %1121 = vmatprep.subr.mxu0 0.0
    %1122 = vmatpush1.msra.mxu0 0.0
    %1123 = vmatprep.subr.mxu0 0.0
    %1124 = vmatpush1.msra.mxu0 0.0
    %1125 = vmatprep.subr.mxu0 0.0
    %1126 = vmatpush1.msra.mxu0 0.0
    %1127 = vmatprep.subr.mxu0 0.0
    %1128 = vmatpush1.msra.mxu0 0.0
    %1129 = vmatprep.subr.mxu0 0.0
    %1130 = vmatpush1.msra.mxu0 0.0
    %1131 = vmatprep.subr.mxu0 0.0
    %1132 = vmatpush1.msra.mxu0 0.0
    %1133 = vmatprep.subr.mxu0 0.0
    %1134 = vmatpush1.msra.mxu0 0.0
    %1135 = vmatprep.subr.mxu0 0.0
    %1136 = vmatpush1.msra.mxu0 0.0
    %1137 = vmatprep.subr.mxu0 0.0
    %1138 = vmatpush1.msra.mxu0 0.0
    %1139 = vmatprep.subr.mxu0 0.0
    %1140 = vmatpush1.msra.mxu0 0.0
    %1141 = vmatprep.subr.mxu0 0.0
    %1142 = vmatpush1.msra.mxu0 0.0
    %1143 = vmatprep.subr.mxu0 0.0
    %1144 = vmatpush1.msra.mxu0 0.0
    %1145 = vmatprep.subr.mxu0 0.0
    %1146 = vmatpush1.msra.mxu0 0.0
    %1147 = vmatprep.subr.mxu0 0.0
    %1148 = vmatpush1.msra.mxu0 0.0
    %1149 = vmatprep.subr.mxu0 0.0
    %1150 = vmatpush1.msra.mxu0 0.0
    %1151 = vmatprep.subr.mxu0 0.0
    %1152 = vmatpush1.msra.mxu0 0.0
    %1153 = vmatprep.subr.mxu0 0.0
    %1154 = vmatpush1.msra.mxu0 0.0
    %1155 = vmatprep.subr.mxu0 0.0
    %1156 = vmatpush1.msra.mxu0 0.0
    %1157 = vmatprep.subr.mxu0 0.0
    %1158 = vmatpush1.msra.mxu0 0.0
    %1159 = vmatprep.subr.mxu0 0.0
    %1160 = vmatpush1.msra.mxu0 0.0
    %1161 = vmatprep.subr.mxu0 0.0
    %1162 = vmatpush1.msra.mxu0 0.0
    %1163 = vmatprep.subr.mxu0 0.0
    %1164 = vmatpush1.msra.mxu0 0.0
    %1165 = vmatprep.subr.mxu0 0.0
    %1166 = vmatpush1.msra.mxu0 0.0
    %1167 = vmatprep.subr.mxu0 0.0
    %1168 = vmatpush1.msra.mxu0 0.0
    %1169 = vmatprep.subr.mxu0 0.0
    %1170 = vmatpush1.msra.mxu0 0.0
    %1171 = vmatprep.mubr.f32.mxu0 0.0
    %1172 = vmatmul.mubr.f32.gmra.mrb[0].mxu0 %v1105
    %v1173 = vpop.f32.mrb[0].mxu0
    %v1174 = vadd.f32 0.0, %v1173
    %v1175 = vpop.f32.mrb[0].mxu0
    %1176 = vdwg.mxu0
    %v1177 = vadd.f32 %v153, %v1174
    %1178 = vmatprep.subr.mxu0 0.0
    %1179 = vmatpush1.msra.mxu0 %v932
    %1180 = vmatprep.subr.mxu0 0.0
    %1181 = vmatpush1.msra.mxu0 0.0
    %1182 = vmatprep.subr.mxu0 0.0
    %1183 = vmatpush1.msra.mxu0 0.0
    %1184 = vmatprep.subr.mxu0 0.0
    %1185 = vmatpush1.msra.mxu0 0.0
    %1186 = vmatprep.subr.mxu0 0.0
    %1187 = vmatpush1.msra.mxu0 0.0
    %1188 = vmatprep.subr.mxu0 0.0
    %1189 = vmatpush1.msra.mxu0 0.0
    %1190 = vmatprep.subr.mxu0 0.0
    %1191 = vmatpush1.msra.mxu0 0.0
    %1192 = vmatprep.subr.mxu0 0.0
    %1193 = vmatpush1.msra.mxu0 0.0
    %1194 = vmatprep.subr.mxu0 0.0
    %1195 = vmatpush1.msra.mxu0 0.0
    %1196 = vmatprep.subr.mxu0 0.0
    %1197 = vmatpush1.msra.mxu0 0.0
    %1198 = vmatprep.subr.mxu0 0.0
    %1199 = vmatpush1.msra.mxu0 0.0
    %1200 = vmatprep.subr.mxu0 0.0
    %1201 = vmatpush1.msra.mxu0 0.0
    %1202 = vmatprep.subr.mxu0 0.0
    %1203 = vmatpush1.msra.mxu0 0.0
    %1204 = vmatprep.subr.mxu0 0.0
    %1205 = vmatpush1.msra.mxu0 0.0
    %1206 = vmatprep.subr.mxu0 0.0
    %1207 = vmatpush1.msra.mxu0 0.0
    %1208 = vmatprep.subr.mxu0 0.0
    %1209 = vmatpush1.msra.mxu0 0.0
    %1210 = vmatprep.subr.mxu0 0.0
    %1211 = vmatpush1.msra.mxu0 0.0
    %1212 = vmatprep.subr.mxu0 0.0
    %1213 = vmatpush1.msra.mxu0 0.0
    %1214 = vmatprep.subr.mxu0 0.0
    %1215 = vmatpush1.msra.mxu0 0.0
    %1216 = vmatprep.subr.mxu0 0.0
    %1217 = vmatpush1.msra.mxu0 0.0
    %1218 = vmatprep.subr.mxu0 0.0
    %1219 = vmatpush1.msra.mxu0 0.0
    %1220 = vmatprep.subr.mxu0 0.0
    %1221 = vmatpush1.msra.mxu0 0.0
    %1222 = vmatprep.subr.mxu0 0.0
    %1223 = vmatpush1.msra.mxu0 0.0
    %1224 = vmatprep.subr.mxu0 0.0
    %1225 = vmatpush1.msra.mxu0 0.0
    %1226 = vmatprep.subr.mxu0 0.0
    %1227 = vmatpush1.msra.mxu0 0.0
    %1228 = vmatprep.subr.mxu0 0.0
    %1229 = vmatpush1.msra.mxu0 0.0
    %1230 = vmatprep.subr.mxu0 0.0
    %1231 = vmatpush1.msra.mxu0 0.0
    %1232 = vmatprep.subr.mxu0 0.0
    %1233 = vmatpush1.msra.mxu0 0.0
    %1234 = vmatprep.subr.mxu0 0.0
    %1235 = vmatpush1.msra.mxu0 0.0
    %1236 = vmatprep.subr.mxu0 0.0
    %1237 = vmatpush1.msra.mxu0 0.0
    %1238 = vmatprep.subr.mxu0 0.0
    %1239 = vmatpush1.msra.mxu0 0.0
    %1240 = vmatprep.subr.mxu0 0.0
    %1241 = vmatpush1.msra.mxu0 0.0
    %1242 = vmatprep.mubr.f32.mxu0 0.0
    %1243 = vmatmul.mubr.f32.gmra.mrb[0].mxu0 %v353
    %v1244 = vpop.f32.mrb[0].mxu0
    %v1245 = vadd.f32 %v938, %v1244
    %v1246 = vpop.f32.mrb[0].mxu0
    %1247 = vdwg.mxu0
    %1248 = vmatprep.subr.mxu0 0.0
    %1249 = vmatpush1.msra.mxu0 %v931
    %1250 = vmatprep.subr.mxu0 0.0
    %1251 = vmatpush1.msra.mxu0 0.0
    %1252 = vmatprep.subr.mxu0 0.0
    %1253 = vmatpush1.msra.mxu0 0.0
    %1254 = vmatprep.subr.mxu0 0.0
    %1255 = vmatpush1.msra.mxu0 0.0
    %1256 = vmatprep.subr.mxu0 0.0
    %1257 = vmatpush1.msra.mxu0 0.0
    %1258 = vmatprep.subr.mxu0 0.0
    %1259 = vmatpush1.msra.mxu0 0.0
    %1260 = vmatprep.subr.mxu0 0.0
    %1261 = vmatpush1.msra.mxu0 0.0
    %1262 = vmatprep.subr.mxu0 0.0
    %1263 = vmatpush1.msra.mxu0 0.0
    %1264 = vmatprep.subr.mxu0 0.0
    %1265 = vmatpush1.msra.mxu0 0.0
    %1266 = vmatprep.subr.mxu0 0.0
    %1267 = vmatpush1.msra.mxu0 0.0
    %1268 = vmatprep.subr.mxu0 0.0
    %1269 = vmatpush1.msra.mxu0 0.0
    %1270 = vmatprep.subr.mxu0 0.0
    %1271 = vmatpush1.msra.mxu0 0.0
    %1272 = vmatprep.subr.mxu0 0.0
    %1273 = vmatpush1.msra.mxu0 0.0
    %1274 = vmatprep.subr.mxu0 0.0
    %1275 = vmatpush1.msra.mxu0 0.0
    %1276 = vmatprep.subr.mxu0 0.0
    %1277 = vmatpush1.msra.mxu0 0.0
    %1278 = vmatprep.subr.mxu0 0.0
    %1279 = vmatpush1.msra.mxu0 0.0
    %1280 = vmatprep.subr.mxu0 0.0
    %1281 = vmatpush1.msra.mxu0 0.0
    %1282 = vmatprep.subr.mxu0 0.0
    %1283 = vmatpush1.msra.mxu0 0.0
    %1284 = vmatprep.subr.mxu0 0.0
    %1285 = vmatpush1.msra.mxu0 0.0
    %1286 = vmatprep.subr.mxu0 0.0
    %1287 = vmatpush1.msra.mxu0 0.0
    %1288 = vmatprep.subr.mxu0 0.0
    %1289 = vmatpush1.msra.mxu0 0.0
    %1290 = vmatprep.subr.mxu0 0.0
    %1291 = vmatpush1.msra.mxu0 0.0
    %1292 = vmatprep.subr.mxu0 0.0
    %1293 = vmatpush1.msra.mxu0 0.0
    %1294 = vmatprep.subr.mxu0 0.0
    %1295 = vmatpush1.msra.mxu0 0.0
    %1296 = vmatprep.subr.mxu0 0.0
    %1297 = vmatpush1.msra.mxu0 0.0
    %1298 = vmatprep.subr.mxu0 0.0
    %1299 = vmatpush1.msra.mxu0 0.0
    %1300 = vmatprep.subr.mxu0 0.0
    %1301 = vmatpush1.msra.mxu0 0.0
    %1302 = vmatprep.subr.mxu0 0.0
    %1303 = vmatpush1.msra.mxu0 0.0
    %1304 = vmatprep.subr.mxu0 0.0
    %1305 = vmatpush1.msra.mxu0 0.0
    %1306 = vmatprep.subr.mxu0 0.0
    %1307 = vmatpush1.msra.mxu0 0.0
    %1308 = vmatprep.subr.mxu0 0.0
    %1309 = vmatpush1.msra.mxu0 0.0
    %1310 = vmatprep.subr.mxu0 0.0
    %1311 = vmatpush1.msra.mxu0 0.0
    %1312 = vmatprep.mubr.f32.mxu0 0.0
    %1313 = vmatmul.mubr.f32.gmra.mrb[0].mxu0 %v1105
    %v1314 = vpop.f32.mrb[0].mxu0
    %v1315 = vadd.f32 0.0, %v1314
    %v1316 = vpop.f32.mrb[0].mxu0
    %1317 = vdwg.mxu0
    %v1318 = vadd.f32 %v1245, %v1315
    %v1319 = vtanh.pop %v1318
    %v1320 = vmul.f32 %v1319, 0.5
    %v1321 = vadd.f32 %v1320, 0.5
    %v1322 = vmul.f32 %v1321, %v1094
    %1324 = vrot.lane.b32.xlu0 %v1319, 104
    %v1325 = vpop.permute.xlu0 %1324
    %v1327 = vmul.f32 %v1321, %v1325
    %1329 = vrot.lane.b32.xlu0 %v1327, 8
    %v1330 = vpop.permute.xlu0 %1329
    %v1332 = vadd.f32 %v1322, %v1330
    %v1333 = vtanh.pop %v1332
    %1335 = vrot.lane.b32.xlu0 %v1333, 8
    %v1336 = vpop.permute.xlu0 %1335
    %v1338 = vmul.f32 %v1321, %v1336
    %v1339 = vld [vmem:[%s7 + $0x8] sm:$0xff]
    %1341 = vrot.lane.b32.xlu0 %v1338, 112
    %v1342 = vpop.permute.xlu0 %1341
    %v1343 = vsel %vm157, %v1342, 0
    %1345 = vmatprep.subr.mxu0 0.0
    %1346 = vmatpush1.msra.mxu0 %v1339
    %1347 = vmatprep.subr.mxu0 0.0
    %1348 = vmatpush1.msra.mxu0 0.0
    %1349 = vmatprep.subr.mxu0 0.0
    %1350 = vmatpush1.msra.mxu0 0.0
    %1351 = vmatprep.subr.mxu0 0.0
    %1352 = vmatpush1.msra.mxu0 0.0
    %1353 = vmatprep.subr.mxu0 0.0
    %1354 = vmatpush1.msra.mxu0 0.0
    %1355 = vmatprep.subr.mxu0 0.0
    %1356 = vmatpush1.msra.mxu0 0.0
    %1357 = vmatprep.subr.mxu0 0.0
    %1358 = vmatpush1.msra.mxu0 0.0
    %1359 = vmatprep.subr.mxu0 0.0
    %1360 = vmatpush1.msra.mxu0 0.0
    %1361 = vmatprep.subr.mxu0 0.0
    %1362 = vmatpush1.msra.mxu0 0.0
    %1363 = vmatprep.subr.mxu0 0.0
    %1364 = vmatpush1.msra.mxu0 0.0
    %1365 = vmatprep.subr.mxu0 0.0
    %1366 = vmatpush1.msra.mxu0 0.0
    %1367 = vmatprep.subr.mxu0 0.0
    %1368 = vmatpush1.msra.mxu0 0.0
    %1369 = vmatprep.subr.mxu0 0.0
    %1370 = vmatpush1.msra.mxu0 0.0
    %1371 = vmatprep.subr.mxu0 0.0
    %1372 = vmatpush1.msra.mxu0 0.0
    %1373 = vmatprep.subr.mxu0 0.0
    %1374 = vmatpush1.msra.mxu0 0.0
    %1375 = vmatprep.subr.mxu0 0.0
    %1376 = vmatpush1.msra.mxu0 0.0
    %1377 = vmatprep.subr.mxu0 0.0
    %1378 = vmatpush1.msra.mxu0 0.0
    %1379 = vmatprep.subr.mxu0 0.0
    %1380 = vmatpush1.msra.mxu0 0.0
    %1381 = vmatprep.subr.mxu0 0.0
    %1382 = vmatpush1.msra.mxu0 0.0
    %1383 = vmatprep.subr.mxu0 0.0
    %1384 = vmatpush1.msra.mxu0 0.0
    %1385 = vmatprep.subr.mxu0 0.0
    %1386 = vmatpush1.msra.mxu0 0.0
    %1387 = vmatprep.subr.mxu0 0.0
    %1388 = vmatpush1.msra.mxu0 0.0
    %1389 = vmatprep.subr.mxu0 0.0
    %1390 = vmatpush1.msra.mxu0 0.0
    %1391 = vmatprep.subr.mxu0 0.0
    %1392 = vmatpush1.msra.mxu0 0.0
    %1393 = vmatprep.subr.mxu0 0.0
    %1394 = vmatpush1.msra.mxu0 0.0
    %1395 = vmatprep.subr.mxu0 0.0
    %1396 = vmatpush1.msra.mxu0 0.0
    %1397 = vmatprep.subr.mxu0 0.0
    %1398 = vmatpush1.msra.mxu0 0.0
    %1399 = vmatprep.subr.mxu0 0.0
    %1400 = vmatpush1.msra.mxu0 0.0
    %1401 = vmatprep.subr.mxu0 0.0
    %1402 = vmatpush1.msra.mxu0 0.0
    %1403 = vmatprep.subr.mxu0 0.0
    %1404 = vmatpush1.msra.mxu0 0.0
    %1405 = vmatprep.subr.mxu0 0.0
    %1406 = vmatpush1.msra.mxu0 0.0
    %1407 = vmatprep.subr.mxu0 0.0
    %1408 = vmatpush1.msra.mxu0 0.0
    %1409 = vmatprep.mubr.f32.mxu0 0.0
    %1410 = vmatmul.mubr.f32.gmra.mrb[0].mxu0 %v1343
    %v1411 = vpop.f32.mrb[0].mxu0
    %v1412 = vadd.f32 0.0, %v1411
    %v1413 = vpop.f32.mrb[0].mxu0
    %1414 = vdwg.mxu0
    %v1415 = vadd.f32 %v1177, %v1412
    %1416 = vmatprep.subr.mxu0 0.0
    %1417 = vmatpush1.msra.mxu0 %v932
    %1418 = vmatprep.subr.mxu0 0.0
    %1419 = vmatpush1.msra.mxu0 0.0
    %1420 = vmatprep.subr.mxu0 0.0
    %1421 = vmatpush1.msra.mxu0 0.0
    %1422 = vmatprep.subr.mxu0 0.0
    %1423 = vmatpush1.msra.mxu0 0.0
    %1424 = vmatprep.subr.mxu0 0.0
    %1425 = vmatpush1.msra.mxu0 0.0
    %1426 = vmatprep.subr.mxu0 0.0
    %1427 = vmatpush1.msra.mxu0 0.0
    %1428 = vmatprep.subr.mxu0 0.0
    %1429 = vmatpush1.msra.mxu0 0.0
    %1430 = vmatprep.subr.mxu0 0.0
    %1431 = vmatpush1.msra.mxu0 0.0
    %1432 = vmatprep.subr.mxu0 0.0
    %1433 = vmatpush1.msra.mxu0 0.0
    %1434 = vmatprep.subr.mxu0 0.0
    %1435 = vmatpush1.msra.mxu0 0.0
    %1436 = vmatprep.subr.mxu0 0.0
    %1437 = vmatpush1.msra.mxu0 0.0
    %1438 = vmatprep.subr.mxu0 0.0
    %1439 = vmatpush1.msra.mxu0 0.0
    %1440 = vmatprep.subr.mxu0 0.0
    %1441 = vmatpush1.msra.mxu0 0.0
    %1442 = vmatprep.subr.mxu0 0.0
    %1443 = vmatpush1.msra.mxu0 0.0
    %1444 = vmatprep.subr.mxu0 0.0
    %1445 = vmatpush1.msra.mxu0 0.0
    %1446 = vmatprep.subr.mxu0 0.0
    %1447 = vmatpush1.msra.mxu0 0.0
    %1448 = vmatprep.subr.mxu0 0.0
    %1449 = vmatpush1.msra.mxu0 0.0
    %1450 = vmatprep.subr.mxu0 0.0
    %1451 = vmatpush1.msra.mxu0 0.0
    %1452 = vmatprep.subr.mxu0 0.0
    %1453 = vmatpush1.msra.mxu0 0.0
    %1454 = vmatprep.subr.mxu0 0.0
    %1455 = vmatpush1.msra.mxu0 0.0
    %1456 = vmatprep.subr.mxu0 0.0
    %1457 = vmatpush1.msra.mxu0 0.0
    %1458 = vmatprep.subr.mxu0 0.0
    %1459 = vmatpush1.msra.mxu0 0.0
    %1460 = vmatprep.subr.mxu0 0.0
    %1461 = vmatpush1.msra.mxu0 0.0
    %1462 = vmatprep.subr.mxu0 0.0
    %1463 = vmatpush1.msra.mxu0 0.0
    %1464 = vmatprep.subr.mxu0 0.0
    %1465 = vmatpush1.msra.mxu0 0.0
    %1466 = vmatprep.subr.mxu0 0.0
    %1467 = vmatpush1.msra.mxu0 0.0
    %1468 = vmatprep.subr.mxu0 0.0
    %1469 = vmatpush1.msra.mxu0 0.0
    %1470 = vmatprep.subr.mxu0 0.0
    %1471 = vmatpush1.msra.mxu0 0.0
    %1472 = vmatprep.subr.mxu0 0.0
    %1473 = vmatpush1.msra.mxu0 0.0
    %1474 = vmatprep.subr.mxu0 0.0
    %1475 = vmatpush1.msra.mxu0 0.0
    %1476 = vmatprep.subr.mxu0 0.0
    %1477 = vmatpush1.msra.mxu0 0.0
    %1478 = vmatprep.subr.mxu0 0.0
    %1479 = vmatpush1.msra.mxu0 0.0
    %1480 = vmatprep.mubr.f32.mxu0 0.0
    %1481 = vmatmul.mubr.f32.gmra.mrb[0].mxu0 %v450
    %v1482 = vpop.f32.mrb[0].mxu0
    %v1483 = vadd.f32 %v938, %v1482
    %v1484 = vpop.f32.mrb[0].mxu0
    %1485 = vdwg.mxu0
    %1486 = vmatprep.subr.mxu0 0.0
    %1487 = vmatpush1.msra.mxu0 %v931
    %1488 = vmatprep.subr.mxu0 0.0
    %1489 = vmatpush1.msra.mxu0 0.0
    %1490 = vmatprep.subr.mxu0 0.0
    %1491 = vmatpush1.msra.mxu0 0.0
    %1492 = vmatprep.subr.mxu0 0.0
    %1493 = vmatpush1.msra.mxu0 0.0
    %1494 = vmatprep.subr.mxu0 0.0
    %1495 = vmatpush1.msra.mxu0 0.0
    %1496 = vmatprep.subr.mxu0 0.0
    %1497 = vmatpush1.msra.mxu0 0.0
    %1498 = vmatprep.subr.mxu0 0.0
    %1499 = vmatpush1.msra.mxu0 0.0
    %1500 = vmatprep.subr.mxu0 0.0
    %1501 = vmatpush1.msra.mxu0 0.0
    %1502 = vmatprep.subr.mxu0 0.0
    %1503 = vmatpush1.msra.mxu0 0.0
    %1504 = vmatprep.subr.mxu0 0.0
    %1505 = vmatpush1.msra.mxu0 0.0
    %1506 = vmatprep.subr.mxu0 0.0
    %1507 = vmatpush1.msra.mxu0 0.0
    %1508 = vmatprep.subr.mxu0 0.0
    %1509 = vmatpush1.msra.mxu0 0.0
    %1510 = vmatprep.subr.mxu0 0.0
    %1511 = vmatpush1.msra.mxu0 0.0
    %1512 = vmatprep.subr.mxu0 0.0
    %1513 = vmatpush1.msra.mxu0 0.0
    %1514 = vmatprep.subr.mxu0 0.0
    %1515 = vmatpush1.msra.mxu0 0.0
    %1516 = vmatprep.subr.mxu0 0.0
    %1517 = vmatpush1.msra.mxu0 0.0
    %1518 = vmatprep.subr.mxu0 0.0
    %1519 = vmatpush1.msra.mxu0 0.0
    %1520 = vmatprep.subr.mxu0 0.0
    %1521 = vmatpush1.msra.mxu0 0.0
    %1522 = vmatprep.subr.mxu0 0.0
    %1523 = vmatpush1.msra.mxu0 0.0
    %1524 = vmatprep.subr.mxu0 0.0
    %1525 = vmatpush1.msra.mxu0 0.0
    %1526 = vmatprep.subr.mxu0 0.0
    %1527 = vmatpush1.msra.mxu0 0.0
    %1528 = vmatprep.subr.mxu0 0.0
    %1529 = vmatpush1.msra.mxu0 0.0
    %1530 = vmatprep.subr.mxu0 0.0
    %1531 = vmatpush1.msra.mxu0 0.0
    %1532 = vmatprep.subr.mxu0 0.0
    %1533 = vmatpush1.msra.mxu0 0.0
    %1534 = vmatprep.subr.mxu0 0.0
    %1535 = vmatpush1.msra.mxu0 0.0
    %1536 = vmatprep.subr.mxu0 0.0
    %1537 = vmatpush1.msra.mxu0 0.0
    %1538 = vmatprep.subr.mxu0 0.0
    %1539 = vmatpush1.msra.mxu0 0.0
    %1540 = vmatprep.subr.mxu0 0.0
    %1541 = vmatpush1.msra.mxu0 0.0
    %1542 = vmatprep.subr.mxu0 0.0
    %1543 = vmatpush1.msra.mxu0 0.0
    %1544 = vmatprep.subr.mxu0 0.0
    %1545 = vmatpush1.msra.mxu0 0.0
    %1546 = vmatprep.subr.mxu0 0.0
    %1547 = vmatpush1.msra.mxu0 0.0
    %1548 = vmatprep.subr.mxu0 0.0
    %1549 = vmatpush1.msra.mxu0 0.0
    %1550 = vmatprep.mubr.f32.mxu0 0.0
    %1551 = vmatmul.mubr.f32.gmra.mrb[0].mxu0 %v1343
    %v1552 = vpop.f32.mrb[0].mxu0
    %v1553 = vadd.f32 0.0, %v1552
    %v1554 = vpop.f32.mrb[0].mxu0
    %1555 = vdwg.mxu0
    %v1556 = vadd.f32 %v1483, %v1553
    %v1557 = vtanh.pop %v1556
    %v1558 = vmul.f32 %v1557, 0.5
    %v1559 = vadd.f32 %v1558, 0.5
    %v1560 = vmul.f32 %v1559, %v1332
    %1562 = vrot.lane.b32.xlu0 %v1557, 104
    %v1563 = vpop.permute.xlu0 %1562
    %v1565 = vmul.f32 %v1559, %v1563
    %1567 = vrot.lane.b32.xlu0 %v1565, 8
    %v1568 = vpop.permute.xlu0 %1567
    %v1570 = vadd.f32 %v1560, %v1568
    %v1571 = vtanh.pop %v1570
    %1573 = vrot.lane.b32.xlu0 %v1571, 8
    %v1574 = vpop.permute.xlu0 %1573
    %v1576 = vmul.f32 %v1559, %v1574
    %v1577 = vld [vmem:[%s7 + $0x10] sm:$0xff]
    %1579 = vrot.lane.b32.xlu0 %v1576, 112
    %v1580 = vpop.permute.xlu0 %1579
    %v1581 = vsel %vm157, %v1580, 0
    %1583 = vmatprep.subr.mxu0 0.0
    %1584 = vmatpush1.msra.mxu0 %v1577
    %1585 = vmatprep.subr.mxu0 0.0
    %1586 = vmatpush1.msra.mxu0 0.0
    %1587 = vmatprep.subr.mxu0 0.0
    %1588 = vmatpush1.msra.mxu0 0.0
    %1589 = vmatprep.subr.mxu0 0.0
    %1590 = vmatpush1.msra.mxu0 0.0
    %1591 = vmatprep.subr.mxu0 0.0
    %1592 = vmatpush1.msra.mxu0 0.0
    %1593 = vmatprep.subr.mxu0 0.0
    %1594 = vmatpush1.msra.mxu0 0.0
    %1595 = vmatprep.subr.mxu0 0.0
    %1596 = vmatpush1.msra.mxu0 0.0
    %1597 = vmatprep.subr.mxu0 0.0
    %1598 = vmatpush1.msra.mxu0 0.0
    %1599 = vmatprep.subr.mxu0 0.0
    %1600 = vmatpush1.msra.mxu0 0.0
    %1601 = vmatprep.subr.mxu0 0.0
    %1602 = vmatpush1.msra.mxu0 0.0
    %1603 = vmatprep.subr.mxu0 0.0
    %1604 = vmatpush1.msra.mxu0 0.0
    %1605 = vmatprep.subr.mxu0 0.0
    %1606 = vmatpush1.msra.mxu0 0.0
    %1607 = vmatprep.subr.mxu0 0.0
    %1608 = vmatpush1.msra.mxu0 0.0
    %1609 = vmatprep.subr.mxu0 0.0
    %1610 = vmatpush1.msra.mxu0 0.0
    %1611 = vmatprep.subr.mxu0 0.0
    %1612 = vmatpush1.msra.mxu0 0.0
    %1613 = vmatprep.subr.mxu0 0.0
    %1614 = vmatpush1.msra.mxu0 0.0
    %1615 = vmatprep.subr.mxu0 0.0
    %1616 = vmatpush1.msra.mxu0 0.0
    %1617 = vmatprep.subr.mxu0 0.0
    %1618 = vmatpush1.msra.mxu0 0.0
    %1619 = vmatprep.subr.mxu0 0.0
    %1620 = vmatpush1.msra.mxu0 0.0
    %1621 = vmatprep.subr.mxu0 0.0
    %1622 = vmatpush1.msra.mxu0 0.0
    %1623 = vmatprep.subr.mxu0 0.0
    %1624 = vmatpush1.msra.mxu0 0.0
    %1625 = vmatprep.subr.mxu0 0.0
    %1626 = vmatpush1.msra.mxu0 0.0
    %1627 = vmatprep.subr.mxu0 0.0
    %1628 = vmatpush1.msra.mxu0 0.0
    %1629 = vmatprep.subr.mxu0 0.0
    %1630 = vmatpush1.msra.mxu0 0.0
    %1631 = vmatprep.subr.mxu0 0.0
    %1632 = vmatpush1.msra.mxu0 0.0
    %1633 = vmatprep.subr.mxu0 0.0
    %1634 = vmatpush1.msra.mxu0 0.0
    %1635 = vmatprep.subr.mxu0 0.0
    %1636 = vmatpush1.msra.mxu0 0.0
    %1637 = vmatprep.subr.mxu0 0.0
    %1638 = vmatpush1.msra.mxu0 0.0
    %1639 = vmatprep.subr.mxu0 0.0
    %1640 = vmatpush1.msra.mxu0 0.0
    %1641 = vmatprep.subr.mxu0 0.0
    %1642 = vmatpush1.msra.mxu0 0.0
    %1643 = vmatprep.subr.mxu0 0.0
    %1644 = vmatpush1.msra.mxu0 0.0
    %1645 = vmatprep.subr.mxu0 0.0
    %1646 = vmatpush1.msra.mxu0 0.0
    %1647 = vmatprep.mubr.f32.mxu0 0.0
    %1648 = vmatmul.mubr.f32.gmra.mrb[0].mxu0 %v1581
    %v1649 = vpop.f32.mrb[0].mxu0
    %v1650 = vadd.f32 0.0, %v1649
    %v1651 = vpop.f32.mrb[0].mxu0
    %1652 = vdwg.mxu0
    %v1653 = vadd.f32 %v1415, %v1650
    %1654 = vmatprep.subr.mxu0 0.0
    %1655 = vmatpush1.msra.mxu0 %v932
    %1656 = vmatprep.subr.mxu0 0.0
    %1657 = vmatpush1.msra.mxu0 0.0
    %1658 = vmatprep.subr.mxu0 0.0
    %1659 = vmatpush1.msra.mxu0 0.0
    %1660 = vmatprep.subr.mxu0 0.0
    %1661 = vmatpush1.msra.mxu0 0.0
    %1662 = vmatprep.subr.mxu0 0.0
    %1663 = vmatpush1.msra.mxu0 0.0
    %1664 = vmatprep.subr.mxu0 0.0
    %1665 = vmatpush1.msra.mxu0 0.0
    %1666 = vmatprep.subr.mxu0 0.0
    %1667 = vmatpush1.msra.mxu0 0.0
    %1668 = vmatprep.subr.mxu0 0.0
    %1669 = vmatpush1.msra.mxu0 0.0
    %1670 = vmatprep.subr.mxu0 0.0
    %1671 = vmatpush1.msra.mxu0 0.0
    %1672 = vmatprep.subr.mxu0 0.0
    %1673 = vmatpush1.msra.mxu0 0.0
    %1674 = vmatprep.subr.mxu0 0.0
    %1675 = vmatpush1.msra.mxu0 0.0
    %1676 = vmatprep.subr.mxu0 0.0
    %1677 = vmatpush1.msra.mxu0 0.0
    %1678 = vmatprep.subr.mxu0 0.0
    %1679 = vmatpush1.msra.mxu0 0.0
    %1680 = vmatprep.subr.mxu0 0.0
    %1681 = vmatpush1.msra.mxu0 0.0
    %1682 = vmatprep.subr.mxu0 0.0
    %1683 = vmatpush1.msra.mxu0 0.0
    %1684 = vmatprep.subr.mxu0 0.0
    %1685 = vmatpush1.msra.mxu0 0.0
    %1686 = vmatprep.subr.mxu0 0.0
    %1687 = vmatpush1.msra.mxu0 0.0
    %1688 = vmatprep.subr.mxu0 0.0
    %1689 = vmatpush1.msra.mxu0 0.0
    %1690 = vmatprep.subr.mxu0 0.0
    %1691 = vmatpush1.msra.mxu0 0.0
    %1692 = vmatprep.subr.mxu0 0.0
    %1693 = vmatpush1.msra.mxu0 0.0
    %1694 = vmatprep.subr.mxu0 0.0
    %1695 = vmatpush1.msra.mxu0 0.0
    %1696 = vmatprep.subr.mxu0 0.0
    %1697 = vmatpush1.msra.mxu0 0.0
    %1698 = vmatprep.subr.mxu0 0.0
    %1699 = vmatpush1.msra.mxu0 0.0
    %1700 = vmatprep.subr.mxu0 0.0
    %1701 = vmatpush1.msra.mxu0 0.0
    %1702 = vmatprep.subr.mxu0 0.0
    %1703 = vmatpush1.msra.mxu0 0.0
    %1704 = vmatprep.subr.mxu0 0.0
    %1705 = vmatpush1.msra.mxu0 0.0
    %1706 = vmatprep.subr.mxu0 0.0
    %1707 = vmatpush1.msra.mxu0 0.0
    %1708 = vmatprep.subr.mxu0 0.0
    %1709 = vmatpush1.msra.mxu0 0.0
    %1710 = vmatprep.subr.mxu0 0.0
    %1711 = vmatpush1.msra.mxu0 0.0
    %1712 = vmatprep.subr.mxu0 0.0
    %1713 = vmatpush1.msra.mxu0 0.0
    %1714 = vmatprep.subr.mxu0 0.0
    %1715 = vmatpush1.msra.mxu0 0.0
    %1716 = vmatprep.subr.mxu0 0.0
    %1717 = vmatpush1.msra.mxu0 0.0
    %1718 = vmatprep.mubr.f32.mxu0 0.0
    %1719 = vmatmul.mubr.f32.gmra.mrb[0].mxu0 %v547
    %v1720 = vpop.f32.mrb[0].mxu0
    %v1721 = vadd.f32 %v938, %v1720
    %v1722 = vpop.f32.mrb[0].mxu0
    %1723 = vdwg.mxu0
    %1724 = vmatprep.subr.mxu0 0.0
    %1725 = vmatpush1.msra.mxu0 %v931
    %1726 = vmatprep.subr.mxu0 0.0
    %1727 = vmatpush1.msra.mxu0 0.0
    %1728 = vmatprep.subr.mxu0 0.0
    %1729 = vmatpush1.msra.mxu0 0.0
    %1730 = vmatprep.subr.mxu0 0.0
    %1731 = vmatpush1.msra.mxu0 0.0
    %1732 = vmatprep.subr.mxu0 0.0
    %1733 = vmatpush1.msra.mxu0 0.0
    %1734 = vmatprep.subr.mxu0 0.0
    %1735 = vmatpush1.msra.mxu0 0.0
    %1736 = vmatprep.subr.mxu0 0.0
    %1737 = vmatpush1.msra.mxu0 0.0
    %1738 = vmatprep.subr.mxu0 0.0
    %1739 = vmatpush1.msra.mxu0 0.0
    %1740 = vmatprep.subr.mxu0 0.0
    %1741 = vmatpush1.msra.mxu0 0.0
    %1742 = vmatprep.subr.mxu0 0.0
    %1743 = vmatpush1.msra.mxu0 0.0
    %1744 = vmatprep.subr.mxu0 0.0
    %1745 = vmatpush1.msra.mxu0 0.0
    %1746 = vmatprep.subr.mxu0 0.0
    %1747 = vmatpush1.msra.mxu0 0.0
    %1748 = vmatprep.subr.mxu0 0.0
    %1749 = vmatpush1.msra.mxu0 0.0
    %1750 = vmatprep.subr.mxu0 0.0
    %1751 = vmatpush1.msra.mxu0 0.0
    %1752 = vmatprep.subr.mxu0 0.0
    %1753 = vmatpush1.msra.mxu0 0.0
    %1754 = vmatprep.subr.mxu0 0.0
    %1755 = vmatpush1.msra.mxu0 0.0
    %1756 = vmatprep.subr.mxu0 0.0
    %1757 = vmatpush1.msra.mxu0 0.0
    %1758 = vmatprep.subr.mxu0 0.0
    %1759 = vmatpush1.msra.mxu0 0.0
    %1760 = vmatprep.subr.mxu0 0.0
    %1761 = vmatpush1.msra.mxu0 0.0
    %1762 = vmatprep.subr.mxu0 0.0
    %1763 = vmatpush1.msra.mxu0 0.0
    %1764 = vmatprep.subr.mxu0 0.0
    %1765 = vmatpush1.msra.mxu0 0.0
    %1766 = vmatprep.subr.mxu0 0.0
    %1767 = vmatpush1.msra.mxu0 0.0
    %1768 = vmatprep.subr.mxu0 0.0
    %1769 = vmatpush1.msra.mxu0 0.0
    %1770 = vmatprep.subr.mxu0 0.0
    %1771 = vmatpush1.msra.mxu0 0.0
    %1772 = vmatprep.subr.mxu0 0.0
    %1773 = vmatpush1.msra.mxu0 0.0
    %1774 = vmatprep.subr.mxu0 0.0
    %1775 = vmatpush1.msra.mxu0 0.0
    %1776 = vmatprep.subr.mxu0 0.0
    %1777 = vmatpush1.msra.mxu0 0.0
    %1778 = vmatprep.subr.mxu0 0.0
    %1779 = vmatpush1.msra.mxu0 0.0
    %1780 = vmatprep.subr.mxu0 0.0
    %1781 = vmatpush1.msra.mxu0 0.0
    %1782 = vmatprep.subr.mxu0 0.0
    %1783 = vmatpush1.msra.mxu0 0.0
    %1784 = vmatprep.subr.mxu0 0.0
    %1785 = vmatpush1.msra.mxu0 0.0
    %1786 = vmatprep.subr.mxu0 0.0
    %1787 = vmatpush1.msra.mxu0 0.0
    %1788 = vmatprep.mubr.f32.mxu0 0.0
    %1789 = vmatmul.mubr.f32.gmra.mrb[0].mxu0 %v1581
    %v1790 = vpop.f32.mrb[0].mxu0
    %v1791 = vadd.f32 0.0, %v1790
    %v1792 = vpop.f32.mrb[0].mxu0
    %1793 = vdwg.mxu0
    %v1794 = vadd.f32 %v1721, %v1791
    %v1795 = vtanh.pop %v1794
    %v1796 = vmul.f32 %v1795, 0.5
    %v1797 = vadd.f32 %v1796, 0.5
    %v1798 = vmul.f32 %v1797, %v1570
    %1800 = vrot.lane.b32.xlu0 %v1795, 104
    %v1801 = vpop.permute.xlu0 %1800
    %v1803 = vmul.f32 %v1797, %v1801
    %1805 = vrot.lane.b32.xlu0 %v1803, 8
    %v1806 = vpop.permute.xlu0 %1805
    %v1808 = vadd.f32 %v1798, %v1806
    %v1809 = vtanh.pop %v1808
    %1811 = vrot.lane.b32.xlu0 %v1809, 8
    %v1812 = vpop.permute.xlu0 %1811
    %v1814 = vmul.f32 %v1797, %v1812
    %v1815 = vld [vmem:[%s7 + $0x18] sm:$0xff]
    %1817 = vrot.lane.b32.xlu0 %v1814, 112
    %v1818 = vpop.permute.xlu0 %1817
    %v1819 = vsel %vm157, %v1818, 0
    %1821 = vmatprep.subr.mxu0 0.0
    %1822 = vmatpush1.msra.mxu0 %v1815
    %1823 = vmatprep.subr.mxu0 0.0
    %1824 = vmatpush1.msra.mxu0 0.0
    %1825 = vmatprep.subr.mxu0 0.0
    %1826 = vmatpush1.msra.mxu0 0.0
    %1827 = vmatprep.subr.mxu0 0.0
    %1828 = vmatpush1.msra.mxu0 0.0
    %1829 = vmatprep.subr.mxu0 0.0
    %1830 = vmatpush1.msra.mxu0 0.0
    %1831 = vmatprep.subr.mxu0 0.0
    %1832 = vmatpush1.msra.mxu0 0.0
    %1833 = vmatprep.subr.mxu0 0.0
    %1834 = vmatpush1.msra.mxu0 0.0
    %1835 = vmatprep.subr.mxu0 0.0
    %1836 = vmatpush1.msra.mxu0 0.0
    %1837 = vmatprep.subr.mxu0 0.0
    %1838 = vmatpush1.msra.mxu0 0.0
    %1839 = vmatprep.subr.mxu0 0.0
    %1840 = vmatpush1.msra.mxu0 0.0
    %1841 = vmatprep.subr.mxu0 0.0
    %1842 = vmatpush1.msra.mxu0 0.0
    %1843 = vmatprep.subr.mxu0 0.0
    %1844 = vmatpush1.msra.mxu0 0.0
    %1845 = vmatprep.subr.mxu0 0.0
    %1846 = vmatpush1.msra.mxu0 0.0
    %1847 = vmatprep.subr.mxu0 0.0
    %1848 = vmatpush1.msra.mxu0 0.0
    %1849 = vmatprep.subr.mxu0 0.0
    %1850 = vmatpush1.msra.mxu0 0.0
    %1851 = vmatprep.subr.mxu0 0.0
    %1852 = vmatpush1.msra.mxu0 0.0
    %1853 = vmatprep.subr.mxu0 0.0
    %1854 = vmatpush1.msra.mxu0 0.0
    %1855 = vmatprep.subr.mxu0 0.0
    %1856 = vmatpush1.msra.mxu0 0.0
    %1857 = vmatprep.subr.mxu0 0.0
    %1858 = vmatpush1.msra.mxu0 0.0
    %1859 = vmatprep.subr.mxu0 0.0
    %1860 = vmatpush1.msra.mxu0 0.0
    %1861 = vmatprep.subr.mxu0 0.0
    %1862 = vmatpush1.msra.mxu0 0.0
    %1863 = vmatprep.subr.mxu0 0.0
    %1864 = vmatpush1.msra.mxu0 0.0
    %1865 = vmatprep.subr.mxu0 0.0
    %1866 = vmatpush1.msra.mxu0 0.0
    %1867 = vmatprep.subr.mxu0 0.0
    %1868 = vmatpush1.msra.mxu0 0.0
    %1869 = vmatprep.subr.mxu0 0.0
    %1870 = vmatpush1.msra.mxu0 0.0
    %1871 = vmatprep.subr.mxu0 0.0
    %1872 = vmatpush1.msra.mxu0 0.0
    %1873 = vmatprep.subr.mxu0 0.0
    %1874 = vmatpush1.msra.mxu0 0.0
    %1875 = vmatprep.subr.mxu0 0.0
    %1876 = vmatpush1.msra.mxu0 0.0
    %1877 = vmatprep.subr.mxu0 0.0
    %1878 = vmatpush1.msra.mxu0 0.0
    %1879 = vmatprep.subr.mxu0 0.0
    %1880 = vmatpush1.msra.mxu0 0.0
    %1881 = vmatprep.subr.mxu0 0.0
    %1882 = vmatpush1.msra.mxu0 0.0
    %1883 = vmatprep.subr.mxu0 0.0
    %1884 = vmatpush1.msra.mxu0 0.0
    %1885 = vmatprep.mubr.f32.mxu0 0.0
    %1886 = vmatmul.mubr.f32.gmra.mrb[0].mxu0 %v1819
    %v1887 = vpop.f32.mrb[0].mxu0
    %v1888 = vadd.f32 0.0, %v1887
    %v1889 = vpop.f32.mrb[0].mxu0
    %1890 = vdwg.mxu0
    %v1891 = vadd.f32 %v1653, %v1888
    %1892 = vmatprep.subr.mxu0 0.0
    %1893 = vmatpush1.msra.mxu0 %v932
    %1894 = vmatprep.subr.mxu0 0.0
    %1895 = vmatpush1.msra.mxu0 0.0
    %1896 = vmatprep.subr.mxu0 0.0
    %1897 = vmatpush1.msra.mxu0 0.0
    %1898 = vmatprep.subr.mxu0 0.0
    %1899 = vmatpush1.msra.mxu0 0.0
    %1900 = vmatprep.subr.mxu0 0.0
    %1901 = vmatpush1.msra.mxu0 0.0
    %1902 = vmatprep.subr.mxu0 0.0
    %1903 = vmatpush1.msra.mxu0 0.0
    %1904 = vmatprep.subr.mxu0 0.0
    %1905 = vmatpush1.msra.mxu0 0.0
    %1906 = vmatprep.subr.mxu0 0.0
    %1907 = vmatpush1.msra.mxu0 0.0
    %1908 = vmatprep.subr.mxu0 0.0
    %1909 = vmatpush1.msra.mxu0 0.0
    %1910 = vmatprep.subr.mxu0 0.0
    %1911 = vmatpush1.msra.mxu0 0.0
    %1912 = vmatprep.subr.mxu0 0.0
    %1913 = vmatpush1.msra.mxu0 0.0
    %1914 = vmatprep.subr.mxu0 0.0
    %1915 = vmatpush1.msra.mxu0 0.0
    %1916 = vmatprep.subr.mxu0 0.0
    %1917 = vmatpush1.msra.mxu0 0.0
    %1918 = vmatprep.subr.mxu0 0.0
    %1919 = vmatpush1.msra.mxu0 0.0
    %1920 = vmatprep.subr.mxu0 0.0
    %1921 = vmatpush1.msra.mxu0 0.0
    %1922 = vmatprep.subr.mxu0 0.0
    %1923 = vmatpush1.msra.mxu0 0.0
    %1924 = vmatprep.subr.mxu0 0.0
    %1925 = vmatpush1.msra.mxu0 0.0
    %1926 = vmatprep.subr.mxu0 0.0
    %1927 = vmatpush1.msra.mxu0 0.0
    %1928 = vmatprep.subr.mxu0 0.0
    %1929 = vmatpush1.msra.mxu0 0.0
    %1930 = vmatprep.subr.mxu0 0.0
    %1931 = vmatpush1.msra.mxu0 0.0
    %1932 = vmatprep.subr.mxu0 0.0
    %1933 = vmatpush1.msra.mxu0 0.0
    %1934 = vmatprep.subr.mxu0 0.0
    %1935 = vmatpush1.msra.mxu0 0.0
    %1936 = vmatprep.subr.mxu0 0.0
    %1937 = vmatpush1.msra.mxu0 0.0
    %1938 = vmatprep.subr.mxu0 0.0
    %1939 = vmatpush1.msra.mxu0 0.0
    %1940 = vmatprep.subr.mxu0 0.0
    %1941 = vmatpush1.msra.mxu0 0.0
    %1942 = vmatprep.subr.mxu0 0.0
    %1943 = vmatpush1.msra.mxu0 0.0
    %1944 = vmatprep.subr.mxu0 0.0
    %1945 = vmatpush1.msra.mxu0 0.0
    %1946 = vmatprep.subr.mxu0 0.0
    %1947 = vmatpush1.msra.mxu0 0.0
    %1948 = vmatprep.subr.mxu0 0.0
    %1949 = vmatpush1.msra.mxu0 0.0
    %1950 = vmatprep.subr.mxu0 0.0
    %1951 = vmatpush1.msra.mxu0 0.0
    %1952 = vmatprep.subr.mxu0 0.0
    %1953 = vmatpush1.msra.mxu0 0.0
    %1954 = vmatprep.subr.mxu0 0.0
    %1955 = vmatpush1.msra.mxu0 0.0
    %1956 = vmatprep.mubr.f32.mxu0 0.0
    %1957 = vmatmul.mubr.f32.gmra.mrb[0].mxu0 %v644
    %v1958 = vpop.f32.mrb[0].mxu0
    %v1959 = vadd.f32 %v938, %v1958
    %v1960 = vpop.f32.mrb[0].mxu0
    %1961 = vdwg.mxu0
    %1962 = vmatprep.subr.mxu0 0.0
    %1963 = vmatpush1.msra.mxu0 %v931
    %1964 = vmatprep.subr.mxu0 0.0
    %1965 = vmatpush1.msra.mxu0 0.0
    %1966 = vmatprep.subr.mxu0 0.0
    %1967 = vmatpush1.msra.mxu0 0.0
    %1968 = vmatprep.subr.mxu0 0.0
    %1969 = vmatpush1.msra.mxu0 0.0
    %1970 = vmatprep.subr.mxu0 0.0
    %1971 = vmatpush1.msra.mxu0 0.0
    %1972 = vmatprep.subr.mxu0 0.0
    %1973 = vmatpush1.msra.mxu0 0.0
    %1974 = vmatprep.subr.mxu0 0.0
    %1975 = vmatpush1.msra.mxu0 0.0
    %1976 = vmatprep.subr.mxu0 0.0
    %1977 = vmatpush1.msra.mxu0 0.0
    %1978 = vmatprep.subr.mxu0 0.0
    %1979 = vmatpush1.msra.mxu0 0.0
    %1980 = vmatprep.subr.mxu0 0.0
    %1981 = vmatpush1.msra.mxu0 0.0
    %1982 = vmatprep.subr.mxu0 0.0
    %1983 = vmatpush1.msra.mxu0 0.0
    %1984 = vmatprep.subr.mxu0 0.0
    %1985 = vmatpush1.msra.mxu0 0.0
    %1986 = vmatprep.subr.mxu0 0.0
    %1987 = vmatpush1.msra.mxu0 0.0
    %1988 = vmatprep.subr.mxu0 0.0
    %1989 = vmatpush1.msra.mxu0 0.0
    %1990 = vmatprep.subr.mxu0 0.0
    %1991 = vmatpush1.msra.mxu0 0.0
    %1992 = vmatprep.subr.mxu0 0.0
    %1993 = vmatpush1.msra.mxu0 0.0
    %1994 = vmatprep.subr.mxu0 0.0
    %1995 = vmatpush1.msra.mxu0 0.0
    %1996 = vmatprep.subr.mxu0 0.0
    %1997 = vmatpush1.msra.mxu0 0.0
    %1998 = vmatprep.subr.mxu0 0.0
    %1999 = vmatpush1.msra.mxu0 0.0
    %2000 = vmatprep.subr.mxu0 0.0
    %2001 = vmatpush1.msra.mxu0 0.0
    %2002 = vmatprep.subr.mxu0 0.0
    %2003 = vmatpush1.msra.mxu0 0.0
    %2004 = vmatprep.subr.mxu0 0.0
    %2005 = vmatpush1.msra.mxu0 0.0
    %2006 = vmatprep.subr.mxu0 0.0
    %2007 = vmatpush1.msra.mxu0 0.0
    %2008 = vmatprep.subr.mxu0 0.0
    %2009 = vmatpush1.msra.mxu0 0.0
    %2010 = vmatprep.subr.mxu0 0.0
    %2011 = vmatpush1.msra.mxu0 0.0
    %2012 = vmatprep.subr.mxu0 0.0
    %2013 = vmatpush1.msra.mxu0 0.0
    %2014 = vmatprep.subr.mxu0 0.0
    %2015 = vmatpush1.msra.mxu0 0.0
    %2016 = vmatprep.subr.mxu0 0.0
    %2017 = vmatpush1.msra.mxu0 0.0
    %2018 = vmatprep.subr.mxu0 0.0
    %2019 = vmatpush1.msra.mxu0 0.0
    %2020 = vmatprep.subr.mxu0 0.0
    %2021 = vmatpush1.msra.mxu0 0.0
    %2022 = vmatprep.subr.mxu0 0.0
    %2023 = vmatpush1.msra.mxu0 0.0
    %2024 = vmatprep.subr.mxu0 0.0
    %2025 = vmatpush1.msra.mxu0 0.0
    %2026 = vmatprep.mubr.f32.mxu0 0.0
    %2027 = vmatmul.mubr.f32.gmra.mrb[0].mxu0 %v1819
    %v2028 = vpop.f32.mrb[0].mxu0
    %v2029 = vadd.f32 0.0, %v2028
    %v2030 = vpop.f32.mrb[0].mxu0
    %2031 = vdwg.mxu0
    %v2032 = vadd.f32 %v1959, %v2029
    %v2033 = vtanh.pop %v2032
    %v2034 = vmul.f32 %v2033, 0.5
    %v2035 = vadd.f32 %v2034, 0.5
    %v2036 = vmul.f32 %v2035, %v1808
    %2038 = vrot.lane.b32.xlu0 %v2033, 104
    %v2039 = vpop.permute.xlu0 %2038
    %v2041 = vmul.f32 %v2035, %v2039
    %2043 = vrot.lane.b32.xlu0 %v2041, 8
    %v2044 = vpop.permute.xlu0 %2043
    %v2046 = vadd.f32 %v2036, %v2044
    %v2047 = vtanh.pop %v2046
    %2049 = vrot.lane.b32.xlu0 %v2047, 8
    %v2050 = vpop.permute.xlu0 %2049
    %v2052 = vmul.f32 %v2035, %v2050
    %v2053 = vld [vmem:[%s7 + $0x20] sm:$0xff]
    %2055 = vrot.lane.b32.xlu0 %v2052, 112
    %v2056 = vpop.permute.xlu0 %2055
    %v2057 = vsel %vm157, %v2056, 0
    %2059 = vmatprep.subr.mxu0 0.0
    %2060 = vmatpush1.msra.mxu0 %v2053
    %2061 = vmatprep.subr.mxu0 0.0
    %2062 = vmatpush1.msra.mxu0 0.0
    %2063 = vmatprep.subr.mxu0 0.0
    %2064 = vmatpush1.msra.mxu0 0.0
    %2065 = vmatprep.subr.mxu0 0.0
    %2066 = vmatpush1.msra.mxu0 0.0
    %2067 = vmatprep.subr.mxu0 0.0
    %2068 = vmatpush1.msra.mxu0 0.0
    %2069 = vmatprep.subr.mxu0 0.0
    %2070 = vmatpush1.msra.mxu0 0.0
    %2071 = vmatprep.subr.mxu0 0.0
    %2072 = vmatpush1.msra.mxu0 0.0
    %2073 = vmatprep.subr.mxu0 0.0
    %2074 = vmatpush1.msra.mxu0 0.0
    %2075 = vmatprep.subr.mxu0 0.0
    %2076 = vmatpush1.msra.mxu0 0.0
    %2077 = vmatprep.subr.mxu0 0.0
    %2078 = vmatpush1.msra.mxu0 0.0
    %2079 = vmatprep.subr.mxu0 0.0
    %2080 = vmatpush1.msra.mxu0 0.0
    %2081 = vmatprep.subr.mxu0 0.0
    %2082 = vmatpush1.msra.mxu0 0.0
    %2083 = vmatprep.subr.mxu0 0.0
    %2084 = vmatpush1.msra.mxu0 0.0
    %2085 = vmatprep.subr.mxu0 0.0
    %2086 = vmatpush1.msra.mxu0 0.0
    %2087 = vmatprep.subr.mxu0 0.0
    %2088 = vmatpush1.msra.mxu0 0.0
    %2089 = vmatprep.subr.mxu0 0.0
    %2090 = vmatpush1.msra.mxu0 0.0
    %2091 = vmatprep.subr.mxu0 0.0
    %2092 = vmatpush1.msra.mxu0 0.0
    %2093 = vmatprep.subr.mxu0 0.0
    %2094 = vmatpush1.msra.mxu0 0.0
    %2095 = vmatprep.subr.mxu0 0.0
    %2096 = vmatpush1.msra.mxu0 0.0
    %2097 = vmatprep.subr.mxu0 0.0
    %2098 = vmatpush1.msra.mxu0 0.0
    %2099 = vmatprep.subr.mxu0 0.0
    %2100 = vmatpush1.msra.mxu0 0.0
    %2101 = vmatprep.subr.mxu0 0.0
    %2102 = vmatpush1.msra.mxu0 0.0
    %2103 = vmatprep.subr.mxu0 0.0
    %2104 = vmatpush1.msra.mxu0 0.0
    %2105 = vmatprep.subr.mxu0 0.0
    %2106 = vmatpush1.msra.mxu0 0.0
    %2107 = vmatprep.subr.mxu0 0.0
    %2108 = vmatpush1.msra.mxu0 0.0
    %2109 = vmatprep.subr.mxu0 0.0
    %2110 = vmatpush1.msra.mxu0 0.0
    %2111 = vmatprep.subr.mxu0 0.0
    %2112 = vmatpush1.msra.mxu0 0.0
    %2113 = vmatprep.subr.mxu0 0.0
    %2114 = vmatpush1.msra.mxu0 0.0
    %2115 = vmatprep.subr.mxu0 0.0
    %2116 = vmatpush1.msra.mxu0 0.0
    %2117 = vmatprep.subr.mxu0 0.0
    %2118 = vmatpush1.msra.mxu0 0.0
    %2119 = vmatprep.subr.mxu0 0.0
    %2120 = vmatpush1.msra.mxu0 0.0
    %2121 = vmatprep.subr.mxu0 0.0
    %2122 = vmatpush1.msra.mxu0 0.0
    %2123 = vmatprep.mubr.f32.mxu0 0.0
    %2124 = vmatmul.mubr.f32.gmra.mrb[0].mxu0 %v2057
    %v2125 = vpop.f32.mrb[0].mxu0
    %v2126 = vadd.f32 0.0, %v2125
    %v2127 = vpop.f32.mrb[0].mxu0
    %2128 = vdwg.mxu0
    %v2129 = vadd.f32 %v1891, %v2126
    %2130 = vmatprep.subr.mxu0 0.0
    %2131 = vmatpush1.msra.mxu0 %v932
    %2132 = vmatprep.subr.mxu0 0.0
    %2133 = vmatpush1.msra.mxu0 0.0
    %2134 = vmatprep.subr.mxu0 0.0
    %2135 = vmatpush1.msra.mxu0 0.0
    %2136 = vmatprep.subr.mxu0 0.0
    %2137 = vmatpush1.msra.mxu0 0.0
    %2138 = vmatprep.subr.mxu0 0.0
    %2139 = vmatpush1.msra.mxu0 0.0
    %2140 = vmatprep.subr.mxu0 0.0
    %2141 = vmatpush1.msra.mxu0 0.0
    %2142 = vmatprep.subr.mxu0 0.0
    %2143 = vmatpush1.msra.mxu0 0.0
    %2144 = vmatprep.subr.mxu0 0.0
    %2145 = vmatpush1.msra.mxu0 0.0
    %2146 = vmatprep.subr.mxu0 0.0
    %2147 = vmatpush1.msra.mxu0 0.0
    %2148 = vmatprep.subr.mxu0 0.0
    %2149 = vmatpush1.msra.mxu0 0.0
    %2150 = vmatprep.subr.mxu0 0.0
    %2151 = vmatpush1.msra.mxu0 0.0
    %2152 = vmatprep.subr.mxu0 0.0
    %2153 = vmatpush1.msra.mxu0 0.0
    %2154 = vmatprep.subr.mxu0 0.0
    %2155 = vmatpush1.msra.mxu0 0.0
    %2156 = vmatprep.subr.mxu0 0.0
    %2157 = vmatpush1.msra.mxu0 0.0
    %2158 = vmatprep.subr.mxu0 0.0
    %2159 = vmatpush1.msra.mxu0 0.0
    %2160 = vmatprep.subr.mxu0 0.0
    %2161 = vmatpush1.msra.mxu0 0.0
    %2162 = vmatprep.subr.mxu0 0.0
    %2163 = vmatpush1.msra.mxu0 0.0
    %2164 = vmatprep.subr.mxu0 0.0
    %2165 = vmatpush1.msra.mxu0 0.0
    %2166 = vmatprep.subr.mxu0 0.0
    %2167 = vmatpush1.msra.mxu0 0.0
    %2168 = vmatprep.subr.mxu0 0.0
    %2169 = vmatpush1.msra.mxu0 0.0
    %2170 = vmatprep.subr.mxu0 0.0
    %2171 = vmatpush1.msra.mxu0 0.0
    %2172 = vmatprep.subr.mxu0 0.0
    %2173 = vmatpush1.msra.mxu0 0.0
    %2174 = vmatprep.subr.mxu0 0.0
    %2175 = vmatpush1.msra.mxu0 0.0
    %2176 = vmatprep.subr.mxu0 0.0
    %2177 = vmatpush1.msra.mxu0 0.0
    %2178 = vmatprep.subr.mxu0 0.0
    %2179 = vmatpush1.msra.mxu0 0.0
    %2180 = vmatprep.subr.mxu0 0.0
    %2181 = vmatpush1.msra.mxu0 0.0
    %2182 = vmatprep.subr.mxu0 0.0
    %2183 = vmatpush1.msra.mxu0 0.0
    %2184 = vmatprep.subr.mxu0 0.0
    %2185 = vmatpush1.msra.mxu0 0.0
    %2186 = vmatprep.subr.mxu0 0.0
    %2187 = vmatpush1.msra.mxu0 0.0
    %2188 = vmatprep.subr.mxu0 0.0
    %2189 = vmatpush1.msra.mxu0 0.0
    %2190 = vmatprep.subr.mxu0 0.0
    %2191 = vmatpush1.msra.mxu0 0.0
    %2192 = vmatprep.subr.mxu0 0.0
    %2193 = vmatpush1.msra.mxu0 0.0
    %2194 = vmatprep.mubr.f32.mxu0 0.0
    %2195 = vmatmul.mubr.f32.gmra.mrb[0].mxu0 %v741
    %v2196 = vpop.f32.mrb[0].mxu0
    %v2197 = vadd.f32 %v938, %v2196
    %v2198 = vpop.f32.mrb[0].mxu0
    %2199 = vdwg.mxu0
    %2200 = vmatprep.subr.mxu0 0.0
    %2201 = vmatpush1.msra.mxu0 %v931
    %2202 = vmatprep.subr.mxu0 0.0
    %2203 = vmatpush1.msra.mxu0 0.0
    %2204 = vmatprep.subr.mxu0 0.0
    %2205 = vmatpush1.msra.mxu0 0.0
    %2206 = vmatprep.subr.mxu0 0.0
    %2207 = vmatpush1.msra.mxu0 0.0
    %2208 = vmatprep.subr.mxu0 0.0
    %2209 = vmatpush1.msra.mxu0 0.0
    %2210 = vmatprep.subr.mxu0 0.0
    %2211 = vmatpush1.msra.mxu0 0.0
    %2212 = vmatprep.subr.mxu0 0.0
    %2213 = vmatpush1.msra.mxu0 0.0
    %2214 = vmatprep.subr.mxu0 0.0
    %2215 = vmatpush1.msra.mxu0 0.0
    %2216 = vmatprep.subr.mxu0 0.0
    %2217 = vmatpush1.msra.mxu0 0.0
    %2218 = vmatprep.subr.mxu0 0.0
    %2219 = vmatpush1.msra.mxu0 0.0
    %2220 = vmatprep.subr.mxu0 0.0
    %2221 = vmatpush1.msra.mxu0 0.0
    %2222 = vmatprep.subr.mxu0 0.0
    %2223 = vmatpush1.msra.mxu0 0.0
    %2224 = vmatprep.subr.mxu0 0.0
    %2225 = vmatpush1.msra.mxu0 0.0
    %2226 = vmatprep.subr.mxu0 0.0
    %2227 = vmatpush1.msra.mxu0 0.0
    %2228 = vmatprep.subr.mxu0 0.0
    %2229 = vmatpush1.msra.mxu0 0.0
    %2230 = vmatprep.subr.mxu0 0.0
    %2231 = vmatpush1.msra.mxu0 0.0
    %2232 = vmatprep.subr.mxu0 0.0
    %2233 = vmatpush1.msra.mxu0 0.0
    %2234 = vmatprep.subr.mxu0 0.0
    %2235 = vmatpush1.msra.mxu0 0.0
    %2236 = vmatprep.subr.mxu0 0.0
    %2237 = vmatpush1.msra.mxu0 0.0
    %2238 = vmatprep.subr.mxu0 0.0
    %2239 = vmatpush1.msra.mxu0 0.0
    %2240 = vmatprep.subr.mxu0 0.0
    %2241 = vmatpush1.msra.mxu0 0.0
    %2242 = vmatprep.subr.mxu0 0.0
    %2243 = vmatpush1.msra.mxu0 0.0
    %2244 = vmatprep.subr.mxu0 0.0
    %2245 = vmatpush1.msra.mxu0 0.0
    %2246 = vmatprep.subr.mxu0 0.0
    %2247 = vmatpush1.msra.mxu0 0.0
    %2248 = vmatprep.subr.mxu0 0.0
    %2249 = vmatpush1.msra.mxu0 0.0
    %2250 = vmatprep.subr.mxu0 0.0
    %2251 = vmatpush1.msra.mxu0 0.0
    %2252 = vmatprep.subr.mxu0 0.0
    %2253 = vmatpush1.msra.mxu0 0.0
    %2254 = vmatprep.subr.mxu0 0.0
    %2255 = vmatpush1.msra.mxu0 0.0
    %2256 = vmatprep.subr.mxu0 0.0
    %2257 = vmatpush1.msra.mxu0 0.0
    %2258 = vmatprep.subr.mxu0 0.0
    %2259 = vmatpush1.msra.mxu0 0.0
    %2260 = vmatprep.subr.mxu0 0.0
    %2261 = vmatpush1.msra.mxu0 0.0
    %2262 = vmatprep.subr.mxu0 0.0
    %2263 = vmatpush1.msra.mxu0 0.0
    %2264 = vmatprep.mubr.f32.mxu0 0.0
    %2265 = vmatmul.mubr.f32.gmra.mrb[0].mxu0 %v2057
    %v2266 = vpop.f32.mrb[0].mxu0
    %v2267 = vadd.f32 0.0, %v2266
    %v2268 = vpop.f32.mrb[0].mxu0
    %2269 = vdwg.mxu0
    %v2270 = vadd.f32 %v2197, %v2267
    %v2271 = vtanh.pop %v2270
    %v2272 = vmul.f32 %v2271, 0.5
    %v2273 = vadd.f32 %v2272, 0.5
    %v2274 = vmul.f32 %v2273, %v2046
    %2276 = vrot.lane.b32.xlu0 %v2271, 104
    %v2277 = vpop.permute.xlu0 %2276
    %v2279 = vmul.f32 %v2273, %v2277
    %2281 = vrot.lane.b32.xlu0 %v2279, 8
    %v2282 = vpop.permute.xlu0 %2281
    %v2284 = vadd.f32 %v2274, %v2282
    %v2285 = vtanh.pop %v2284
    %2287 = vrot.lane.b32.xlu0 %v2285, 8
    %v2288 = vpop.permute.xlu0 %2287
    %v2290 = vmul.f32 %v2273, %v2288
    %v2291 = vld [vmem:[%s7 + $0x28] sm:$0xff]
    %2293 = vrot.lane.b32.xlu0 %v2290, 112
    %v2294 = vpop.permute.xlu0 %2293
    %v2295 = vsel %vm157, %v2294, 0
    %2297 = vmatprep.subr.mxu0 0.0
    %2298 = vmatpush1.msra.mxu0 %v2291
    %2299 = vmatprep.subr.mxu0 0.0
    %2300 = vmatpush1.msra.mxu0 0.0
    %2301 = vmatprep.subr.mxu0 0.0
    %2302 = vmatpush1.msra.mxu0 0.0
    %2303 = vmatprep.subr.mxu0 0.0
    %2304 = vmatpush1.msra.mxu0 0.0
    %2305 = vmatprep.subr.mxu0 0.0
    %2306 = vmatpush1.msra.mxu0 0.0
    %2307 = vmatprep.subr.mxu0 0.0
    %2308 = vmatpush1.msra.mxu0 0.0
    %2309 = vmatprep.subr.mxu0 0.0
    %2310 = vmatpush1.msra.mxu0 0.0
    %2311 = vmatprep.subr.mxu0 0.0
    %2312 = vmatpush1.msra.mxu0 0.0
    %2313 = vmatprep.subr.mxu0 0.0
    %2314 = vmatpush1.msra.mxu0 0.0
    %2315 = vmatprep.subr.mxu0 0.0
    %2316 = vmatpush1.msra.mxu0 0.0
    %2317 = vmatprep.subr.mxu0 0.0
    %2318 = vmatpush1.msra.mxu0 0.0
    %2319 = vmatprep.subr.mxu0 0.0
    %2320 = vmatpush1.msra.mxu0 0.0
    %2321 = vmatprep.subr.mxu0 0.0
    %2322 = vmatpush1.msra.mxu0 0.0
    %2323 = vmatprep.subr.mxu0 0.0
    %2324 = vmatpush1.msra.mxu0 0.0
    %2325 = vmatprep.subr.mxu0 0.0
    %2326 = vmatpush1.msra.mxu0 0.0
    %2327 = vmatprep.subr.mxu0 0.0
    %2328 = vmatpush1.msra.mxu0 0.0
    %2329 = vmatprep.subr.mxu0 0.0
    %2330 = vmatpush1.msra.mxu0 0.0
    %2331 = vmatprep.subr.mxu0 0.0
    %2332 = vmatpush1.msra.mxu0 0.0
    %2333 = vmatprep.subr.mxu0 0.0
    %2334 = vmatpush1.msra.mxu0 0.0
    %2335 = vmatprep.subr.mxu0 0.0
    %2336 = vmatpush1.msra.mxu0 0.0
    %2337 = vmatprep.subr.mxu0 0.0
    %2338 = vmatpush1.msra.mxu0 0.0
    %2339 = vmatprep.subr.mxu0 0.0
    %2340 = vmatpush1.msra.mxu0 0.0
    %2341 = vmatprep.subr.mxu0 0.0
    %2342 = vmatpush1.msra.mxu0 0.0
    %2343 = vmatprep.subr.mxu0 0.0
    %2344 = vmatpush1.msra.mxu0 0.0
    %2345 = vmatprep.subr.mxu0 0.0
    %2346 = vmatpush1.msra.mxu0 0.0
    %2347 = vmatprep.subr.mxu0 0.0
    %2348 = vmatpush1.msra.mxu0 0.0
    %2349 = vmatprep.subr.mxu0 0.0
    %2350 = vmatpush1.msra.mxu0 0.0
    %2351 = vmatprep.subr.mxu0 0.0
    %2352 = vmatpush1.msra.mxu0 0.0
    %2353 = vmatprep.subr.mxu0 0.0
    %2354 = vmatpush1.msra.mxu0 0.0
    %2355 = vmatprep.subr.mxu0 0.0
    %2356 = vmatpush1.msra.mxu0 0.0
    %2357 = vmatprep.subr.mxu0 0.0
    %2358 = vmatpush1.msra.mxu0 0.0
    %2359 = vmatprep.subr.mxu0 0.0
    %2360 = vmatpush1.msra.mxu0 0.0
    %2361 = vmatprep.mubr.f32.mxu0 0.0
    %2362 = vmatmul.mubr.f32.gmra.mrb[0].mxu0 %v2295
    %v2363 = vpop.f32.mrb[0].mxu0
    %v2364 = vadd.f32 0.0, %v2363
    %v2365 = vpop.f32.mrb[0].mxu0
    %2366 = vdwg.mxu0
    %v2367 = vadd.f32 %v2129, %v2364
    %2368 = vmatprep.subr.mxu0 0.0
    %2369 = vmatpush1.msra.mxu0 %v932
    %2370 = vmatprep.subr.mxu0 0.0
    %2371 = vmatpush1.msra.mxu0 0.0
    %2372 = vmatprep.subr.mxu0 0.0
    %2373 = vmatpush1.msra.mxu0 0.0
    %2374 = vmatprep.subr.mxu0 0.0
    %2375 = vmatpush1.msra.mxu0 0.0
    %2376 = vmatprep.subr.mxu0 0.0
    %2377 = vmatpush1.msra.mxu0 0.0
    %2378 = vmatprep.subr.mxu0 0.0
    %2379 = vmatpush1.msra.mxu0 0.0
    %2380 = vmatprep.subr.mxu0 0.0
    %2381 = vmatpush1.msra.mxu0 0.0
    %2382 = vmatprep.subr.mxu0 0.0
    %2383 = vmatpush1.msra.mxu0 0.0
    %2384 = vmatprep.subr.mxu0 0.0
    %2385 = vmatpush1.msra.mxu0 0.0
    %2386 = vmatprep.subr.mxu0 0.0
    %2387 = vmatpush1.msra.mxu0 0.0
    %2388 = vmatprep.subr.mxu0 0.0
    %2389 = vmatpush1.msra.mxu0 0.0
    %2390 = vmatprep.subr.mxu0 0.0
    %2391 = vmatpush1.msra.mxu0 0.0
    %2392 = vmatprep.subr.mxu0 0.0
    %2393 = vmatpush1.msra.mxu0 0.0
    %2394 = vmatprep.subr.mxu0 0.0
    %2395 = vmatpush1.msra.mxu0 0.0
    %2396 = vmatprep.subr.mxu0 0.0
    %2397 = vmatpush1.msra.mxu0 0.0
    %2398 = vmatprep.subr.mxu0 0.0
    %2399 = vmatpush1.msra.mxu0 0.0
    %2400 = vmatprep.subr.mxu0 0.0
    %2401 = vmatpush1.msra.mxu0 0.0
    %2402 = vmatprep.subr.mxu0 0.0
    %2403 = vmatpush1.msra.mxu0 0.0
    %2404 = vmatprep.subr.mxu0 0.0
    %2405 = vmatpush1.msra.mxu0 0.0
    %2406 = vmatprep.subr.mxu0 0.0
    %2407 = vmatpush1.msra.mxu0 0.0
    %2408 = vmatprep.subr.mxu0 0.0
    %2409 = vmatpush1.msra.mxu0 0.0
    %2410 = vmatprep.subr.mxu0 0.0
    %2411 = vmatpush1.msra.mxu0 0.0
    %2412 = vmatprep.subr.mxu0 0.0
    %2413 = vmatpush1.msra.mxu0 0.0
    %2414 = vmatprep.subr.mxu0 0.0
    %2415 = vmatpush1.msra.mxu0 0.0
    %2416 = vmatprep.subr.mxu0 0.0
    %2417 = vmatpush1.msra.mxu0 0.0
    %2418 = vmatprep.subr.mxu0 0.0
    %2419 = vmatpush1.msra.mxu0 0.0
    %2420 = vmatprep.subr.mxu0 0.0
    %2421 = vmatpush1.msra.mxu0 0.0
    %2422 = vmatprep.subr.mxu0 0.0
    %2423 = vmatpush1.msra.mxu0 0.0
    %2424 = vmatprep.subr.mxu0 0.0
    %2425 = vmatpush1.msra.mxu0 0.0
    %2426 = vmatprep.subr.mxu0 0.0
    %2427 = vmatpush1.msra.mxu0 0.0
    %2428 = vmatprep.subr.mxu0 0.0
    %2429 = vmatpush1.msra.mxu0 0.0
    %2430 = vmatprep.subr.mxu0 0.0
    %2431 = vmatpush1.msra.mxu0 0.0
    %2432 = vmatprep.mubr.f32.mxu0 0.0
    %2433 = vmatmul.mubr.f32.gmra.mrb[0].mxu0 %v838
    %v2434 = vpop.f32.mrb[0].mxu0
    %v2435 = vadd.f32 %v938, %v2434
    %v2436 = vpop.f32.mrb[0].mxu0
    %2437 = vdwg.mxu0
    %2438 = vmatprep.subr.mxu0 0.0
    %2439 = vmatpush1.msra.mxu0 %v931
    %2440 = vmatprep.subr.mxu0 0.0
    %2441 = vmatpush1.msra.mxu0 0.0
    %2442 = vmatprep.subr.mxu0 0.0
    %2443 = vmatpush1.msra.mxu0 0.0
    %2444 = vmatprep.subr.mxu0 0.0
    %2445 = vmatpush1.msra.mxu0 0.0
    %2446 = vmatprep.subr.mxu0 0.0
    %2447 = vmatpush1.msra.mxu0 0.0
    %2448 = vmatprep.subr.mxu0 0.0
    %2449 = vmatpush1.msra.mxu0 0.0
    %2450 = vmatprep.subr.mxu0 0.0
    %2451 = vmatpush1.msra.mxu0 0.0
    %2452 = vmatprep.subr.mxu0 0.0
    %2453 = vmatpush1.msra.mxu0 0.0
    %2454 = vmatprep.subr.mxu0 0.0
    %2455 = vmatpush1.msra.mxu0 0.0
    %2456 = vmatprep.subr.mxu0 0.0
    %2457 = vmatpush1.msra.mxu0 0.0
    %2458 = vmatprep.subr.mxu0 0.0
    %2459 = vmatpush1.msra.mxu0 0.0
    %2460 = vmatprep.subr.mxu0 0.0
    %2461 = vmatpush1.msra.mxu0 0.0
    %2462 = vmatprep.subr.mxu0 0.0
    %2463 = vmatpush1.msra.mxu0 0.0
    %2464 = vmatprep.subr.mxu0 0.0
    %2465 = vmatpush1.msra.mxu0 0.0
    %2466 = vmatprep.subr.mxu0 0.0
    %2467 = vmatpush1.msra.mxu0 0.0
    %2468 = vmatprep.subr.mxu0 0.0
    %2469 = vmatpush1.msra.mxu0 0.0
    %2470 = vmatprep.subr.mxu0 0.0
    %2471 = vmatpush1.msra.mxu0 0.0
    %2472 = vmatprep.subr.mxu0 0.0
    %2473 = vmatpush1.msra.mxu0 0.0
    %2474 = vmatprep.subr.mxu0 0.0
    %2475 = vmatpush1.msra.mxu0 0.0
    %2476 = vmatprep.subr.mxu0 0.0
    %2477 = vmatpush1.msra.mxu0 0.0
    %2478 = vmatprep.subr.mxu0 0.0
    %2479 = vmatpush1.msra.mxu0 0.0
    %2480 = vmatprep.subr.mxu0 0.0
    %2481 = vmatpush1.msra.mxu0 0.0
    %2482 = vmatprep.subr.mxu0 0.0
    %2483 = vmatpush1.msra.mxu0 0.0
    %2484 = vmatprep.subr.mxu0 0.0
    %2485 = vmatpush1.msra.mxu0 0.0
    %2486 = vmatprep.subr.mxu0 0.0
    %2487 = vmatpush1.msra.mxu0 0.0
    %2488 = vmatprep.subr.mxu0 0.0
    %2489 = vmatpush1.msra.mxu0 0.0
    %2490 = vmatprep.subr.mxu0 0.0
    %2491 = vmatpush1.msra.mxu0 0.0
    %2492 = vmatprep.subr.mxu0 0.0
    %2493 = vmatpush1.msra.mxu0 0.0
    %2494 = vmatprep.subr.mxu0 0.0
    %2495 = vmatpush1.msra.mxu0 0.0
    %2496 = vmatprep.subr.mxu0 0.0
    %2497 = vmatpush1.msra.mxu0 0.0
    %2498 = vmatprep.subr.mxu0 0.0
    %2499 = vmatpush1.msra.mxu0 0.0
    %2500 = vmatprep.subr.mxu0 0.0
    %2501 = vmatpush1.msra.mxu0 0.0
    %2502 = vmatprep.mubr.f32.mxu0 0.0
    %2503 = vmatmul.mubr.f32.gmra.mrb[0].mxu0 %v2295
    %v2504 = vpop.f32.mrb[0].mxu0
    %v2505 = vadd.f32 0.0, %v2504
    %v2506 = vpop.f32.mrb[0].mxu0
    %2507 = vdwg.mxu0
    %v2508 = vadd.f32 %v2435, %v2505
    %v2509 = vtanh.pop %v2508
    %v2510 = vmul.f32 %v2509, 0.5
    %v2511 = vadd.f32 %v2510, 0.5
    %v2512 = vmul.f32 %v2511, %v2284
    %2514 = vrot.lane.b32.xlu0 %v2509, 104
    %v2515 = vpop.permute.xlu0 %2514
    %v2517 = vmul.f32 %v2511, %v2515
    %2519 = vrot.lane.b32.xlu0 %v2517, 8
    %v2520 = vpop.permute.xlu0 %2519
    %v2522 = vadd.f32 %v2512, %v2520
    %v2523 = vtanh.pop %v2522
    %2525 = vrot.lane.b32.xlu0 %v2523, 8
    %v2526 = vpop.permute.xlu0 %2525
    %v2528 = vmul.f32 %v2511, %v2526
    %v2529 = vld [vmem:[%s7 + $0x30] sm:$0xff]
    %2531 = vrot.lane.b32.xlu0 %v2528, 112
    %v2532 = vpop.permute.xlu0 %2531
    %v2533 = vsel %vm157, %v2532, 0
    %2535 = vmatprep.subr.mxu0 0.0
    %2536 = vmatpush1.msra.mxu0 %v2529
    %2537 = vmatprep.subr.mxu0 0.0
    %2538 = vmatpush1.msra.mxu0 0.0
    %2539 = vmatprep.subr.mxu0 0.0
    %2540 = vmatpush1.msra.mxu0 0.0
    %2541 = vmatprep.subr.mxu0 0.0
    %2542 = vmatpush1.msra.mxu0 0.0
    %2543 = vmatprep.subr.mxu0 0.0
    %2544 = vmatpush1.msra.mxu0 0.0
    %2545 = vmatprep.subr.mxu0 0.0
    %2546 = vmatpush1.msra.mxu0 0.0
    %2547 = vmatprep.subr.mxu0 0.0
    %2548 = vmatpush1.msra.mxu0 0.0
    %2549 = vmatprep.subr.mxu0 0.0
    %2550 = vmatpush1.msra.mxu0 0.0
    %2551 = vmatprep.subr.mxu0 0.0
    %2552 = vmatpush1.msra.mxu0 0.0
    %2553 = vmatprep.subr.mxu0 0.0
    %2554 = vmatpush1.msra.mxu0 0.0
    %2555 = vmatprep.subr.mxu0 0.0
    %2556 = vmatpush1.msra.mxu0 0.0
    %2557 = vmatprep.subr.mxu0 0.0
    %2558 = vmatpush1.msra.mxu0 0.0
    %2559 = vmatprep.subr.mxu0 0.0
    %2560 = vmatpush1.msra.mxu0 0.0
    %2561 = vmatprep.subr.mxu0 0.0
    %2562 = vmatpush1.msra.mxu0 0.0
    %2563 = vmatprep.subr.mxu0 0.0
    %2564 = vmatpush1.msra.mxu0 0.0
    %2565 = vmatprep.subr.mxu0 0.0
    %2566 = vmatpush1.msra.mxu0 0.0
    %2567 = vmatprep.subr.mxu0 0.0
    %2568 = vmatpush1.msra.mxu0 0.0
    %2569 = vmatprep.subr.mxu0 0.0
    %2570 = vmatpush1.msra.mxu0 0.0
    %2571 = vmatprep.subr.mxu0 0.0
    %2572 = vmatpush1.msra.mxu0 0.0
    %2573 = vmatprep.subr.mxu0 0.0
    %2574 = vmatpush1.msra.mxu0 0.0
    %2575 = vmatprep.subr.mxu0 0.0
    %2576 = vmatpush1.msra.mxu0 0.0
    %2577 = vmatprep.subr.mxu0 0.0
    %2578 = vmatpush1.msra.mxu0 0.0
    %2579 = vmatprep.subr.mxu0 0.0
    %2580 = vmatpush1.msra.mxu0 0.0
    %2581 = vmatprep.subr.mxu0 0.0
    %2582 = vmatpush1.msra.mxu0 0.0
    %2583 = vmatprep.subr.mxu0 0.0
    %2584 = vmatpush1.msra.mxu0 0.0
    %2585 = vmatprep.subr.mxu0 0.0
    %2586 = vmatpush1.msra.mxu0 0.0
    %2587 = vmatprep.subr.mxu0 0.0
    %2588 = vmatpush1.msra.mxu0 0.0
    %2589 = vmatprep.subr.mxu0 0.0
    %2590 = vmatpush1.msra.mxu0 0.0
    %2591 = vmatprep.subr.mxu0 0.0
    %2592 = vmatpush1.msra.mxu0 0.0
    %2593 = vmatprep.subr.mxu0 0.0
    %2594 = vmatpush1.msra.mxu0 0.0
    %2595 = vmatprep.subr.mxu0 0.0
    %2596 = vmatpush1.msra.mxu0 0.0
    %2597 = vmatprep.subr.mxu0 0.0
    %2598 = vmatpush1.msra.mxu0 0.0
    %2599 = vmatprep.mubr.f32.mxu0 0.0
    %2600 = vmatmul.mubr.f32.gmra.mrb[0].mxu0 %v2533
    %v2601 = vpop.f32.mrb[0].mxu0
    %v2602 = vadd.f32 0.0, %v2601
    %v2603 = vpop.f32.mrb[0].mxu0
    %2604 = vdwg.mxu0
    %v2605 = vadd.f32 %v2367, %v2602
    %2607 = vrot.lane.b32.xlu0 %v930, 112
    %v2608 = vpop.permute.xlu0 %2607
    %v2609 = vsel %vm157, %v2608, 0
    %2611 = vmatprep.subr.mxu0 0.0
    %2612 = vmatpush1.msra.mxu0 %v932
    %2613 = vmatprep.subr.mxu0 0.0
    %2614 = vmatpush1.msra.mxu0 0.0
    %2615 = vmatprep.subr.mxu0 0.0
    %2616 = vmatpush1.msra.mxu0 0.0
    %2617 = vmatprep.subr.mxu0 0.0
    %2618 = vmatpush1.msra.mxu0 0.0
    %2619 = vmatprep.subr.mxu0 0.0
    %2620 = vmatpush1.msra.mxu0 0.0
    %2621 = vmatprep.subr.mxu0 0.0
    %2622 = vmatpush1.msra.mxu0 0.0
    %2623 = vmatprep.subr.mxu0 0.0
    %2624 = vmatpush1.msra.mxu0 0.0
    %2625 = vmatprep.subr.mxu0 0.0
    %2626 = vmatpush1.msra.mxu0 0.0
    %2627 = vmatprep.subr.mxu0 0.0
    %2628 = vmatpush1.msra.mxu0 0.0
    %2629 = vmatprep.subr.mxu0 0.0
    %2630 = vmatpush1.msra.mxu0 0.0
    %2631 = vmatprep.subr.mxu0 0.0
    %2632 = vmatpush1.msra.mxu0 0.0
    %2633 = vmatprep.subr.mxu0 0.0
    %2634 = vmatpush1.msra.mxu0 0.0
    %2635 = vmatprep.subr.mxu0 0.0
    %2636 = vmatpush1.msra.mxu0 0.0
    %2637 = vmatprep.subr.mxu0 0.0
    %2638 = vmatpush1.msra.mxu0 0.0
    %2639 = vmatprep.subr.mxu0 0.0
    %2640 = vmatpush1.msra.mxu0 0.0
    %2641 = vmatprep.subr.mxu0 0.0
    %2642 = vmatpush1.msra.mxu0 0.0
    %2643 = vmatprep.subr.mxu0 0.0
    %2644 = vmatpush1.msra.mxu0 0.0
    %2645 = vmatprep.subr.mxu0 0.0
    %2646 = vmatpush1.msra.mxu0 0.0
    %2647 = vmatprep.subr.mxu0 0.0
    %2648 = vmatpush1.msra.mxu0 0.0
    %2649 = vmatprep.subr.mxu0 0.0
    %2650 = vmatpush1.msra.mxu0 0.0
    %2651 = vmatprep.subr.mxu0 0.0
    %2652 = vmatpush1.msra.mxu0 0.0
    %2653 = vmatprep.subr.mxu0 0.0
    %2654 = vmatpush1.msra.mxu0 0.0
    %2655 = vmatprep.subr.mxu0 0.0
    %2656 = vmatpush1.msra.mxu0 0.0
    %2657 = vmatprep.subr.mxu0 0.0
    %2658 = vmatpush1.msra.mxu0 0.0
    %2659 = vmatprep.subr.mxu0 0.0
    %2660 = vmatpush1.msra.mxu0 0.0
    %2661 = vmatprep.subr.mxu0 0.0
    %2662 = vmatpush1.msra.mxu0 0.0
    %2663 = vmatprep.subr.mxu0 0.0
    %2664 = vmatpush1.msra.mxu0 0.0
    %2665 = vmatprep.subr.mxu0 0.0
    %2666 = vmatpush1.msra.mxu0 0.0
    %2667 = vmatprep.subr.mxu0 0.0
    %2668 = vmatpush1.msra.mxu0 0.0
    %2669 = vmatprep.subr.mxu0 0.0
    %2670 = vmatpush1.msra.mxu0 0.0
    %2671 = vmatprep.subr.mxu0 0.0
    %2672 = vmatpush1.msra.mxu0 0.0
    %2673 = vmatprep.subr.mxu0 0.0
    %2674 = vmatpush1.msra.mxu0 0.0
    %2675 = vmatprep.mubr.f32.mxu0 0.0
    %2676 = vmatmul.mubr.f32.gmra.mrb[0].mxu0 %v2609
    %v2677 = vpop.f32.mrb[0].mxu0
    %v2678 = vadd.f32 %v938, %v2677
    %v2679 = vpop.f32.mrb[0].mxu0
    %2680 = vdwg.mxu0
    %2681 = vmatprep.subr.mxu0 0.0
    %2682 = vmatpush1.msra.mxu0 %v931
    %2683 = vmatprep.subr.mxu0 0.0
    %2684 = vmatpush1.msra.mxu0 0.0
    %2685 = vmatprep.subr.mxu0 0.0
    %2686 = vmatpush1.msra.mxu0 0.0
    %2687 = vmatprep.subr.mxu0 0.0
    %2688 = vmatpush1.msra.mxu0 0.0
    %2689 = vmatprep.subr.mxu0 0.0
    %2690 = vmatpush1.msra.mxu0 0.0
    %2691 = vmatprep.subr.mxu0 0.0
    %2692 = vmatpush1.msra.mxu0 0.0
    %2693 = vmatprep.subr.mxu0 0.0
    %2694 = vmatpush1.msra.mxu0 0.0
    %2695 = vmatprep.subr.mxu0 0.0
    %2696 = vmatpush1.msra.mxu0 0.0
    %2697 = vmatprep.subr.mxu0 0.0
    %2698 = vmatpush1.msra.mxu0 0.0
    %2699 = vmatprep.subr.mxu0 0.0
    %2700 = vmatpush1.msra.mxu0 0.0
    %2701 = vmatprep.subr.mxu0 0.0
    %2702 = vmatpush1.msra.mxu0 0.0
    %2703 = vmatprep.subr.mxu0 0.0
    %2704 = vmatpush1.msra.mxu0 0.0
    %2705 = vmatprep.subr.mxu0 0.0
    %2706 = vmatpush1.msra.mxu0 0.0
    %2707 = vmatprep.subr.mxu0 0.0
    %2708 = vmatpush1.msra.mxu0 0.0
    %2709 = vmatprep.subr.mxu0 0.0
    %2710 = vmatpush1.msra.mxu0 0.0
    %2711 = vmatprep.subr.mxu0 0.0
    %2712 = vmatpush1.msra.mxu0 0.0
    %2713 = vmatprep.subr.mxu0 0.0
    %2714 = vmatpush1.msra.mxu0 0.0
    %2715 = vmatprep.subr.mxu0 0.0
    %2716 = vmatpush1.msra.mxu0 0.0
    %2717 = vmatprep.subr.mxu0 0.0
    %2718 = vmatpush1.msra.mxu0 0.0
    %2719 = vmatprep.subr.mxu0 0.0
    %2720 = vmatpush1.msra.mxu0 0.0
    %2721 = vmatprep.subr.mxu0 0.0
    %2722 = vmatpush1.msra.mxu0 0.0
    %2723 = vmatprep.subr.mxu0 0.0
    %2724 = vmatpush1.msra.mxu0 0.0
    %2725 = vmatprep.subr.mxu0 0.0
    %2726 = vmatpush1.msra.mxu0 0.0
    %2727 = vmatprep.subr.mxu0 0.0
    %2728 = vmatpush1.msra.mxu0 0.0
    %2729 = vmatprep.subr.mxu0 0.0
    %2730 = vmatpush1.msra.mxu0 0.0
    %2731 = vmatprep.subr.mxu0 0.0
    %2732 = vmatpush1.msra.mxu0 0.0
    %2733 = vmatprep.subr.mxu0 0.0
    %2734 = vmatpush1.msra.mxu0 0.0
    %2735 = vmatprep.subr.mxu0 0.0
    %2736 = vmatpush1.msra.mxu0 0.0
    %2737 = vmatprep.subr.mxu0 0.0
    %2738 = vmatpush1.msra.mxu0 0.0
    %2739 = vmatprep.subr.mxu0 0.0
    %2740 = vmatpush1.msra.mxu0 0.0
    %2741 = vmatprep.subr.mxu0 0.0
    %2742 = vmatpush1.msra.mxu0 0.0
    %2743 = vmatprep.subr.mxu0 0.0
    %2744 = vmatpush1.msra.mxu0 0.0
    %2745 = vmatprep.mubr.f32.mxu0 0.0
    %2746 = vmatmul.mubr.f32.gmra.mrb[0].mxu0 %v2533
    %v2747 = vpop.f32.mrb[0].mxu0
    %v2748 = vadd.f32 0.0, %v2747
    %v2749 = vpop.f32.mrb[0].mxu0
    %2750 = vdwg.mxu0
    %v2751 = vadd.f32 %v2678, %v2748
    %v2752 = vtanh.pop %v2751
    %v2753 = vmul.f32 %v2752, 0.5
    %v2754 = vadd.f32 %v2753, 0.5
    %v2755 = vmul.f32 %v2754, %v2522
    %2757 = vrot.lane.b32.xlu0 %v2752, 104
    %v2758 = vpop.permute.xlu0 %2757
    %v2760 = vmul.f32 %v2754, %v2758
    %2762 = vrot.lane.b32.xlu0 %v2760, 8
    %v2763 = vpop.permute.xlu0 %2762
    %v2765 = vadd.f32 %v2755, %v2763
    %v2766 = vtanh.pop %v2765
    %2768 = vrot.lane.b32.xlu0 %v2766, 8
    %v2769 = vpop.permute.xlu0 %2768
    %v2771 = vmul.f32 %v2754, %v2769
    %v2772 = vld [vmem:[%s7 + $0x38] sm:$0xff]
    %2774 = vrot.lane.b32.xlu0 %v2771, 112
    %v2775 = vpop.permute.xlu0 %2774
    %v2776 = vsel %vm157, %v2775, 0
    %2778 = vmatprep.subr.mxu0 0.0
    %2779 = vmatpush1.msra.mxu0 %v2772
    %2780 = vmatprep.subr.mxu0 0.0
    %2781 = vmatpush1.msra.mxu0 0.0
    %2782 = vmatprep.subr.mxu0 0.0
    %2783 = vmatpush1.msra.mxu0 0.0
    %2784 = vmatprep.subr.mxu0 0.0
    %2785 = vmatpush1.msra.mxu0 0.0
    %2786 = vmatprep.subr.mxu0 0.0
    %2787 = vmatpush1.msra.mxu0 0.0
    %2788 = vmatprep.subr.mxu0 0.0
    %2789 = vmatpush1.msra.mxu0 0.0
    %2790 = vmatprep.subr.mxu0 0.0
    %2791 = vmatpush1.msra.mxu0 0.0
    %2792 = vmatprep.subr.mxu0 0.0
    %2793 = vmatpush1.msra.mxu0 0.0
    %2794 = vmatprep.subr.mxu0 0.0
    %2795 = vmatpush1.msra.mxu0 0.0
    %2796 = vmatprep.subr.mxu0 0.0
    %2797 = vmatpush1.msra.mxu0 0.0
    %2798 = vmatprep.subr.mxu0 0.0
    %2799 = vmatpush1.msra.mxu0 0.0
    %2800 = vmatprep.subr.mxu0 0.0
    %2801 = vmatpush1.msra.mxu0 0.0
    %2802 = vmatprep.subr.mxu0 0.0
    %2803 = vmatpush1.msra.mxu0 0.0
    %2804 = vmatprep.subr.mxu0 0.0
    %2805 = vmatpush1.msra.mxu0 0.0
    %2806 = vmatprep.subr.mxu0 0.0
    %2807 = vmatpush1.msra.mxu0 0.0
    %2808 = vmatprep.subr.mxu0 0.0
    %2809 = vmatpush1.msra.mxu0 0.0
    %2810 = vmatprep.subr.mxu0 0.0
    %2811 = vmatpush1.msra.mxu0 0.0
    %2812 = vmatprep.subr.mxu0 0.0
    %2813 = vmatpush1.msra.mxu0 0.0
    %2814 = vmatprep.subr.mxu0 0.0
    %2815 = vmatpush1.msra.mxu0 0.0
    %2816 = vmatprep.subr.mxu0 0.0
    %2817 = vmatpush1.msra.mxu0 0.0
    %2818 = vmatprep.subr.mxu0 0.0
    %2819 = vmatpush1.msra.mxu0 0.0
    %2820 = vmatprep.subr.mxu0 0.0
    %2821 = vmatpush1.msra.mxu0 0.0
    %2822 = vmatprep.subr.mxu0 0.0
    %2823 = vmatpush1.msra.mxu0 0.0
    %2824 = vmatprep.subr.mxu0 0.0
    %2825 = vmatpush1.msra.mxu0 0.0
    %2826 = vmatprep.subr.mxu0 0.0
    %2827 = vmatpush1.msra.mxu0 0.0
    %2828 = vmatprep.subr.mxu0 0.0
    %2829 = vmatpush1.msra.mxu0 0.0
    %2830 = vmatprep.subr.mxu0 0.0
    %2831 = vmatpush1.msra.mxu0 0.0
    %2832 = vmatprep.subr.mxu0 0.0
    %2833 = vmatpush1.msra.mxu0 0.0
    %2834 = vmatprep.subr.mxu0 0.0
    %2835 = vmatpush1.msra.mxu0 0.0
    %2836 = vmatprep.subr.mxu0 0.0
    %2837 = vmatpush1.msra.mxu0 0.0
    %2838 = vmatprep.subr.mxu0 0.0
    %2839 = vmatpush1.msra.mxu0 0.0
    %2840 = vmatprep.subr.mxu0 0.0
    %2841 = vmatpush1.msra.mxu0 0.0
    %2842 = vmatprep.mubr.f32.mxu0 0.0
    %2843 = vmatmul.mubr.f32.gmra.mrb[0].mxu0 %v2776
    %v2844 = vpop.f32.mrb[0].mxu0
    %v2845 = vadd.f32 0.0, %v2844
    %v2846 = vpop.f32.mrb[0].mxu0
    %2847 = vdwg.mxu0
    %v2848 = vadd.f32 %v2605, %v2845
    %vm2849 = vcmask 58368
    %2850 = vst.msk [vmem:[#allocation3] sm:$0x3] %vm2849, %v2848
    // Predicated region
    $region38: #{lstmad_forward.1} parent=1 // pred_check
      _
    $region39: #{lstmad_forward.1} parent=1 // pred_check_branch
      %2852 = sbr.rel (0) target = $region41
    $region40: #{lstmad_forward.1} parent=1 // pred_region
      %s2854 = ssub.s32 32, 32
      %2855 = vsyncadd [#allocation4], %s2854
      %s2857 = sshll.u32 [#allocation3], 4
      %s2858 = int_to_ptr.vmem [resolvable:$true] %s2857
      %2860 = dma.vmem_to_hbm [thread:$0]  %s2858, 32, %s9, [#allocation4]
    $region41: #{lstmad_forward.1} parent=1 // pred_fallthru
      _
    // Predicated region
    $region42: #{lstmad_forward.1} parent=1 // pred_check
      _
    $region43: #{lstmad_forward.1} parent=1 // pred_check_branch
      %2862 = sbr.rel (0) target = $region45
    $region44: #{lstmad_forward.1} parent=1 // pred_region
      %2863 = dma.done [#allocation4], 32
    $region45: #{lstmad_forward.1} parent=1 // pred_fallthru
      _
    %2864 = vsyncpa [#allocation4], 1

</llo_original>
